<compile_context>
chip_gen: v7x
topology: tpu7x:2x2x1
jax: 0.10.0
libtpu: 0.0.40
codegen_flags: <defaults>
</compile_context>

<pallas_src>
import functools

import jax
import jax.numpy as jnp
from jax import lax
from jax.experimental import pallas as pl
from jax.experimental.pallas import tpu as pltpu


def _round_up(x, m):
    return (x + m - 1) // m * m


def _pad_rows(a, rows):
    pad = rows - a.shape[0]
    if pad == 0:
        return a
    return jnp.pad(a, ((0, pad), (0, 0)))


def _pick_tm():
    """Row-tile size: 256 on v6e (matches the 256-row MXU, 128 MiB VMEM), 128 elsewhere."""
    try:
        kind = jax.devices()[0].device_kind.lower()
    except Exception:
        return 128
    return 256 if "v6" in kind else 128


# ---------------------------------------------------------------------------
# Pallas kernels
# ---------------------------------------------------------------------------
def _feast_conv_kernel(ux_ref, uxt_ref, c_ref, adj_ref, dinv_ref, xw_ref, b_ref,
                       out_ref, *, num_heads, apply_relu):
    """One target-row tile of FeaStConv message passing.

    ux_ref   [TM, H]          u_h . x_i for the target rows of this tile
    uxt_ref  [H,  N]          u_h . x_j for all source nodes (resident, row layout)
    c_ref    [1,  H]          per-head attention bias (resident)
    adj_ref  [TM, N]          bf16 0/1 adjacency row tile, adj[target, source] (self loops added)
    dinv_ref [TM, 1]          1 / degree of the target rows
    xw_ref   [H, N, Fout_p]   bf16, W_h x_j per head (resident)
    b_ref    [1, Fout_p]      bias, zero-padded to the lane-dense Fout_p (resident)
    out_ref  [TM, Fout_p]
    """
    ux = ux_ref[...]                                   # [TM, H] f32
    uxt = uxt_ref[...]                                 # [H, N]  f32
    c = c_ref[...]                                     # [1, H]  f32
    dinv = dinv_ref[...]                               # [TM, 1]

    # One logit pass per head: logits_h[i, j] = u_h . (x_i - x_j) + c_h.
    logits = [(ux[:, hd:hd + 1] - uxt[hd:hd + 1, :]) + c[:, hd:hd + 1]
              for hd in range(num_heads)]              # H x [TM, N] f32 (die after exp)
    m = logits[0]
    for hd in range(1, num_heads):
        m = jnp.maximum(m, logits[hd])

    # One exp per head; e_h is reused for the denominator AND the aggregation (was 2 exps/head).
    # (On v7x with very large N, storing e_h in bf16 would halve the live temporaries.)
    e = [jnp.exp(logits[hd] - m) for hd in range(num_heads)]
    denom = e[0]
    for hd in range(1, num_heads):
        denom = denom + e[hd]

    # Fold the 0/1 adjacency mask and 1/denominator into a single per-(i,j) scale.
    s = adj_ref[...].astype(jnp.float32) * pl.reciprocal(denom, approx=True)   # [TM, N]

    # Per-head MXU accumulation (f32 accumulator); avoids the [TM, H*N] bf16 concat.
    acc = jnp.dot((e[0] * s).astype(jnp.bfloat16), xw_ref[0],
                  preferred_element_type=jnp.float32)                           # [TM, Fout_p]
    for hd in range(1, num_heads):
        acc = acc + jnp.dot((e[hd] * s).astype(jnp.bfloat16), xw_ref[hd],
                            preferred_element_type=jnp.float32)

    out = dinv * acc + b_ref[...]                      # mean aggregation + bias
    if apply_relu:
        out = jnp.maximum(out, 0.0)
    out_ref[...] = out.astype(out_ref.dtype)


def _batchnorm_kernel(x_ref, gamma_ref, beta_ref, w_ref, out_ref, *, eps):
    # BatchNorm1d, training-mode normalization with MASKED batch statistics: w_ref holds 1/n for
    # real node rows and 0 for padded rows, so statistics match the unpadded batch exactly while
    # the output stays lane-dense padded for the next layer.
    x = x_ref[...]                                     # [N_pad, C_pad]
    w = w_ref[...]                                     # [N_pad, 1]
    mean = jnp.sum(x * w, axis=0, keepdims=True)
    var = jnp.sum(((x - mean) ** 2) * w, axis=0, keepdims=True)
    inv = lax.rsqrt(var + eps)
    out_ref[...] = ((x - mean) * inv * gamma_ref[...] + beta_ref[...]).astype(out_ref.dtype)


# ---------------------------------------------------------------------------
# Wrappers (glue)
# ---------------------------------------------------------------------------
_VMEM = pl.BlockSpec(memory_space=pltpu.MemorySpace.VMEM)


def feast_conv(x_pad, adj, deg_inv, U, c, W, b, *, num_heads, apply_relu, tm=128):
    """x_pad [N_pad, Fin] f32, adj [N_pad, N_pad] bf16, deg_inv [N_pad, 1] f32."""
    n_pad = x_pad.shape[0]
    h = num_heads
    fout = b.shape[-1]
    fout_pad = _round_up(fout, 128)                    # lane-dense output / MXU N dim
    assert n_pad % tm == 0 and n_pad % 128 == 0 and tm % 8 == 0

    # O(N*F) feature transforms (tiny next to the O(N^2) kernel work); zero-padding keeps results exact.
    ux = jnp.dot(x_pad, U)                                             # [N_pad, H]
    uxt = ux.T                                                         # [H, N_pad] (once per layer)
    xw = jnp.dot(x_pad, W).reshape(n_pad, h, fout)                     # [N_pad, H, Fout]
    xw = jnp.pad(xw, ((0, 0), (0, 0), (0, fout_pad - fout)))
    xw_hnf = xw.transpose(1, 0, 2).astype(jnp.bfloat16)                # [H, N_pad, Fout_pad]
    b_pad = jnp.pad(b, (0, fout_pad - fout)).reshape(1, -1)
    c2 = c.reshape(1, -1)

    # VMEM budget: residents (single-buffered) + double-buffered row tiles + in-kernel temporaries,
    # with 1.25x headroom; floor 32 MiB (default scoped limit), cap 48 MiB (leave headroom on v7x).
    resident = h * n_pad * fout_pad * 2 + h * n_pad * 4 + fout_pad * 4 + h * 4
    pipelined = 2 * (tm * n_pad * 2 + tm * fout_pad * 4 + tm * h * 4 + tm * 4)
    temps = (2 * h + 4) * tm * n_pad * 4               # logits + e (H each) + m/denom/s/acc
    vmem_limit = min(48 * 1024 * 1024,
                     max(int(1.25 * (resident + pipelined + temps)), 32 * 1024 * 1024))

    kernel = functools.partial(_feast_conv_kernel, num_heads=h, apply_relu=apply_relu)
    return pl.pallas_call(
        kernel,
        out_shape=jax.ShapeDtypeStruct((n_pad, fout_pad), jnp.float32),
        grid_spec=pltpu.PrefetchScalarGridSpec(
            num_scalar_prefetch=0,
            grid=(n_pad // tm,),
            in_specs=[
                pl.BlockSpec((tm, h), lambda i: (i, 0)),               # ux  (target row tile)
                _VMEM,                                                 # uxt (resident, 1 buffer)
                _VMEM,                                                 # c   (resident)
                pl.BlockSpec((tm, n_pad), lambda i: (i, 0)),           # adj row tile (bf16)
                pl.BlockSpec((tm, 1), lambda i: (i, 0)),               # 1/deg
                _VMEM,                                                 # W_h x_j [H,N,Fout_p] (resident)
                _VMEM,                                                 # bias (resident)
            ],
            out_specs=pl.BlockSpec((tm, fout_pad), lambda i: (i, 0)),
        ),
        compiler_params=pltpu.CompilerParams(
            dimension_semantics=("parallel",),          # 2 TensorCores on v7x; harmless on v5e/v6e
            vmem_limit_bytes=vmem_limit,
        ),
    )(ux, uxt, c2, adj, deg_inv, xw_hnf, b_pad)


def batch_norm(x_pad, gamma, beta, row_weight, eps=1e-5):
    """Masked BatchNorm1d on the padded [N_pad, C_pad] activations (stats over real rows only)."""
    c_pad = x_pad.shape[1]
    g = jnp.pad(gamma, (0, c_pad - gamma.shape[0]), constant_values=1.0).reshape(1, -1)
    bt = jnp.pad(beta, (0, c_pad - beta.shape[0])).reshape(1, -1)
    kernel = functools.partial(_batchnorm_kernel, eps=eps)
    return pl.pallas_call(
        kernel,
        out_shape=jax.ShapeDtypeStruct(x_pad.shape, jnp.float32),
        in_specs=[_VMEM] * 4,
        out_specs=_VMEM,
    )(x_pad, g, bt, row_weight)


def dense_graph(edge_index, num_nodes, num_nodes_pad):
    """edge_index [2, E] (src, tgt) -> bf16 adj[target, source] (padded, self loops on real nodes)
    and f32 1/deg [N_pad, 1]."""
    src, tgt = edge_index[0], edge_index[1]
    adj = jnp.zeros((num_nodes_pad, num_nodes_pad), jnp.float32).at[tgt, src].set(1.0)
    diag = (jnp.arange(num_nodes_pad)[:, None] == jnp.arange(num_nodes_pad)[None, :])
    diag = diag.astype(jnp.float32) * (jnp.arange(num_nodes_pad) < num_nodes
                                       ).astype(jnp.float32)[:, None]
    adj = jnp.maximum(adj, diag)                       # with_self_loops=True (real nodes only)
    deg = jnp.sum(adj, axis=-1, keepdims=True)
    deg_inv = 1.0 / jnp.maximum(deg, 1.0)              # padded rows: deg 0 -> keep finite (discarded)
    return adj.astype(jnp.bfloat16), deg_inv


def init_encoder_params(key, in_features, conv_channels, num_heads):
    channels = [in_features] + list(conv_channels)
    params = []
    for fin, fout in zip(channels[:-1], channels[1:]):
        key, k1, k2, k3 = jax.random.split(key, 4)
        params.append(dict(
            U=0.1 * jax.random.normal(k1, (fin, num_heads), jnp.float32),
            c=0.1 * jax.random.normal(k2, (num_heads,), jnp.float32),
            W=0.1 * jax.random.normal(k3, (fin, num_heads * fout), jnp.float32),
            b=jnp.zeros((fout,), jnp.float32),          # reset_parameters: zeros_(bias)
            gamma=jnp.ones((fout,), jnp.float32),       # BatchNorm1d weight
            beta=jnp.zeros((fout,), jnp.float32),       # BatchNorm1d bias
        ))
    return params


def graph_feature_encoder(params, x, edge_index, *, num_heads, apply_batch_norm=True, tm=None):
    if tm is None:
        tm = _pick_tm()
    n = x.shape[0]
    # Even number of row tiles (v7x megacore split) and lane-dense padding.
    n_pad = _round_up(n, max(2 * tm, 256))
    adj, deg_inv = dense_graph(edge_index, n, n_pad)
    # TODO(synk): adj is re-streamed from HBM once per layer; a multi-layer fused kernel keeping
    # the bf16 adj resident in VMEM would remove the dominant HBM traffic when 2*N^2 bytes fit
    # (~N<=5-6K on v5e/v6e, ~N<=3.5-4K on v7x), but requires in-kernel cross-tile BatchNorm stats.
    row_w = ((jnp.arange(n_pad) < n).astype(jnp.float32) / n)[:, None]  # masked-BN row weights
    xp = jnp.pad(x.astype(jnp.float32), ((0, n_pad - n), (0, 0)))

    # Activations stay lane-dense padded [N_pad, F_pad] across layers; each layer's U/W get
    # zero-padded input rows instead (padded feature columns / node rows never reach real outputs
    # because adj is zero on padded sources and the zero U/W rows null padded features).
    for p in params[:-1]:
        u = _pad_rows(p["U"], xp.shape[1])
        w = _pad_rows(p["W"], xp.shape[1])
        xp = feast_conv(xp, adj, deg_inv, u, p["c"], w, p["b"],
                        num_heads=num_heads, apply_relu=True, tm=tm)   # conv + fused ReLU
        if apply_batch_norm:
            xp = batch_norm(xp, p["gamma"], p["beta"], row_w)
    p = params[-1]
    u = _pad_rows(p["U"], xp.shape[1])
    w = _pad_rows(p["W"], xp.shape[1])
    y = feast_conv(xp, adj, deg_inv, u, p["c"], w, p["b"],
                   num_heads=num_heads, apply_relu=False, tm=tm)
    return y[:n, :p["b"].shape[-1]]


# ---------------------------------------------------------------------------
# Pure-JAX f32 reference (for correctness check)
# ---------------------------------------------------------------------------
def _feast_conv_ref(x, adj, deg_inv, u, c, w, b, num_heads):
    n = x.shape[0]
    fout = b.shape[-1]
    ux = x @ u                                                         # [N, H]
    logits = ux[:, None, :] - ux[None, :, :] + c[None, None, :]        # [N, N, H]
    attn = jax.nn.softmax(logits, axis=-1)
    xw = (x @ w).reshape(n, num_heads, fout)
    msg = jnp.einsum("ijh,jhf->ijf", attn, xw)
    return deg_inv * jnp.einsum("ij,ijf->if", adj, msg) + b[None, :]


def _encoder_ref(params, x, edge_index, *, num_heads, apply_batch_norm=True, eps=1e-5):
    n = x.shape[0]
    adj_bf, deg_inv = dense_graph(edge_index, n, n)
    adj = adj_bf.astype(jnp.float32)
    for p in params[:-1]:
        x = _feast_conv_ref(x, adj, deg_inv, p["U"], p["c"], p["W"], p["b"], num_heads)
        x = jnp.maximum(x, 0.0)
        if apply_batch_norm:
            mean = jnp.mean(x, axis=0, keepdims=True)
            var = jnp.mean((x - mean) ** 2, axis=0, keepdims=True)
            x = (x - mean) / jnp.sqrt(var + eps) * p["gamma"] + p["beta"]
    p = params[-1]
    return _feast_conv_ref(x, adj, deg_inv, p["U"], p["c"], p["W"], p["b"], num_heads)


# ---------------------------------------------------------------------------
# Demo
# ---------------------------------------------------------------------------
if __name__ == "__main__":
    key = jax.random.PRNGKey(0)
    num_nodes = 300            # pads to 512 -> even number of row tiles
    in_features = 8
    conv_channels = [32, 16]
    num_heads = 4

    k_x, k_p = jax.random.split(key)
    x = jax.random.normal(k_x, (num_nodes, in_features), jnp.float32)

    # Deterministic mesh-like graph: ring with 1-hop and 2-hop edges, both directions.
    idx = jnp.arange(num_nodes)
    src = jnp.concatenate([idx, (idx + 1) % num_nodes, idx, (idx + 2) % num_nodes])
    tgt = jnp.concatenate([(idx + 1) % num_nodes, idx, (idx + 2) % num_nodes, idx])
    edge_index = jnp.stack([src, tgt]).astype(jnp.int32)               # [2, 1200]

    params = init_encoder_params(k_p, in_features, conv_channels, num_heads)

    out = graph_feature_encoder(params, x, edge_index,
                                num_heads=num_heads, apply_batch_norm=True)
    out = jax.block_until_ready(out)

    ref = _encoder_ref(params, x, edge_index, num_heads=num_heads, apply_batch_norm=True)
    assert out.shape == (num_nodes, conv_channels[-1])
    # bf16 MXU operands + approx reciprocal vs. a pure-f32 reference over 3 stacked layers:
    # compare at a correspondingly loose tolerance.
    assert jnp.allclose(out, ref, atol=5e-2, rtol=5e-2), "Pallas output mismatch vs reference"

    # TODO(synk): BatchNorm1d running_mean/running_var buffer updates (training-time side effect)
    # are not reproduced; only the forward output (batch-statistics normalization) is.
    print("KERNEL_OK")
</pallas_src>

<mosaic_0001>
module attributes {stable_mosaic.version = 11 : i64} {
  func.func @_feast_conv_kernel(%arg0: i32, %arg1: memref<128x4xf32, #tpu.memory_space<vmem>>, %arg2: memref<4x512xf32, #tpu.memory_space<vmem>>, %arg3: memref<1x4xf32, #tpu.memory_space<vmem>>, %arg4: memref<128x512xbf16, #tpu.memory_space<vmem>>, %arg5: memref<128x1xf32, #tpu.memory_space<vmem>>, %arg6: memref<4x512x128xbf16, #tpu.memory_space<vmem>>, %arg7: memref<1x128xf32, #tpu.memory_space<vmem>>, %arg8: memref<128x128xf32, #tpu.memory_space<vmem>>) attributes {dimension_semantics = [#tpu.dimension_semantics<parallel>], iteration_bounds = array<i64: 4>, scalar_prefetch = 0 : i64, scratch_operands = 0 : i64, tpu.core_type = #tpu.core_type<tc>, window_params = [{transform_indices = @transform_0, window_bounds = array<i64: 128, 4>}, {pipeline_mode = #tpu.pipeline_mode<synchronous>, transform_indices = @transform_1, window_bounds = array<i64: 4, 512>}, {pipeline_mode = #tpu.pipeline_mode<synchronous>, transform_indices = @transform_2, window_bounds = array<i64: 1, 4>}, {transform_indices = @transform_3, window_bounds = array<i64: 128, 512>}, {transform_indices = @transform_4, window_bounds = array<i64: 128, 1>}, {pipeline_mode = #tpu.pipeline_mode<synchronous>, transform_indices = @transform_5, window_bounds = array<i64: 4, 512, 128>}, {pipeline_mode = #tpu.pipeline_mode<synchronous>, transform_indices = @transform_6, window_bounds = array<i64: 1, 128>}, {transform_indices = @transform_7, window_bounds = array<i64: 128, 128>}]} {
    %c0 = arith.constant 0 : index
    %c0_0 = arith.constant 0 : index
    %0 = vector.load %arg1[%c0, %c0_0] : memref<128x4xf32, #tpu.memory_space<vmem>>, vector<128x4xf32>
    %c0_1 = arith.constant 0 : index
    %c0_2 = arith.constant 0 : index
    %1 = vector.load %arg2[%c0_1, %c0_2] : memref<4x512xf32, #tpu.memory_space<vmem>>, vector<4x512xf32>
    %c0_3 = arith.constant 0 : index
    %c0_4 = arith.constant 0 : index
    %2 = vector.load %arg3[%c0_3, %c0_4] : memref<1x4xf32, #tpu.memory_space<vmem>>, vector<1x4xf32>
    %c0_5 = arith.constant 0 : index
    %c0_6 = arith.constant 0 : index
    %3 = vector.load %arg5[%c0_5, %c0_6] : memref<128x1xf32, #tpu.memory_space<vmem>>, vector<128x1xf32>
    %4 = vector.extract_strided_slice %0 {offsets = [0, 0], sizes = [128, 1], strides = [1, 1]} : vector<128x4xf32> to vector<128x1xf32>
    %5 = vector.extract_strided_slice %1 {offsets = [0, 0], sizes = [1, 512], strides = [1, 1]} : vector<4x512xf32> to vector<1x512xf32>
    %6 = vector.broadcast %4 : vector<128x1xf32> to vector<128x512xf32>
    %7 = vector.broadcast %5 : vector<1x512xf32> to vector<128x512xf32>
    %8 = arith.subf %6, %7 : vector<128x512xf32>
    %9 = vector.extract_strided_slice %2 {offsets = [0, 0], sizes = [1, 1], strides = [1, 1]} : vector<1x4xf32> to vector<1x1xf32>
    %10 = vector.broadcast %9 : vector<1x1xf32> to vector<128x512xf32>
    %11 = arith.addf %8, %10 : vector<128x512xf32>
    %12 = vector.extract_strided_slice %0 {offsets = [0, 1], sizes = [128, 1], strides = [1, 1]} : vector<128x4xf32> to vector<128x1xf32>
    %13 = vector.extract_strided_slice %1 {offsets = [1, 0], sizes = [1, 512], strides = [1, 1]} : vector<4x512xf32> to vector<1x512xf32>
    %14 = vector.broadcast %12 : vector<128x1xf32> to vector<128x512xf32>
    %15 = vector.broadcast %13 : vector<1x512xf32> to vector<128x512xf32>
    %16 = arith.subf %14, %15 : vector<128x512xf32>
    %17 = vector.extract_strided_slice %2 {offsets = [0, 1], sizes = [1, 1], strides = [1, 1]} : vector<1x4xf32> to vector<1x1xf32>
    %18 = vector.broadcast %17 : vector<1x1xf32> to vector<128x512xf32>
    %19 = arith.addf %16, %18 : vector<128x512xf32>
    %20 = vector.extract_strided_slice %0 {offsets = [0, 2], sizes = [128, 1], strides = [1, 1]} : vector<128x4xf32> to vector<128x1xf32>
    %21 = vector.extract_strided_slice %1 {offsets = [2, 0], sizes = [1, 512], strides = [1, 1]} : vector<4x512xf32> to vector<1x512xf32>
    %22 = vector.broadcast %20 : vector<128x1xf32> to vector<128x512xf32>
    %23 = vector.broadcast %21 : vector<1x512xf32> to vector<128x512xf32>
    %24 = arith.subf %22, %23 : vector<128x512xf32>
    %25 = vector.extract_strided_slice %2 {offsets = [0, 2], sizes = [1, 1], strides = [1, 1]} : vector<1x4xf32> to vector<1x1xf32>
    %26 = vector.broadcast %25 : vector<1x1xf32> to vector<128x512xf32>
    %27 = arith.addf %24, %26 : vector<128x512xf32>
    %28 = vector.extract_strided_slice %0 {offsets = [0, 3], sizes = [128, 1], strides = [1, 1]} : vector<128x4xf32> to vector<128x1xf32>
    %29 = vector.extract_strided_slice %1 {offsets = [3, 0], sizes = [1, 512], strides = [1, 1]} : vector<4x512xf32> to vector<1x512xf32>
    %30 = vector.broadcast %28 : vector<128x1xf32> to vector<128x512xf32>
    %31 = vector.broadcast %29 : vector<1x512xf32> to vector<128x512xf32>
    %32 = arith.subf %30, %31 : vector<128x512xf32>
    %33 = vector.extract_strided_slice %2 {offsets = [0, 3], sizes = [1, 1], strides = [1, 1]} : vector<1x4xf32> to vector<1x1xf32>
    %34 = vector.broadcast %33 : vector<1x1xf32> to vector<128x512xf32>
    %35 = arith.addf %32, %34 : vector<128x512xf32>
    %36 = arith.maximumf %11, %19 : vector<128x512xf32>
    %37 = arith.maximumf %36, %27 : vector<128x512xf32>
    %38 = arith.maximumf %37, %35 : vector<128x512xf32>
    %39 = arith.subf %11, %38 : vector<128x512xf32>
    %40 = math.exp %39 : vector<128x512xf32>
    %41 = arith.subf %19, %38 : vector<128x512xf32>
    %42 = math.exp %41 : vector<128x512xf32>
    %43 = arith.subf %27, %38 : vector<128x512xf32>
    %44 = math.exp %43 : vector<128x512xf32>
    %45 = arith.subf %35, %38 : vector<128x512xf32>
    %46 = math.exp %45 : vector<128x512xf32>
    %47 = arith.addf %40, %42 : vector<128x512xf32>
    %48 = arith.addf %47, %44 : vector<128x512xf32>
    %49 = arith.addf %48, %46 : vector<128x512xf32>
    %c0_7 = arith.constant 0 : index
    %c0_8 = arith.constant 0 : index
    %50 = vector.load %arg4[%c0_7, %c0_8] : memref<128x512xbf16, #tpu.memory_space<vmem>>, vector<128x512xbf16>
    %51 = arith.extf %50 : vector<128x512xbf16> to vector<128x512xf32>
    %52 = tpu.reciprocal %49 {approx = true} : vector<128x512xf32> -> vector<128x512xf32>
    %53 = arith.mulf %51, %52 : vector<128x512xf32>
    %54 = arith.mulf %40, %53 : vector<128x512xf32>
    %55 = arith.truncf %54 : vector<128x512xf32> to vector<128x512xbf16>
    %c0_9 = arith.constant 0 : index
    %c0_10 = arith.constant 0 : index
    %c0_11 = arith.constant 0 : index
    %56 = vector.load %arg6[%c0_9, %c0_10, %c0_11] : memref<4x512x128xbf16, #tpu.memory_space<vmem>>, vector<1x512x128xbf16>
    %57 = vector.shape_cast %56 : vector<1x512x128xbf16> to vector<512x128xbf16>
    %cst = arith.constant dense<0.000000e+00> : vector<128x128xf32>
    %58 = tpu.matmul %55, %57, %cst {dimension_numbers = #tpu.dot_dimension_numbers<[1], [0], [0], [1], [0, 0, 1, 1], [], []>} : vector<128x512xbf16>, vector<512x128xbf16>, vector<128x128xf32> -> vector<128x128xf32>
    %59 = arith.mulf %42, %53 : vector<128x512xf32>
    %60 = arith.truncf %59 : vector<128x512xf32> to vector<128x512xbf16>
    %c1 = arith.constant 1 : index
    %c0_12 = arith.constant 0 : index
    %c0_13 = arith.constant 0 : index
    %61 = vector.load %arg6[%c1, %c0_12, %c0_13] : memref<4x512x128xbf16, #tpu.memory_space<vmem>>, vector<1x512x128xbf16>
    %62 = vector.shape_cast %61 : vector<1x512x128xbf16> to vector<512x128xbf16>
    %cst_14 = arith.constant dense<0.000000e+00> : vector<128x128xf32>
    %63 = tpu.matmul %60, %62, %cst_14 {dimension_numbers = #tpu.dot_dimension_numbers<[1], [0], [0], [1], [0, 0, 1, 1], [], []>} : vector<128x512xbf16>, vector<512x128xbf16>, vector<128x128xf32> -> vector<128x128xf32>
    %64 = arith.addf %58, %63 : vector<128x128xf32>
    %65 = arith.mulf %44, %53 : vector<128x512xf32>
    %66 = arith.truncf %65 : vector<128x512xf32> to vector<128x512xbf16>
    %c2 = arith.constant 2 : index
    %c0_15 = arith.constant 0 : index
    %c0_16 = arith.constant 0 : index
    %67 = vector.load %arg6[%c2, %c0_15, %c0_16] : memref<4x512x128xbf16, #tpu.memory_space<vmem>>, vector<1x512x128xbf16>
    %68 = vector.shape_cast %67 : vector<1x512x128xbf16> to vector<512x128xbf16>
    %cst_17 = arith.constant dense<0.000000e+00> : vector<128x128xf32>
    %69 = tpu.matmul %66, %68, %cst_17 {dimension_numbers = #tpu.dot_dimension_numbers<[1], [0], [0], [1], [0, 0, 1, 1], [], []>} : vector<128x512xbf16>, vector<512x128xbf16>, vector<128x128xf32> -> vector<128x128xf32>
    %70 = arith.addf %64, %69 : vector<128x128xf32>
    %71 = arith.mulf %46, %53 : vector<128x512xf32>
    %72 = arith.truncf %71 : vector<128x512xf32> to vector<128x512xbf16>
    %c3 = arith.constant 3 : index
    %c0_18 = arith.constant 0 : index
    %c0_19 = arith.constant 0 : index
    %73 = vector.load %arg6[%c3, %c0_18, %c0_19] : memref<4x512x128xbf16, #tpu.memory_space<vmem>>, vector<1x512x128xbf16>
    %74 = vector.shape_cast %73 : vector<1x512x128xbf16> to vector<512x128xbf16>
    %cst_20 = arith.constant dense<0.000000e+00> : vector<128x128xf32>
    %75 = tpu.matmul %72, %74, %cst_20 {dimension_numbers = #tpu.dot_dimension_numbers<[1], [0], [0], [1], [0, 0, 1, 1], [], []>} : vector<128x512xbf16>, vector<512x128xbf16>, vector<128x128xf32> -> vector<128x128xf32>
    %76 = arith.addf %70, %75 : vector<128x128xf32>
    %77 = vector.broadcast %3 : vector<128x1xf32> to vector<128x128xf32>
    %78 = arith.mulf %77, %76 : vector<128x128xf32>
    %c0_21 = arith.constant 0 : index
    %c0_22 = arith.constant 0 : index
    %79 = vector.load %arg7[%c0_21, %c0_22] : memref<1x128xf32, #tpu.memory_space<vmem>>, vector<1x128xf32>
    %80 = vector.broadcast %79 : vector<1x128xf32> to vector<128x128xf32>
    %81 = arith.addf %78, %80 : vector<128x128xf32>
    %cst_23 = arith.constant 0.000000e+00 : f32
    %82 = vector.broadcast %cst_23 : f32 to vector<128x128xf32>
    %83 = arith.maximumf %81, %82 : vector<128x128xf32>
    %c0_24 = arith.constant 0 : index
    %c0_25 = arith.constant 0 : index
    %84 = vector.load %arg8[%c0_24, %c0_25] : memref<128x128xf32, #tpu.memory_space<vmem>>, vector<128x128xf32>
    tpu.vector_store %arg8[%c0_24, %c0_25], %83 {strides = array<i32>} : memref<128x128xf32, #tpu.memory_space<vmem>>, vector<128x128xf32>,
    return
  }
  func.func @transform_0(%arg0: i32) -> (i32, i32) {
    %c0_i32 = arith.constant 0 : i32
    %c0_i32_0 = arith.constant 0 : i32
    return %arg0, %c0_i32 : i32, i32
  }
  func.func @transform_1(%arg0: i32) -> (i32, i32) {
    %c0_i32 = arith.constant 0 : i32
    %c0_i32_0 = arith.constant 0 : i32
    %c0_i32_1 = arith.constant 0 : i32
    return %c0_i32, %c0_i32_0 : i32, i32
  }
  func.func @transform_2(%arg0: i32) -> (i32, i32) {
    %c0_i32 = arith.constant 0 : i32
    %c0_i32_0 = arith.constant 0 : i32
    %c0_i32_1 = arith.constant 0 : i32
    return %c0_i32, %c0_i32_0 : i32, i32
  }
  func.func @transform_3(%arg0: i32) -> (i32, i32) {
    %c0_i32 = arith.constant 0 : i32
    %c0_i32_0 = arith.constant 0 : i32
    return %arg0, %c0_i32 : i32, i32
  }
  func.func @transform_4(%arg0: i32) -> (i32, i32) {
    %c0_i32 = arith.constant 0 : i32
    %c0_i32_0 = arith.constant 0 : i32
    return %arg0, %c0_i32 : i32, i32
  }
  func.func @transform_5(%arg0: i32) -> (i32, i32, i32) {
    %c0_i32 = arith.constant 0 : i32
    %c0_i32_0 = arith.constant 0 : i32
    %c0_i32_1 = arith.constant 0 : i32
    %c0_i32_2 = arith.constant 0 : i32
    return %c0_i32, %c0_i32_0, %c0_i32_1 : i32, i32, i32
  }
  func.func @transform_6(%arg0: i32) -> (i32, i32) {
    %c0_i32 = arith.constant 0 : i32
    %c0_i32_0 = arith.constant 0 : i32
    %c0_i32_1 = arith.constant 0 : i32
    return %c0_i32, %c0_i32_0 : i32, i32
  }
  func.func @transform_7(%arg0: i32) -> (i32, i32) {
    %c0_i32 = arith.constant 0 : i32
    %c0_i32_0 = arith.constant 0 : i32
    return %arg0, %c0_i32 : i32, i32
  }
}

</mosaic_0001>

<llo_original>
// kernel: tpu_custom_call.1
$region0: #{tpu_custom_call.1}
  #allocation0 [shape = 'u32[]', space=smem, size = 0x4, offset = 0x4, fixed_abs, tag = 'smem constant byte address 0x4 - core index']
  #allocation1 [shape = 'u32[144,128]{1,0:T(1,128)}', space=vmem, size = 0x12000, scoped, tag = 'internal scratch']
  %s0 = inlined_call_operand.vmem [shape: f32[512,4], index: 0, kind: input, shape index: {}]
  %s1 = inlined_call_operand.vmem [shape: f32[4,512], index: 1, kind: input, shape index: {}]
  %s2 = inlined_call_operand.vmem [shape: f32[1,4], index: 2, kind: input, shape index: {}]
  %s3 = inlined_call_operand.vmem [shape: bf16[512,512], index: 3, kind: input, shape index: {}]
  %s4 = inlined_call_operand.vmem [shape: f32[512,1], index: 4, kind: input, shape index: {}]
  %s5 = inlined_call_operand.hbm [shape: bf16[4,512,128], index: 5, kind: input, shape index: {}]
  %s6 = inlined_call_operand.vmem [shape: f32[1,128], index: 6, kind: input, shape index: {}]
  %s7 = inlined_call_operand.hbm [shape: f32[512,128], index: 7, kind: output, shape index: {}]
  %s8 = sld [smem:[#allocation0]]
  $region65: #{tpu_custom_call.1} parent=0
    _
  %s10 = ssub.s32 1, %s8
  %s11 = scalar_select 0, %s10, %s8
  $region1: #{tpu_custom_call.1} parent=0
    #allocation2 [shape = 'u8[524288]{0}', space=vmem, size = 0x80000, scoped, tag = 'input window, operand 5, single buffered']
    #allocation3 [shape = 's32[2]{0}', space=sflag, size = 0x8, scoped, tag = 'scoped memory for tpu_custom_call.1']
    #allocation4 [shape = 's32[2]{0}', space=sflag, size = 0x8, scoped, tag = 'scoped memory for tpu_custom_call.1']
    #allocation5 [shape = 'u8[131072]{0}', space=vmem, size = 0x20000, scoped, tag = 'output window, operand 0']
    %12 = vsyncpa [#allocation3], 0
    %13 = vsyncpa [#allocation4], 0
    %s14 = scalar_lea.sflag [#allocation4], 1
    %15 = vsyncpa %s14, 0
    loop: start=0, step=1, limit=6
    $region2: #{tpu_custom_call.1} parent=1 // loop_pre_header
      _
    $region3: #{tpu_custom_call.1} parent=1 // loop_header
      %s17 = sphi 0, %s21
      %p18 = scmp.ge.s32.totalorder %s17, 6
      %s27 = sphi 0, %s29
      %s30 = sphi 0, %s27
      %s31 = sphi 0, %s30
      %s47 = sphi 0, %s31
      %s51 = sphi 0, %s51
      %s53 = sphi 0, %s51
      %s54 = sphi 0, %s53
      %s68 = sphi 0, %s54
      %s72 = sphi 0, %s72
      %s74 = sphi 0, %s72
      %s75 = sphi 0, %s74
      %s89 = sphi 0, %s75
      %s95 = sphi 0, %s97
      %s98 = sphi 0, %s95
      %s99 = sphi 0, %s98
      %s115 = sphi 0, %s99
      %s121 = sphi 0, %s123
      %s124 = sphi 0, %s121
      %s125 = sphi 0, %s124
      %s141 = sphi 0, %s125
      %s145 = sphi 0, %s145
      %s147 = sphi 0, %s145
      %s148 = sphi 0, %s147
      %s162 = sphi 0, %s148
      %s166 = sphi 0, %s166
      %s168 = sphi 0, %s166
      %s169 = sphi 0, %s168
      %s183 = sphi 0, %s169
      %s189 = sphi 0, %s191
      %s192 = sphi 0, %s189
      %s193 = sphi 0, %s192
      %s209 = sphi 0, %s193
    $region4: #{tpu_custom_call.1} parent=1 // loop_header_branch
      %20 = sbr.rel (%p18) target = $region8
    $region5: #{tpu_custom_call.1} parent=1 // loop_body
      %s22 = ssub.s32 %s17, 1
      %s23 = ssub.s32 %s17, 2
      %s24 = sadd.s32 %s17, 1
      %s25 = ssub.s32 %s17, %s24
      %p26 = scmp.eq.s32.totalorder %s25, 0
      %s28 = sadd.s32 %s27, 1
      %s29 = scalar_select %p26, %s27, %s28
      %p32 = pneg %p26
      %p33 = scmp.eq.s32.totalorder %s17, 3
      %p34 = por %p32, %p33
      %p35 = scmp.ne.s32.totalorder %s27, %s30
      %p36 = scmp.eq.s32.totalorder %s17, 0
      %p37 = por %p35, %p36
      %p38 = scmp.ne.s32.totalorder %s27, %s30
      %p39 = scmp.eq.s32.totalorder %s22, 3
      %p40 = por %p38, %p39
      %p41 = scmp.ne.s32.totalorder %s30, %s31
      %p42 = scmp.eq.s32.totalorder %s22, 0
      %p43 = por %p41, %p42
      %p44 = scmp.ne.s32.totalorder %s30, %s31
      %p45 = scmp.eq.s32.totalorder %s23, 3
      %p46 = por %p44, %p45
      %p48 = scmp.ne.s32.totalorder %s31, %s47
      %p49 = scmp.eq.s32.totalorder %s23, 0
      %p50 = por %p48, %p49
      %s52 = sadd.s32 %s51, 1
      %p55 = scmp.eq.s32.totalorder %s17, 3
      %p56 = scmp.ne.s32.totalorder %s51, %s53
      %p57 = scmp.eq.s32.totalorder %s17, 0
      %p58 = por %p56, %p57
      %p59 = scmp.ne.s32.totalorder %s51, %s53
      %p60 = scmp.eq.s32.totalorder %s22, 3
      %p61 = por %p59, %p60
      %p62 = scmp.ne.s32.totalorder %s53, %s54
      %p63 = scmp.eq.s32.totalorder %s22, 0
      %p64 = por %p62, %p63
      %p65 = scmp.ne.s32.totalorder %s53, %s54
      %p66 = scmp.eq.s32.totalorder %s23, 3
      %p67 = por %p65, %p66
      %p69 = scmp.ne.s32.totalorder %s54, %s68
      %p70 = scmp.eq.s32.totalorder %s23, 0
      %p71 = por %p69, %p70
      %s73 = sadd.s32 %s72, 1
      %p76 = scmp.eq.s32.totalorder %s17, 3
      %p77 = scmp.ne.s32.totalorder %s72, %s74
      %p78 = scmp.eq.s32.totalorder %s17, 0
      %p79 = por %p77, %p78
      %p80 = scmp.ne.s32.totalorder %s72, %s74
      %p81 = scmp.eq.s32.totalorder %s22, 3
      %p82 = por %p80, %p81
      %p83 = scmp.ne.s32.totalorder %s74, %s75
      %p84 = scmp.eq.s32.totalorder %s22, 0
      %p85 = por %p83, %p84
      %p86 = scmp.ne.s32.totalorder %s74, %s75
      %p87 = scmp.eq.s32.totalorder %s23, 3
      %p88 = por %p86, %p87
      %p90 = scmp.ne.s32.totalorder %s75, %s89
      %p91 = scmp.eq.s32.totalorder %s23, 0
      %p92 = por %p90, %p91
      %s93 = ssub.s32 %s17, %s24
      %p94 = scmp.eq.s32.totalorder %s93, 0
      %s96 = sadd.s32 %s95, 1
      %s97 = scalar_select %p94, %s95, %s96
      %p100 = pneg %p94
      %p101 = scmp.eq.s32.totalorder %s17, 3
      %p102 = por %p100, %p101
      %p103 = scmp.ne.s32.totalorder %s95, %s98
      %p104 = scmp.eq.s32.totalorder %s17, 0
      %p105 = por %p103, %p104
      %p106 = scmp.ne.s32.totalorder %s95, %s98
      %p107 = scmp.eq.s32.totalorder %s22, 3
      %p108 = por %p106, %p107
      %p109 = scmp.ne.s32.totalorder %s98, %s99
      %p110 = scmp.eq.s32.totalorder %s22, 0
      %p111 = por %p109, %p110
      %p112 = scmp.ne.s32.totalorder %s98, %s99
      %p113 = scmp.eq.s32.totalorder %s23, 3
      %p114 = por %p112, %p113
      %p116 = scmp.ne.s32.totalorder %s99, %s115
      %p117 = scmp.eq.s32.totalorder %s23, 0
      %p118 = por %p116, %p117
      %s119 = ssub.s32 %s17, %s24
      %p120 = scmp.eq.s32.totalorder %s119, 0
      %s122 = sadd.s32 %s121, 1
      %s123 = scalar_select %p120, %s121, %s122
      %p126 = pneg %p120
      %p127 = scmp.eq.s32.totalorder %s17, 3
      %p128 = por %p126, %p127
      %p129 = scmp.ne.s32.totalorder %s121, %s124
      %p130 = scmp.eq.s32.totalorder %s17, 0
      %p131 = por %p129, %p130
      %p132 = scmp.ne.s32.totalorder %s121, %s124
      %p133 = scmp.eq.s32.totalorder %s22, 3
      %p134 = por %p132, %p133
      %p135 = scmp.ne.s32.totalorder %s124, %s125
      %p136 = scmp.eq.s32.totalorder %s22, 0
      %p137 = por %p135, %p136
      %p138 = scmp.ne.s32.totalorder %s124, %s125
      %p139 = scmp.eq.s32.totalorder %s23, 3
      %p140 = por %p138, %p139
      %p142 = scmp.ne.s32.totalorder %s125, %s141
      %p143 = scmp.eq.s32.totalorder %s23, 0
      %p144 = por %p142, %p143
      %s146 = sadd.s32 %s145, 1
      %p149 = scmp.eq.s32.totalorder %s17, 3
      %p150 = scmp.ne.s32.totalorder %s145, %s147
      %p151 = scmp.eq.s32.totalorder %s17, 0
      %p152 = por %p150, %p151
      %p153 = scmp.ne.s32.totalorder %s145, %s147
      %p154 = scmp.eq.s32.totalorder %s22, 3
      %p155 = por %p153, %p154
      %p156 = scmp.ne.s32.totalorder %s147, %s148
      %p157 = scmp.eq.s32.totalorder %s22, 0
      %p158 = por %p156, %p157
      %p159 = scmp.ne.s32.totalorder %s147, %s148
      %p160 = scmp.eq.s32.totalorder %s23, 3
      %p161 = por %p159, %p160
      %p163 = scmp.ne.s32.totalorder %s148, %s162
      %p164 = scmp.eq.s32.totalorder %s23, 0
      %p165 = por %p163, %p164
      %s167 = sadd.s32 %s166, 1
      %p170 = scmp.eq.s32.totalorder %s17, 3
      %p171 = scmp.ne.s32.totalorder %s166, %s168
      %p172 = scmp.eq.s32.totalorder %s17, 0
      %p173 = por %p171, %p172
      %p174 = scmp.ne.s32.totalorder %s166, %s168
      %p175 = scmp.eq.s32.totalorder %s22, 3
      %p176 = por %p174, %p175
      %p177 = scmp.ne.s32.totalorder %s168, %s169
      %p178 = scmp.eq.s32.totalorder %s22, 0
      %p179 = por %p177, %p178
      %p180 = scmp.ne.s32.totalorder %s168, %s169
      %p181 = scmp.eq.s32.totalorder %s23, 3
      %p182 = por %p180, %p181
      %p184 = scmp.ne.s32.totalorder %s169, %s183
      %p185 = scmp.eq.s32.totalorder %s23, 0
      %p186 = por %p184, %p185
      %s187 = ssub.s32 %s17, %s24
      %p188 = scmp.eq.s32.totalorder %s187, 0
      %s190 = sadd.s32 %s189, 1
      %s191 = scalar_select %p188, %s189, %s190
      %p194 = pneg %p188
      %p195 = scmp.eq.s32.totalorder %s17, 3
      %p196 = por %p194, %p195
      %p197 = scmp.ne.s32.totalorder %s189, %s192
      %p198 = scmp.eq.s32.totalorder %s17, 0
      %p199 = por %p197, %p198
      %p200 = scmp.ne.s32.totalorder %s189, %s192
      %p201 = scmp.eq.s32.totalorder %s22, 3
      %p202 = por %p200, %p201
      %p203 = scmp.ne.s32.totalorder %s192, %s193
      %p204 = scmp.eq.s32.totalorder %s22, 0
      %p205 = por %p203, %p204
      %p206 = scmp.ne.s32.totalorder %s192, %s193
      %p207 = scmp.eq.s32.totalorder %s23, 3
      %p208 = por %p206, %p207
      %p210 = scmp.ne.s32.totalorder %s193, %s209
      %p211 = scmp.eq.s32.totalorder %s23, 0
      %p212 = por %p210, %p211
      %p213 = scmp.le.s32.totalorder 1, %s17
      %p214 = scmp.lt.s32.totalorder %s17, 5
      %p215 = pnand %p213, %p214
      %p216 = pneg %p215
      // Predicated region
      $region9: #{tpu_custom_call.1} parent=5 // pred_check
        _
      $region10: #{tpu_custom_call.1} parent=5 // pred_check_branch
        %218 = sbr.rel (%p215) target = $region12
      $region11: #{tpu_custom_call.1} parent=5 // pred_region
        %s219 = ssub.s32 %s17, 1
        // Predicated region
        $region13: #{tpu_custom_call.1} parent=11 // pred_check
          %p220 = pneg %p64
        $region14: #{tpu_custom_call.1} parent=11 // pred_check_branch
          %222 = sbr.rel (%p220) target = $region16
        $region15: #{tpu_custom_call.1} parent=11 // pred_region
          _
        $region16: #{tpu_custom_call.1} parent=11 // pred_fallthru
          _
        // Predicated region
        $region17: #{tpu_custom_call.1} parent=11 // pred_check
          %p223 = pneg %p85
        $region18: #{tpu_custom_call.1} parent=11 // pred_check_branch
          %225 = sbr.rel (%p223) target = $region20
        $region19: #{tpu_custom_call.1} parent=11 // pred_region
          _
        $region20: #{tpu_custom_call.1} parent=11 // pred_fallthru
          _
        // Predicated region
        $region21: #{tpu_custom_call.1} parent=11 // pred_check
          %p226 = pneg %p158
        $region22: #{tpu_custom_call.1} parent=11 // pred_check_branch
          %228 = sbr.rel (%p226) target = $region24
        $region23: #{tpu_custom_call.1} parent=11 // pred_region
          %s230 = ssub.s32 16384, 16384
          %231 = vsyncadd [#allocation3], %s230
          %s232 = sshll.u32 [#allocation2], 4
          %s233 = int_to_ptr.vmem [resolvable:$true] %s232
          %238 = dma.hbm_to_vmem [thread:$0]  %s5, 16384, %s233, [#allocation3], 64, 64, 4
        $region24: #{tpu_custom_call.1} parent=11 // pred_fallthru
          _
        // Predicated region
        $region25: #{tpu_custom_call.1} parent=11 // pred_check
          %p239 = pneg %p179
        $region26: #{tpu_custom_call.1} parent=11 // pred_check_branch
          %241 = sbr.rel (%p239) target = $region28
        $region27: #{tpu_custom_call.1} parent=11 // pred_region
          _
        $region28: #{tpu_custom_call.1} parent=11 // pred_fallthru
          _
      $region12: #{tpu_custom_call.1} parent=5 // pred_fallthru
        _
      %p242 = scmp.lt.s32.totalorder %s17, 4
      // Predicated region
      $region29: #{tpu_custom_call.1} parent=5 // pred_check
        %p243 = pneg %p242
      $region30: #{tpu_custom_call.1} parent=5 // pred_check_branch
        %245 = sbr.rel (%p243) target = $region32
      $region31: #{tpu_custom_call.1} parent=5 // pred_region
        // Predicated region
        $region33: #{tpu_custom_call.1} parent=31 // pred_check
          %p246 = pneg %p37
        $region34: #{tpu_custom_call.1} parent=31 // pred_check_branch
          %248 = sbr.rel (%p246) target = $region36
        $region35: #{tpu_custom_call.1} parent=31 // pred_region
          %s249 = smul.u32 16, %s17
          %p250 = scmp.lt.s32.totalorder %s249, 63
          %s251 = scalar_select %p250, %s249, 63
          %s252 = smul.addr %s251, 8
          %s253 = scalar_lea.vmem %s0, %s252
          %s254 = smul.u32 16, %s17
        $region36: #{tpu_custom_call.1} parent=31 // pred_fallthru
          _
        // Predicated region
        $region37: #{tpu_custom_call.1} parent=31 // pred_check
          %p255 = pneg %p105
        $region38: #{tpu_custom_call.1} parent=31 // pred_check_branch
          %257 = sbr.rel (%p255) target = $region40
        $region39: #{tpu_custom_call.1} parent=31 // pred_region
          %s258 = smul.u32 16, %s17
          %p259 = scmp.lt.s32.totalorder %s258, 63
          %s260 = scalar_select %p259, %s258, 63
          %s261 = smul.addr %s260, 4
          %s262 = smul.addr %s261, 4
          %s263 = scalar_lea.vmem %s3, %s262
          %s264 = smul.u32 16, %s17
        $region40: #{tpu_custom_call.1} parent=31 // pred_fallthru
          _
        // Predicated region
        $region41: #{tpu_custom_call.1} parent=31 // pred_check
          %p265 = pneg %p131
        $region42: #{tpu_custom_call.1} parent=31 // pred_check_branch
          %267 = sbr.rel (%p265) target = $region44
        $region43: #{tpu_custom_call.1} parent=31 // pred_region
          %s268 = smul.u32 16, %s17
          %p269 = scmp.lt.s32.totalorder %s268, 63
          %s270 = scalar_select %p269, %s268, 63
          %s271 = smul.addr %s270, 8
          %s272 = scalar_lea.vmem %s4, %s271
          %s273 = smul.u32 16, %s17
        $region44: #{tpu_custom_call.1} parent=31 // pred_fallthru
          _
      $region32: #{tpu_custom_call.1} parent=5 // pred_fallthru
        _
      %p274 = scmp.le.s32.totalorder 1, %s17
      %p275 = scmp.lt.s32.totalorder %s17, 5
      %p276 = pnand %p274, %p275
      %p277 = pneg %p276
      // Predicated region
      $region45: #{tpu_custom_call.1} parent=5 // pred_check
        _
      $region46: #{tpu_custom_call.1} parent=5 // pred_check_branch
        %279 = sbr.rel (%p276) target = $region48
      $region47: #{tpu_custom_call.1} parent=5 // pred_region
        %s280 = ssub.s32 %s17, 1
        // Predicated region
        $region49: #{tpu_custom_call.1} parent=47 // pred_check
          %p281 = pneg %p158
        $region50: #{tpu_custom_call.1} parent=47 // pred_check_branch
          %283 = sbr.rel (%p281) target = $region52
        $region51: #{tpu_custom_call.1} parent=47 // pred_region
          %284 = dma.done [#allocation3], 16384
        $region52: #{tpu_custom_call.1} parent=47 // pred_fallthru
          _
        %s285 = smul.u32 16, %s22
        %p286 = scmp.lt.s32.totalorder %s285, 63
        %s287 = scalar_select %p286, %s285, 63
        %s288 = smul.addr %s287, 8
        %s289 = scalar_lea.vmem %s0, %s288
        %p290 = pneg %p43
        %p291 = pneg %p40
        %p292 = pneg %p64
        %p293 = pneg %p61
        %p294 = pneg %p85
        %p295 = pneg %p82
        %s296 = smul.u32 16, %s22
        %p297 = scmp.lt.s32.totalorder %s296, 63
        %s298 = scalar_select %p297, %s296, 63
        %s299 = smul.addr %s298, 4
        %s300 = smul.addr %s299, 4
        %s301 = scalar_lea.vmem %s3, %s300
        %p302 = pneg %p111
        %p303 = pneg %p108
        %s304 = smul.u32 16, %s22
        %p305 = scmp.lt.s32.totalorder %s304, 63
        %s306 = scalar_select %p305, %s304, 63
        %s307 = smul.addr %s306, 8
        %s308 = scalar_lea.vmem %s4, %s307
        %p309 = pneg %p137
        %p310 = pneg %p134
        %p311 = pneg %p158
        %p312 = pneg %p155
        %p313 = pneg %p179
        %p314 = pneg %p176
        %p315 = pneg %p205
        %p316 = pneg %p202
        %s317 = sand.u32 %s192, 1
        %s318 = scalar_lea.sflag [#allocation4], %s317
        %s319 = sand.u32 %s192, 1
        %s320 = smul.addr %s319, 128
        %s321 = scalar_lea.vmem [#allocation5], %s320
        %s322 = smul.u32 16, %s22
        %p323 = scmp.lt.s32.totalorder %s322, 63
        %s324 = scalar_select %p323, %s322, 63
        %s325 = smul.addr %s324, 8
        %s326 = scalar_lea.vmem %s0, %s325
        %s327 = smul.u32 16, %s22
        %s328 = smul.u32 16, %s22
        %p329 = scmp.lt.s32.totalorder %s328, 63
        %s330 = scalar_select %p329, %s328, 63
        %s331 = smul.addr %s330, 4
        %s332 = smul.addr %s331, 4
        %s333 = scalar_lea.vmem %s3, %s332
        %s334 = smul.u32 16, %s22
        %s335 = smul.u32 16, %s22
        %p336 = scmp.lt.s32.totalorder %s335, 63
        %s337 = scalar_select %p336, %s335, 63
        %s338 = smul.addr %s337, 8
        %s339 = scalar_lea.vmem %s4, %s338
        %s340 = smul.u32 16, %s22
        %s341 = smul.u32 16, %s22
        %v343 = vld [vmem:[%s326] sm:$0xff]
        %v344 = vld [vmem:[%s326 + $0x8] sm:$0xff]
        %v345 = vld [vmem:[%s326 + $0x10] sm:$0xff]
        %v346 = vld [vmem:[%s326 + $0x18] sm:$0xff]
        %v347 = vld [vmem:[%s326 + $0x20] sm:$0xff]
        %v348 = vld [vmem:[%s326 + $0x28] sm:$0xff]
        %v349 = vld [vmem:[%s326 + $0x30] sm:$0xff]
        %v350 = vld [vmem:[%s326 + $0x38] sm:$0xff]
        %v351 = vld [vmem:[%s326 + $0x40] sm:$0xff]
        %v352 = vld [vmem:[%s326 + $0x48] sm:$0xff]
        %v353 = vld [vmem:[%s326 + $0x50] sm:$0xff]
        %v354 = vld [vmem:[%s326 + $0x58] sm:$0xff]
        %v355 = vld [vmem:[%s326 + $0x60] sm:$0xff]
        %v356 = vld [vmem:[%s326 + $0x68] sm:$0xff]
        %v357 = vld [vmem:[%s326 + $0x70] sm:$0xff]
        %v358 = vld [vmem:[%s326 + $0x78] sm:$0xff]
        %v359 = vld [vmem:[%s1] sm:$0xff]
        %v360 = vld [vmem:[%s1 + $0x8] sm:$0xff]
        %v361 = vld [vmem:[%s2] sm:$0x1]
        %v362 = vld [vmem:[%s339] sm:$0xff]
        %v363 = vld [vmem:[%s339 + $0x8] sm:$0xff]
        %v364 = vld [vmem:[%s339 + $0x10] sm:$0xff]
        %v365 = vld [vmem:[%s339 + $0x18] sm:$0xff]
        %v366 = vld [vmem:[%s339 + $0x20] sm:$0xff]
        %v367 = vld [vmem:[%s339 + $0x28] sm:$0xff]
        %v368 = vld [vmem:[%s339 + $0x30] sm:$0xff]
        %v369 = vld [vmem:[%s339 + $0x38] sm:$0xff]
        %v370 = vld [vmem:[%s339 + $0x40] sm:$0xff]
        %v371 = vld [vmem:[%s339 + $0x48] sm:$0xff]
        %v372 = vld [vmem:[%s339 + $0x50] sm:$0xff]
        %v373 = vld [vmem:[%s339 + $0x58] sm:$0xff]
        %v374 = vld [vmem:[%s339 + $0x60] sm:$0xff]
        %v375 = vld [vmem:[%s339 + $0x68] sm:$0xff]
        %v376 = vld [vmem:[%s339 + $0x70] sm:$0xff]
        %v377 = vld [vmem:[%s339 + $0x78] sm:$0xff]
        %379 = vset.pattern.permute.xlu0 0
        %380 = vperm.xlu0 %379, %v343
        %v381 = vpop.permute.xlu0 %380
        %384 = vset.pattern.permute.xlu0 0
        %385 = vperm.xlu0 %384, %v344
        %v386 = vpop.permute.xlu0 %385
        %389 = vset.pattern.permute.xlu0 0
        %390 = vperm.xlu0 %389, %v345
        %v391 = vpop.permute.xlu0 %390
        %394 = vset.pattern.permute.xlu0 0
        %395 = vperm.xlu0 %394, %v346
        %v396 = vpop.permute.xlu0 %395
        %399 = vset.pattern.permute.xlu0 0
        %400 = vperm.xlu0 %399, %v347
        %v401 = vpop.permute.xlu0 %400
        %404 = vset.pattern.permute.xlu0 0
        %405 = vperm.xlu0 %404, %v348
        %v406 = vpop.permute.xlu0 %405
        %409 = vset.pattern.permute.xlu0 0
        %410 = vperm.xlu0 %409, %v349
        %v411 = vpop.permute.xlu0 %410
        %414 = vset.pattern.permute.xlu0 0
        %415 = vperm.xlu0 %414, %v350
        %v416 = vpop.permute.xlu0 %415
        %419 = vset.pattern.permute.xlu0 0
        %420 = vperm.xlu0 %419, %v351
        %v421 = vpop.permute.xlu0 %420
        %424 = vset.pattern.permute.xlu0 0
        %425 = vperm.xlu0 %424, %v352
        %v426 = vpop.permute.xlu0 %425
        %429 = vset.pattern.permute.xlu0 0
        %430 = vperm.xlu0 %429, %v353
        %v431 = vpop.permute.xlu0 %430
        %434 = vset.pattern.permute.xlu0 0
        %435 = vperm.xlu0 %434, %v354
        %v436 = vpop.permute.xlu0 %435
        %439 = vset.pattern.permute.xlu0 0
        %440 = vperm.xlu0 %439, %v355
        %v441 = vpop.permute.xlu0 %440
        %444 = vset.pattern.permute.xlu0 0
        %445 = vperm.xlu0 %444, %v356
        %v446 = vpop.permute.xlu0 %445
        %449 = vset.pattern.permute.xlu0 0
        %450 = vperm.xlu0 %449, %v357
        %v451 = vpop.permute.xlu0 %450
        %454 = vset.pattern.permute.xlu0 0
        %455 = vperm.xlu0 %454, %v358
        %v456 = vpop.permute.xlu0 %455
        %v460 = vlaneseq
        %v461 = vshrl.u32 %v460, 7
        %v462 = vsub.s32 0, %v461
        %v463 = vrot.slane %v359, %v462
        %v464 = vlaneseq
        %v465 = vshrl.u32 %v464, 7
        %v466 = vsub.s32 4, %v465
        %v467 = vrot.slane %v359, %v466
        %v468 = vlaneseq
        %v469 = vshrl.u32 %v468, 7
        %v470 = vsub.s32 0, %v469
        %v471 = vrot.slane %v360, %v470
        %v472 = vlaneseq
        %v473 = vshrl.u32 %v472, 7
        %v474 = vsub.s32 4, %v473
        %v475 = vrot.slane %v360, %v474
        %v480 = vlaneseq
        %v481 = vshrl.u32 %v480, 7
        %v482 = vsub.s32 0, %v481
        %v483 = vrot.slane %v463, %v482
        %v484 = vlaneseq
        %v485 = vshrl.u32 %v484, 7
        %v486 = vsub.s32 0, %v485
        %v487 = vrot.slane %v467, %v486
        %v488 = vlaneseq
        %v489 = vshrl.u32 %v488, 7
        %v490 = vsub.s32 0, %v489
        %v491 = vrot.slane %v471, %v490
        %v492 = vlaneseq
        %v493 = vshrl.u32 %v492, 7
        %v494 = vsub.s32 0, %v493
        %v495 = vrot.slane %v475, %v494
        %v496 = vsub.f32 %v381, %v483
        %v497 = vsub.f32 %v381, %v487
        %v498 = vsub.f32 %v381, %v491
        %v499 = vsub.f32 %v381, %v495
        %v500 = vsub.f32 %v386, %v483
        %v501 = vsub.f32 %v386, %v487
        %v502 = vsub.f32 %v386, %v491
        %v503 = vsub.f32 %v386, %v495
        %v504 = vsub.f32 %v391, %v483
        %v505 = vsub.f32 %v391, %v487
        %v506 = vsub.f32 %v391, %v491
        %v507 = vsub.f32 %v391, %v495
        %v508 = vsub.f32 %v396, %v483
        %v509 = vsub.f32 %v396, %v487
        %v510 = vsub.f32 %v396, %v491
        %v511 = vsub.f32 %v396, %v495
        %v512 = vsub.f32 %v401, %v483
        %v513 = vsub.f32 %v401, %v487
        %v514 = vsub.f32 %v401, %v491
        %v515 = vsub.f32 %v401, %v495
        %v516 = vsub.f32 %v406, %v483
        %v517 = vsub.f32 %v406, %v487
        %v518 = vsub.f32 %v406, %v491
        %v519 = vsub.f32 %v406, %v495
        %v520 = vsub.f32 %v411, %v483
        %v521 = vsub.f32 %v411, %v487
        %v522 = vsub.f32 %v411, %v491
        %v523 = vsub.f32 %v411, %v495
        %v524 = vsub.f32 %v416, %v483
        %v525 = vsub.f32 %v416, %v487
        %v526 = vsub.f32 %v416, %v491
        %v527 = vsub.f32 %v416, %v495
        %v528 = vsub.f32 %v421, %v483
        %v529 = vsub.f32 %v421, %v487
        %v530 = vsub.f32 %v421, %v491
        %v531 = vsub.f32 %v421, %v495
        %v532 = vsub.f32 %v426, %v483
        %v533 = vsub.f32 %v426, %v487
        %v534 = vsub.f32 %v426, %v491
        %v535 = vsub.f32 %v426, %v495
        %v536 = vsub.f32 %v431, %v483
        %v537 = vsub.f32 %v431, %v487
        %v538 = vsub.f32 %v431, %v491
        %v539 = vsub.f32 %v431, %v495
        %v540 = vsub.f32 %v436, %v483
        %v541 = vsub.f32 %v436, %v487
        %v542 = vsub.f32 %v436, %v491
        %v543 = vsub.f32 %v436, %v495
        %v544 = vsub.f32 %v441, %v483
        %v545 = vsub.f32 %v441, %v487
        %v546 = vsub.f32 %v441, %v491
        %v547 = vsub.f32 %v441, %v495
        %v548 = vsub.f32 %v446, %v483
        %v549 = vsub.f32 %v446, %v487
        %v550 = vsub.f32 %v446, %v491
        %v551 = vsub.f32 %v446, %v495
        %v552 = vsub.f32 %v451, %v483
        %v553 = vsub.f32 %v451, %v487
        %v554 = vsub.f32 %v451, %v491
        %v555 = vsub.f32 %v451, %v495
        %v556 = vsub.f32 %v456, %v483
        %v557 = vsub.f32 %v456, %v487
        %v558 = vsub.f32 %v456, %v491
        %v559 = vsub.f32 %v456, %v495
        %v561 = vlaneseq
        %v562 = vshrl.u32 %v561, 7
        %v563 = vsub.s32 0, %v562
        %v564 = vrot.slane %v361, %v563
        %565 = vset.pattern.permute.xlu0 0
        %566 = vperm.xlu0 %565, %v564
        %v567 = vpop.permute.xlu0 %566
        %v569 = vadd.f32 %v496, %v567
        %v570 = vadd.f32 %v497, %v567
        %v571 = vadd.f32 %v498, %v567
        %v572 = vadd.f32 %v499, %v567
        %v573 = vadd.f32 %v500, %v567
        %v574 = vadd.f32 %v501, %v567
        %v575 = vadd.f32 %v502, %v567
        %v576 = vadd.f32 %v503, %v567
        %v577 = vadd.f32 %v504, %v567
        %v578 = vadd.f32 %v505, %v567
        %v579 = vadd.f32 %v506, %v567
        %v580 = vadd.f32 %v507, %v567
        %v581 = vadd.f32 %v508, %v567
        %v582 = vadd.f32 %v509, %v567
        %v583 = vadd.f32 %v510, %v567
        %v584 = vadd.f32 %v511, %v567
        %v585 = vadd.f32 %v512, %v567
        %v586 = vadd.f32 %v513, %v567
        %v587 = vadd.f32 %v514, %v567
        %v588 = vadd.f32 %v515, %v567
        %v589 = vadd.f32 %v516, %v567
        %v590 = vadd.f32 %v517, %v567
        %v591 = vadd.f32 %v518, %v567
        %v592 = vadd.f32 %v519, %v567
        %v593 = vadd.f32 %v520, %v567
        %v594 = vadd.f32 %v521, %v567
        %v595 = vadd.f32 %v522, %v567
        %v596 = vadd.f32 %v523, %v567
        %v597 = vadd.f32 %v524, %v567
        %v598 = vadd.f32 %v525, %v567
        %v599 = vadd.f32 %v526, %v567
        %v600 = vadd.f32 %v527, %v567
        %v601 = vadd.f32 %v528, %v567
        %v602 = vadd.f32 %v529, %v567
        %v603 = vadd.f32 %v530, %v567
        %v604 = vadd.f32 %v531, %v567
        %v605 = vadd.f32 %v532, %v567
        %v606 = vadd.f32 %v533, %v567
        %v607 = vadd.f32 %v534, %v567
        %v608 = vadd.f32 %v535, %v567
        %v609 = vadd.f32 %v536, %v567
        %v610 = vadd.f32 %v537, %v567
        %v611 = vadd.f32 %v538, %v567
        %v612 = vadd.f32 %v539, %v567
        %v613 = vadd.f32 %v540, %v567
        %v614 = vadd.f32 %v541, %v567
        %v615 = vadd.f32 %v542, %v567
        %v616 = vadd.f32 %v543, %v567
        %v617 = vadd.f32 %v544, %v567
        %v618 = vadd.f32 %v545, %v567
        %v619 = vadd.f32 %v546, %v567
        %v620 = vadd.f32 %v547, %v567
        %v621 = vadd.f32 %v548, %v567
        %v622 = vadd.f32 %v549, %v567
        %v623 = vadd.f32 %v550, %v567
        %v624 = vadd.f32 %v551, %v567
        %v625 = vadd.f32 %v552, %v567
        %v626 = vadd.f32 %v553, %v567
        %v627 = vadd.f32 %v554, %v567
        %v628 = vadd.f32 %v555, %v567
        %v629 = vadd.f32 %v556, %v567
        %v630 = vadd.f32 %v557, %v567
        %v631 = vadd.f32 %v558, %v567
        %v632 = vadd.f32 %v559, %v567
        %633 = vset.pattern.permute.xlu0 1
        %634 = vperm.xlu0 %633, %v343
        %v635 = vpop.permute.xlu0 %634
        %637 = vset.pattern.permute.xlu0 1
        %638 = vperm.xlu0 %637, %v344
        %v639 = vpop.permute.xlu0 %638
        %641 = vset.pattern.permute.xlu0 1
        %642 = vperm.xlu0 %641, %v345
        %v643 = vpop.permute.xlu0 %642
        %645 = vset.pattern.permute.xlu0 1
        %646 = vperm.xlu0 %645, %v346
        %v647 = vpop.permute.xlu0 %646
        %649 = vset.pattern.permute.xlu0 1
        %650 = vperm.xlu0 %649, %v347
        %v651 = vpop.permute.xlu0 %650
        %653 = vset.pattern.permute.xlu0 1
        %654 = vperm.xlu0 %653, %v348
        %v655 = vpop.permute.xlu0 %654
        %657 = vset.pattern.permute.xlu0 1
        %658 = vperm.xlu0 %657, %v349
        %v659 = vpop.permute.xlu0 %658
        %661 = vset.pattern.permute.xlu0 1
        %662 = vperm.xlu0 %661, %v350
        %v663 = vpop.permute.xlu0 %662
        %665 = vset.pattern.permute.xlu0 1
        %666 = vperm.xlu0 %665, %v351
        %v667 = vpop.permute.xlu0 %666
        %669 = vset.pattern.permute.xlu0 1
        %670 = vperm.xlu0 %669, %v352
        %v671 = vpop.permute.xlu0 %670
        %673 = vset.pattern.permute.xlu0 1
        %674 = vperm.xlu0 %673, %v353
        %v675 = vpop.permute.xlu0 %674
        %677 = vset.pattern.permute.xlu0 1
        %678 = vperm.xlu0 %677, %v354
        %v679 = vpop.permute.xlu0 %678
        %681 = vset.pattern.permute.xlu0 1
        %682 = vperm.xlu0 %681, %v355
        %v683 = vpop.permute.xlu0 %682
        %685 = vset.pattern.permute.xlu0 1
        %686 = vperm.xlu0 %685, %v356
        %v687 = vpop.permute.xlu0 %686
        %689 = vset.pattern.permute.xlu0 1
        %690 = vperm.xlu0 %689, %v357
        %v691 = vpop.permute.xlu0 %690
        %693 = vset.pattern.permute.xlu0 1
        %694 = vperm.xlu0 %693, %v358
        %v695 = vpop.permute.xlu0 %694
        %v697 = vlaneseq
        %v698 = vshrl.u32 %v697, 7
        %v699 = vsub.s32 1, %v698
        %v700 = vrot.slane %v359, %v699
        %v701 = vlaneseq
        %v702 = vshrl.u32 %v701, 7
        %v703 = vsub.s32 5, %v702
        %v704 = vrot.slane %v359, %v703
        %v705 = vlaneseq
        %v706 = vshrl.u32 %v705, 7
        %v707 = vsub.s32 1, %v706
        %v708 = vrot.slane %v360, %v707
        %v709 = vlaneseq
        %v710 = vshrl.u32 %v709, 7
        %v711 = vsub.s32 5, %v710
        %v712 = vrot.slane %v360, %v711
        %v717 = vlaneseq
        %v718 = vshrl.u32 %v717, 7
        %v719 = vsub.s32 1, %v718
        %v720 = vrot.slane %v700, %v719
        %v721 = vlaneseq
        %v722 = vshrl.u32 %v721, 7
        %v723 = vsub.s32 1, %v722
        %v724 = vrot.slane %v704, %v723
        %v725 = vlaneseq
        %v726 = vshrl.u32 %v725, 7
        %v727 = vsub.s32 1, %v726
        %v728 = vrot.slane %v708, %v727
        %v729 = vlaneseq
        %v730 = vshrl.u32 %v729, 7
        %v731 = vsub.s32 1, %v730
        %v732 = vrot.slane %v712, %v731
        %v733 = vsub.f32 %v635, %v720
        %v734 = vsub.f32 %v635, %v724
        %v735 = vsub.f32 %v635, %v728
        %v736 = vsub.f32 %v635, %v732
        %v737 = vsub.f32 %v639, %v720
        %v738 = vsub.f32 %v639, %v724
        %v739 = vsub.f32 %v639, %v728
        %v740 = vsub.f32 %v639, %v732
        %v741 = vsub.f32 %v643, %v720
        %v742 = vsub.f32 %v643, %v724
        %v743 = vsub.f32 %v643, %v728
        %v744 = vsub.f32 %v643, %v732
        %v745 = vsub.f32 %v647, %v720
        %v746 = vsub.f32 %v647, %v724
        %v747 = vsub.f32 %v647, %v728
        %v748 = vsub.f32 %v647, %v732
        %v749 = vsub.f32 %v651, %v720
        %v750 = vsub.f32 %v651, %v724
        %v751 = vsub.f32 %v651, %v728
        %v752 = vsub.f32 %v651, %v732
        %v753 = vsub.f32 %v655, %v720
        %v754 = vsub.f32 %v655, %v724
        %v755 = vsub.f32 %v655, %v728
        %v756 = vsub.f32 %v655, %v732
        %v757 = vsub.f32 %v659, %v720
        %v758 = vsub.f32 %v659, %v724
        %v759 = vsub.f32 %v659, %v728
        %v760 = vsub.f32 %v659, %v732
        %v761 = vsub.f32 %v663, %v720
        %v762 = vsub.f32 %v663, %v724
        %v763 = vsub.f32 %v663, %v728
        %v764 = vsub.f32 %v663, %v732
        %v765 = vsub.f32 %v667, %v720
        %v766 = vsub.f32 %v667, %v724
        %v767 = vsub.f32 %v667, %v728
        %v768 = vsub.f32 %v667, %v732
        %v769 = vsub.f32 %v671, %v720
        %v770 = vsub.f32 %v671, %v724
        %v771 = vsub.f32 %v671, %v728
        %v772 = vsub.f32 %v671, %v732
        %v773 = vsub.f32 %v675, %v720
        %v774 = vsub.f32 %v675, %v724
        %v775 = vsub.f32 %v675, %v728
        %v776 = vsub.f32 %v675, %v732
        %v777 = vsub.f32 %v679, %v720
        %v778 = vsub.f32 %v679, %v724
        %v779 = vsub.f32 %v679, %v728
        %v780 = vsub.f32 %v679, %v732
        %v781 = vsub.f32 %v683, %v720
        %v782 = vsub.f32 %v683, %v724
        %v783 = vsub.f32 %v683, %v728
        %v784 = vsub.f32 %v683, %v732
        %v785 = vsub.f32 %v687, %v720
        %v786 = vsub.f32 %v687, %v724
        %v787 = vsub.f32 %v687, %v728
        %v788 = vsub.f32 %v687, %v732
        %v789 = vsub.f32 %v691, %v720
        %v790 = vsub.f32 %v691, %v724
        %v791 = vsub.f32 %v691, %v728
        %v792 = vsub.f32 %v691, %v732
        %v793 = vsub.f32 %v695, %v720
        %v794 = vsub.f32 %v695, %v724
        %v795 = vsub.f32 %v695, %v728
        %v796 = vsub.f32 %v695, %v732
        %797 = vset.pattern.permute.xlu0 1
        %798 = vperm.xlu0 %797, %v564
        %v799 = vpop.permute.xlu0 %798
        %v801 = vadd.f32 %v733, %v799
        %v802 = vadd.f32 %v734, %v799
        %v803 = vadd.f32 %v735, %v799
        %v804 = vadd.f32 %v736, %v799
        %v805 = vadd.f32 %v737, %v799
        %v806 = vadd.f32 %v738, %v799
        %v807 = vadd.f32 %v739, %v799
        %v808 = vadd.f32 %v740, %v799
        %v809 = vadd.f32 %v741, %v799
        %v810 = vadd.f32 %v742, %v799
        %v811 = vadd.f32 %v743, %v799
        %v812 = vadd.f32 %v744, %v799
        %v813 = vadd.f32 %v745, %v799
        %v814 = vadd.f32 %v746, %v799
        %v815 = vadd.f32 %v747, %v799
        %v816 = vadd.f32 %v748, %v799
        %v817 = vadd.f32 %v749, %v799
        %v818 = vadd.f32 %v750, %v799
        %v819 = vadd.f32 %v751, %v799
        %v820 = vadd.f32 %v752, %v799
        %v821 = vadd.f32 %v753, %v799
        %v822 = vadd.f32 %v754, %v799
        %v823 = vadd.f32 %v755, %v799
        %v824 = vadd.f32 %v756, %v799
        %v825 = vadd.f32 %v757, %v799
        %v826 = vadd.f32 %v758, %v799
        %v827 = vadd.f32 %v759, %v799
        %v828 = vadd.f32 %v760, %v799
        %v829 = vadd.f32 %v761, %v799
        %v830 = vadd.f32 %v762, %v799
        %v831 = vadd.f32 %v763, %v799
        %v832 = vadd.f32 %v764, %v799
        %v833 = vadd.f32 %v765, %v799
        %v834 = vadd.f32 %v766, %v799
        %v835 = vadd.f32 %v767, %v799
        %v836 = vadd.f32 %v768, %v799
        %v837 = vadd.f32 %v769, %v799
        %v838 = vadd.f32 %v770, %v799
        %v839 = vadd.f32 %v771, %v799
        %v840 = vadd.f32 %v772, %v799
        %v841 = vadd.f32 %v773, %v799
        %v842 = vadd.f32 %v774, %v799
        %v843 = vadd.f32 %v775, %v799
        %v844 = vadd.f32 %v776, %v799
        %v845 = vadd.f32 %v777, %v799
        %v846 = vadd.f32 %v778, %v799
        %v847 = vadd.f32 %v779, %v799
        %v848 = vadd.f32 %v780, %v799
        %v849 = vadd.f32 %v781, %v799
        %v850 = vadd.f32 %v782, %v799
        %v851 = vadd.f32 %v783, %v799
        %v852 = vadd.f32 %v784, %v799
        %v853 = vadd.f32 %v785, %v799
        %v854 = vadd.f32 %v786, %v799
        %v855 = vadd.f32 %v787, %v799
        %v856 = vadd.f32 %v788, %v799
        %v857 = vadd.f32 %v789, %v799
        %v858 = vadd.f32 %v790, %v799
        %v859 = vadd.f32 %v791, %v799
        %v860 = vadd.f32 %v792, %v799
        %v861 = vadd.f32 %v793, %v799
        %v862 = vadd.f32 %v794, %v799
        %v863 = vadd.f32 %v795, %v799
        %v864 = vadd.f32 %v796, %v799
        %865 = vset.pattern.permute.xlu0 2
        %866 = vperm.xlu0 %865, %v343
        %v867 = vpop.permute.xlu0 %866
        %869 = vset.pattern.permute.xlu0 2
        %870 = vperm.xlu0 %869, %v344
        %v871 = vpop.permute.xlu0 %870
        %873 = vset.pattern.permute.xlu0 2
        %874 = vperm.xlu0 %873, %v345
        %v875 = vpop.permute.xlu0 %874
        %877 = vset.pattern.permute.xlu0 2
        %878 = vperm.xlu0 %877, %v346
        %v879 = vpop.permute.xlu0 %878
        %881 = vset.pattern.permute.xlu0 2
        %882 = vperm.xlu0 %881, %v347
        %v883 = vpop.permute.xlu0 %882
        %885 = vset.pattern.permute.xlu0 2
        %886 = vperm.xlu0 %885, %v348
        %v887 = vpop.permute.xlu0 %886
        %889 = vset.pattern.permute.xlu0 2
        %890 = vperm.xlu0 %889, %v349
        %v891 = vpop.permute.xlu0 %890
        %893 = vset.pattern.permute.xlu0 2
        %894 = vperm.xlu0 %893, %v350
        %v895 = vpop.permute.xlu0 %894
        %897 = vset.pattern.permute.xlu0 2
        %898 = vperm.xlu0 %897, %v351
        %v899 = vpop.permute.xlu0 %898
        %901 = vset.pattern.permute.xlu0 2
        %902 = vperm.xlu0 %901, %v352
        %v903 = vpop.permute.xlu0 %902
        %905 = vset.pattern.permute.xlu0 2
        %906 = vperm.xlu0 %905, %v353
        %v907 = vpop.permute.xlu0 %906
        %909 = vset.pattern.permute.xlu0 2
        %910 = vperm.xlu0 %909, %v354
        %v911 = vpop.permute.xlu0 %910
        %913 = vset.pattern.permute.xlu0 2
        %914 = vperm.xlu0 %913, %v355
        %v915 = vpop.permute.xlu0 %914
        %917 = vset.pattern.permute.xlu0 2
        %918 = vperm.xlu0 %917, %v356
        %v919 = vpop.permute.xlu0 %918
        %921 = vset.pattern.permute.xlu0 2
        %922 = vperm.xlu0 %921, %v357
        %v923 = vpop.permute.xlu0 %922
        %925 = vset.pattern.permute.xlu0 2
        %926 = vperm.xlu0 %925, %v358
        %v927 = vpop.permute.xlu0 %926
        %v929 = vlaneseq
        %v930 = vshrl.u32 %v929, 7
        %v931 = vsub.s32 2, %v930
        %v932 = vrot.slane %v359, %v931
        %v933 = vlaneseq
        %v934 = vshrl.u32 %v933, 7
        %v935 = vsub.s32 6, %v934
        %v936 = vrot.slane %v359, %v935
        %v937 = vlaneseq
        %v938 = vshrl.u32 %v937, 7
        %v939 = vsub.s32 2, %v938
        %v940 = vrot.slane %v360, %v939
        %v941 = vlaneseq
        %v942 = vshrl.u32 %v941, 7
        %v943 = vsub.s32 6, %v942
        %v944 = vrot.slane %v360, %v943
        %v949 = vlaneseq
        %v950 = vshrl.u32 %v949, 7
        %v951 = vsub.s32 2, %v950
        %v952 = vrot.slane %v932, %v951
        %v953 = vlaneseq
        %v954 = vshrl.u32 %v953, 7
        %v955 = vsub.s32 2, %v954
        %v956 = vrot.slane %v936, %v955
        %v957 = vlaneseq
        %v958 = vshrl.u32 %v957, 7
        %v959 = vsub.s32 2, %v958
        %v960 = vrot.slane %v940, %v959
        %v961 = vlaneseq
        %v962 = vshrl.u32 %v961, 7
        %v963 = vsub.s32 2, %v962
        %v964 = vrot.slane %v944, %v963
        %v965 = vsub.f32 %v867, %v952
        %v966 = vsub.f32 %v867, %v956
        %v967 = vsub.f32 %v867, %v960
        %v968 = vsub.f32 %v867, %v964
        %v969 = vsub.f32 %v871, %v952
        %v970 = vsub.f32 %v871, %v956
        %v971 = vsub.f32 %v871, %v960
        %v972 = vsub.f32 %v871, %v964
        %v973 = vsub.f32 %v875, %v952
        %v974 = vsub.f32 %v875, %v956
        %v975 = vsub.f32 %v875, %v960
        %v976 = vsub.f32 %v875, %v964
        %v977 = vsub.f32 %v879, %v952
        %v978 = vsub.f32 %v879, %v956
        %v979 = vsub.f32 %v879, %v960
        %v980 = vsub.f32 %v879, %v964
        %v981 = vsub.f32 %v883, %v952
        %v982 = vsub.f32 %v883, %v956
        %v983 = vsub.f32 %v883, %v960
        %v984 = vsub.f32 %v883, %v964
        %v985 = vsub.f32 %v887, %v952
        %v986 = vsub.f32 %v887, %v956
        %v987 = vsub.f32 %v887, %v960
        %v988 = vsub.f32 %v887, %v964
        %v989 = vsub.f32 %v891, %v952
        %v990 = vsub.f32 %v891, %v956
        %v991 = vsub.f32 %v891, %v960
        %v992 = vsub.f32 %v891, %v964
        %v993 = vsub.f32 %v895, %v952
        %v994 = vsub.f32 %v895, %v956
        %v995 = vsub.f32 %v895, %v960
        %v996 = vsub.f32 %v895, %v964
        %v997 = vsub.f32 %v899, %v952
        %v998 = vsub.f32 %v899, %v956
        %v999 = vsub.f32 %v899, %v960
        %v1000 = vsub.f32 %v899, %v964
        %v1001 = vsub.f32 %v903, %v952
        %v1002 = vsub.f32 %v903, %v956
        %v1003 = vsub.f32 %v903, %v960
        %v1004 = vsub.f32 %v903, %v964
        %v1005 = vsub.f32 %v907, %v952
        %v1006 = vsub.f32 %v907, %v956
        %v1007 = vsub.f32 %v907, %v960
        %v1008 = vsub.f32 %v907, %v964
        %v1009 = vsub.f32 %v911, %v952
        %v1010 = vsub.f32 %v911, %v956
        %v1011 = vsub.f32 %v911, %v960
        %v1012 = vsub.f32 %v911, %v964
        %v1013 = vsub.f32 %v915, %v952
        %v1014 = vsub.f32 %v915, %v956
        %v1015 = vsub.f32 %v915, %v960
        %v1016 = vsub.f32 %v915, %v964
        %v1017 = vsub.f32 %v919, %v952
        %v1018 = vsub.f32 %v919, %v956
        %v1019 = vsub.f32 %v919, %v960
        %v1020 = vsub.f32 %v919, %v964
        %v1021 = vsub.f32 %v923, %v952
        %v1022 = vsub.f32 %v923, %v956
        %v1023 = vsub.f32 %v923, %v960
        %v1024 = vsub.f32 %v923, %v964
        %v1025 = vsub.f32 %v927, %v952
        %v1026 = vsub.f32 %v927, %v956
        %v1027 = vsub.f32 %v927, %v960
        %v1028 = vsub.f32 %v927, %v964
        %1029 = vset.pattern.permute.xlu0 2
        %1030 = vperm.xlu0 %1029, %v564
        %v1031 = vpop.permute.xlu0 %1030
        %v1033 = vadd.f32 %v965, %v1031
        %v1034 = vadd.f32 %v966, %v1031
        %v1035 = vadd.f32 %v967, %v1031
        %v1036 = vadd.f32 %v968, %v1031
        %v1037 = vadd.f32 %v969, %v1031
        %v1038 = vadd.f32 %v970, %v1031
        %v1039 = vadd.f32 %v971, %v1031
        %v1040 = vadd.f32 %v972, %v1031
        %v1041 = vadd.f32 %v973, %v1031
        %v1042 = vadd.f32 %v974, %v1031
        %v1043 = vadd.f32 %v975, %v1031
        %v1044 = vadd.f32 %v976, %v1031
        %v1045 = vadd.f32 %v977, %v1031
        %v1046 = vadd.f32 %v978, %v1031
        %v1047 = vadd.f32 %v979, %v1031
        %v1048 = vadd.f32 %v980, %v1031
        %v1049 = vadd.f32 %v981, %v1031
        %v1050 = vadd.f32 %v982, %v1031
        %v1051 = vadd.f32 %v983, %v1031
        %v1052 = vadd.f32 %v984, %v1031
        %v1053 = vadd.f32 %v985, %v1031
        %v1054 = vadd.f32 %v986, %v1031
        %v1055 = vadd.f32 %v987, %v1031
        %v1056 = vadd.f32 %v988, %v1031
        %v1057 = vadd.f32 %v989, %v1031
        %v1058 = vadd.f32 %v990, %v1031
        %v1059 = vadd.f32 %v991, %v1031
        %v1060 = vadd.f32 %v992, %v1031
        %v1061 = vadd.f32 %v993, %v1031
        %v1062 = vadd.f32 %v994, %v1031
        %v1063 = vadd.f32 %v995, %v1031
        %v1064 = vadd.f32 %v996, %v1031
        %v1065 = vadd.f32 %v997, %v1031
        %v1066 = vadd.f32 %v998, %v1031
        %v1067 = vadd.f32 %v999, %v1031
        %v1068 = vadd.f32 %v1000, %v1031
        %v1069 = vadd.f32 %v1001, %v1031
        %v1070 = vadd.f32 %v1002, %v1031
        %v1071 = vadd.f32 %v1003, %v1031
        %v1072 = vadd.f32 %v1004, %v1031
        %v1073 = vadd.f32 %v1005, %v1031
        %v1074 = vadd.f32 %v1006, %v1031
        %v1075 = vadd.f32 %v1007, %v1031
        %v1076 = vadd.f32 %v1008, %v1031
        %v1077 = vadd.f32 %v1009, %v1031
        %v1078 = vadd.f32 %v1010, %v1031
        %v1079 = vadd.f32 %v1011, %v1031
        %v1080 = vadd.f32 %v1012, %v1031
        %v1081 = vadd.f32 %v1013, %v1031
        %v1082 = vadd.f32 %v1014, %v1031
        %v1083 = vadd.f32 %v1015, %v1031
        %v1084 = vadd.f32 %v1016, %v1031
        %v1085 = vadd.f32 %v1017, %v1031
        %v1086 = vadd.f32 %v1018, %v1031
        %v1087 = vadd.f32 %v1019, %v1031
        %v1088 = vadd.f32 %v1020, %v1031
        %v1089 = vadd.f32 %v1021, %v1031
        %v1090 = vadd.f32 %v1022, %v1031
        %v1091 = vadd.f32 %v1023, %v1031
        %v1092 = vadd.f32 %v1024, %v1031
        %v1093 = vadd.f32 %v1025, %v1031
        %v1094 = vadd.f32 %v1026, %v1031
        %v1095 = vadd.f32 %v1027, %v1031
        %v1096 = vadd.f32 %v1028, %v1031
        %1097 = vset.pattern.permute.xlu0 3
        %1098 = vperm.xlu0 %1097, %v343
        %v1099 = vpop.permute.xlu0 %1098
        %1101 = vset.pattern.permute.xlu0 3
        %1102 = vperm.xlu0 %1101, %v344
        %v1103 = vpop.permute.xlu0 %1102
        %1105 = vset.pattern.permute.xlu0 3
        %1106 = vperm.xlu0 %1105, %v345
        %v1107 = vpop.permute.xlu0 %1106
        %1109 = vset.pattern.permute.xlu0 3
        %1110 = vperm.xlu0 %1109, %v346
        %v1111 = vpop.permute.xlu0 %1110
        %1113 = vset.pattern.permute.xlu0 3
        %1114 = vperm.xlu0 %1113, %v347
        %v1115 = vpop.permute.xlu0 %1114
        %1117 = vset.pattern.permute.xlu0 3
        %1118 = vperm.xlu0 %1117, %v348
        %v1119 = vpop.permute.xlu0 %1118
        %1121 = vset.pattern.permute.xlu0 3
        %1122 = vperm.xlu0 %1121, %v349
        %v1123 = vpop.permute.xlu0 %1122
        %1125 = vset.pattern.permute.xlu0 3
        %1126 = vperm.xlu0 %1125, %v350
        %v1127 = vpop.permute.xlu0 %1126
        %1129 = vset.pattern.permute.xlu0 3
        %1130 = vperm.xlu0 %1129, %v351
        %v1131 = vpop.permute.xlu0 %1130
        %1133 = vset.pattern.permute.xlu0 3
        %1134 = vperm.xlu0 %1133, %v352
        %v1135 = vpop.permute.xlu0 %1134
        %1137 = vset.pattern.permute.xlu0 3
        %1138 = vperm.xlu0 %1137, %v353
        %v1139 = vpop.permute.xlu0 %1138
        %1141 = vset.pattern.permute.xlu0 3
        %1142 = vperm.xlu0 %1141, %v354
        %v1143 = vpop.permute.xlu0 %1142
        %1145 = vset.pattern.permute.xlu0 3
        %1146 = vperm.xlu0 %1145, %v355
        %v1147 = vpop.permute.xlu0 %1146
        %1149 = vset.pattern.permute.xlu0 3
        %1150 = vperm.xlu0 %1149, %v356
        %v1151 = vpop.permute.xlu0 %1150
        %1153 = vset.pattern.permute.xlu0 3
        %1154 = vperm.xlu0 %1153, %v357
        %v1155 = vpop.permute.xlu0 %1154
        %1157 = vset.pattern.permute.xlu0 3
        %1158 = vperm.xlu0 %1157, %v358
        %v1159 = vpop.permute.xlu0 %1158
        %v1161 = vlaneseq
        %v1162 = vshrl.u32 %v1161, 7
        %v1163 = vsub.s32 3, %v1162
        %v1164 = vrot.slane %v359, %v1163
        %v1165 = vlaneseq
        %v1166 = vshrl.u32 %v1165, 7
        %v1167 = vsub.s32 7, %v1166
        %v1168 = vrot.slane %v359, %v1167
        %v1169 = vlaneseq
        %v1170 = vshrl.u32 %v1169, 7
        %v1171 = vsub.s32 3, %v1170
        %v1172 = vrot.slane %v360, %v1171
        %v1173 = vlaneseq
        %v1174 = vshrl.u32 %v1173, 7
        %v1175 = vsub.s32 7, %v1174
        %v1176 = vrot.slane %v360, %v1175
        %v1181 = vlaneseq
        %v1182 = vshrl.u32 %v1181, 7
        %v1183 = vsub.s32 3, %v1182
        %v1184 = vrot.slane %v1164, %v1183
        %v1185 = vlaneseq
        %v1186 = vshrl.u32 %v1185, 7
        %v1187 = vsub.s32 3, %v1186
        %v1188 = vrot.slane %v1168, %v1187
        %v1189 = vlaneseq
        %v1190 = vshrl.u32 %v1189, 7
        %v1191 = vsub.s32 3, %v1190
        %v1192 = vrot.slane %v1172, %v1191
        %v1193 = vlaneseq
        %v1194 = vshrl.u32 %v1193, 7
        %v1195 = vsub.s32 3, %v1194
        %v1196 = vrot.slane %v1176, %v1195
        %v1197 = vsub.f32 %v1099, %v1184
        %v1198 = vsub.f32 %v1099, %v1188
        %v1199 = vsub.f32 %v1099, %v1192
        %v1200 = vsub.f32 %v1099, %v1196
        %v1201 = vsub.f32 %v1103, %v1184
        %v1202 = vsub.f32 %v1103, %v1188
        %v1203 = vsub.f32 %v1103, %v1192
        %v1204 = vsub.f32 %v1103, %v1196
        %v1205 = vsub.f32 %v1107, %v1184
        %v1206 = vsub.f32 %v1107, %v1188
        %v1207 = vsub.f32 %v1107, %v1192
        %v1208 = vsub.f32 %v1107, %v1196
        %v1209 = vsub.f32 %v1111, %v1184
        %v1210 = vsub.f32 %v1111, %v1188
        %v1211 = vsub.f32 %v1111, %v1192
        %v1212 = vsub.f32 %v1111, %v1196
        %v1213 = vsub.f32 %v1115, %v1184
        %v1214 = vsub.f32 %v1115, %v1188
        %v1215 = vsub.f32 %v1115, %v1192
        %v1216 = vsub.f32 %v1115, %v1196
        %v1217 = vsub.f32 %v1119, %v1184
        %v1218 = vsub.f32 %v1119, %v1188
        %v1219 = vsub.f32 %v1119, %v1192
        %v1220 = vsub.f32 %v1119, %v1196
        %v1221 = vsub.f32 %v1123, %v1184
        %v1222 = vsub.f32 %v1123, %v1188
        %v1223 = vsub.f32 %v1123, %v1192
        %v1224 = vsub.f32 %v1123, %v1196
        %v1225 = vsub.f32 %v1127, %v1184
        %v1226 = vsub.f32 %v1127, %v1188
        %v1227 = vsub.f32 %v1127, %v1192
        %v1228 = vsub.f32 %v1127, %v1196
        %v1229 = vsub.f32 %v1131, %v1184
        %v1230 = vsub.f32 %v1131, %v1188
        %v1231 = vsub.f32 %v1131, %v1192
        %v1232 = vsub.f32 %v1131, %v1196
        %v1233 = vsub.f32 %v1135, %v1184
        %v1234 = vsub.f32 %v1135, %v1188
        %v1235 = vsub.f32 %v1135, %v1192
        %v1236 = vsub.f32 %v1135, %v1196
        %v1237 = vsub.f32 %v1139, %v1184
        %v1238 = vsub.f32 %v1139, %v1188
        %v1239 = vsub.f32 %v1139, %v1192
        %v1240 = vsub.f32 %v1139, %v1196
        %v1241 = vsub.f32 %v1143, %v1184
        %v1242 = vsub.f32 %v1143, %v1188
        %v1243 = vsub.f32 %v1143, %v1192
        %v1244 = vsub.f32 %v1143, %v1196
        %v1245 = vsub.f32 %v1147, %v1184
        %v1246 = vsub.f32 %v1147, %v1188
        %v1247 = vsub.f32 %v1147, %v1192
        %v1248 = vsub.f32 %v1147, %v1196
        %v1249 = vsub.f32 %v1151, %v1184
        %v1250 = vsub.f32 %v1151, %v1188
        %v1251 = vsub.f32 %v1151, %v1192
        %v1252 = vsub.f32 %v1151, %v1196
        %v1253 = vsub.f32 %v1155, %v1184
        %v1254 = vsub.f32 %v1155, %v1188
        %v1255 = vsub.f32 %v1155, %v1192
        %v1256 = vsub.f32 %v1155, %v1196
        %v1257 = vsub.f32 %v1159, %v1184
        %v1258 = vsub.f32 %v1159, %v1188
        %v1259 = vsub.f32 %v1159, %v1192
        %v1260 = vsub.f32 %v1159, %v1196
        %1261 = vset.pattern.permute.xlu0 3
        %1262 = vperm.xlu0 %1261, %v564
        %v1263 = vpop.permute.xlu0 %1262
        %v1265 = vadd.f32 %v1197, %v1263
        %v1266 = vadd.f32 %v1198, %v1263
        %v1267 = vadd.f32 %v1199, %v1263
        %v1268 = vadd.f32 %v1200, %v1263
        %v1269 = vadd.f32 %v1201, %v1263
        %v1270 = vadd.f32 %v1202, %v1263
        %v1271 = vadd.f32 %v1203, %v1263
        %v1272 = vadd.f32 %v1204, %v1263
        %v1273 = vadd.f32 %v1205, %v1263
        %v1274 = vadd.f32 %v1206, %v1263
        %v1275 = vadd.f32 %v1207, %v1263
        %v1276 = vadd.f32 %v1208, %v1263
        %v1277 = vadd.f32 %v1209, %v1263
        %v1278 = vadd.f32 %v1210, %v1263
        %v1279 = vadd.f32 %v1211, %v1263
        %v1280 = vadd.f32 %v1212, %v1263
        %v1281 = vadd.f32 %v1213, %v1263
        %v1282 = vadd.f32 %v1214, %v1263
        %v1283 = vadd.f32 %v1215, %v1263
        %v1284 = vadd.f32 %v1216, %v1263
        %v1285 = vadd.f32 %v1217, %v1263
        %v1286 = vadd.f32 %v1218, %v1263
        %v1287 = vadd.f32 %v1219, %v1263
        %v1288 = vadd.f32 %v1220, %v1263
        %v1289 = vadd.f32 %v1221, %v1263
        %v1290 = vadd.f32 %v1222, %v1263
        %v1291 = vadd.f32 %v1223, %v1263
        %v1292 = vadd.f32 %v1224, %v1263
        %v1293 = vadd.f32 %v1225, %v1263
        %v1294 = vadd.f32 %v1226, %v1263
        %v1295 = vadd.f32 %v1227, %v1263
        %v1296 = vadd.f32 %v1228, %v1263
        %v1297 = vadd.f32 %v1229, %v1263
        %v1298 = vadd.f32 %v1230, %v1263
        %v1299 = vadd.f32 %v1231, %v1263
        %v1300 = vadd.f32 %v1232, %v1263
        %v1301 = vadd.f32 %v1233, %v1263
        %v1302 = vadd.f32 %v1234, %v1263
        %v1303 = vadd.f32 %v1235, %v1263
        %v1304 = vadd.f32 %v1236, %v1263
        %v1305 = vadd.f32 %v1237, %v1263
        %v1306 = vadd.f32 %v1238, %v1263
        %v1307 = vadd.f32 %v1239, %v1263
        %v1308 = vadd.f32 %v1240, %v1263
        %v1309 = vadd.f32 %v1241, %v1263
        %v1310 = vadd.f32 %v1242, %v1263
        %v1311 = vadd.f32 %v1243, %v1263
        %v1312 = vadd.f32 %v1244, %v1263
        %v1313 = vadd.f32 %v1245, %v1263
        %v1314 = vadd.f32 %v1246, %v1263
        %v1315 = vadd.f32 %v1247, %v1263
        %v1316 = vadd.f32 %v1248, %v1263
        %v1317 = vadd.f32 %v1249, %v1263
        %v1318 = vadd.f32 %v1250, %v1263
        %v1319 = vadd.f32 %v1251, %v1263
        %v1320 = vadd.f32 %v1252, %v1263
        %v1321 = vadd.f32 %v1253, %v1263
        %v1322 = vadd.f32 %v1254, %v1263
        %v1323 = vadd.f32 %v1255, %v1263
        %v1324 = vadd.f32 %v1256, %v1263
        %v1325 = vadd.f32 %v1257, %v1263
        %v1326 = vadd.f32 %v1258, %v1263
        %v1327 = vadd.f32 %v1259, %v1263
        %v1328 = vadd.f32 %v1260, %v1263
        %v1329 = vmax.f32 %v569, %v801
        %v1330 = vmax.f32 %v570, %v802
        %v1331 = vmax.f32 %v571, %v803
        %v1332 = vmax.f32 %v572, %v804
        %v1333 = vmax.f32 %v573, %v805
        %v1334 = vmax.f32 %v574, %v806
        %v1335 = vmax.f32 %v575, %v807
        %v1336 = vmax.f32 %v576, %v808
        %v1337 = vmax.f32 %v577, %v809
        %v1338 = vmax.f32 %v578, %v810
        %v1339 = vmax.f32 %v579, %v811
        %v1340 = vmax.f32 %v580, %v812
        %v1341 = vmax.f32 %v581, %v813
        %v1342 = vmax.f32 %v582, %v814
        %v1343 = vmax.f32 %v583, %v815
        %v1344 = vmax.f32 %v584, %v816
        %v1345 = vmax.f32 %v585, %v817
        %v1346 = vmax.f32 %v586, %v818
        %v1347 = vmax.f32 %v587, %v819
        %v1348 = vmax.f32 %v588, %v820
        %v1349 = vmax.f32 %v589, %v821
        %v1350 = vmax.f32 %v590, %v822
        %v1351 = vmax.f32 %v591, %v823
        %v1352 = vmax.f32 %v592, %v824
        %v1353 = vmax.f32 %v593, %v825
        %v1354 = vmax.f32 %v594, %v826
        %v1355 = vmax.f32 %v595, %v827
        %v1356 = vmax.f32 %v596, %v828
        %v1357 = vmax.f32 %v597, %v829
        %v1358 = vmax.f32 %v598, %v830
        %v1359 = vmax.f32 %v599, %v831
        %v1360 = vmax.f32 %v600, %v832
        %v1361 = vmax.f32 %v601, %v833
        %v1362 = vmax.f32 %v602, %v834
        %v1363 = vmax.f32 %v603, %v835
        %v1364 = vmax.f32 %v604, %v836
        %v1365 = vmax.f32 %v605, %v837
        %v1366 = vmax.f32 %v606, %v838
        %v1367 = vmax.f32 %v607, %v839
        %v1368 = vmax.f32 %v608, %v840
        %v1369 = vmax.f32 %v609, %v841
        %v1370 = vmax.f32 %v610, %v842
        %v1371 = vmax.f32 %v611, %v843
        %v1372 = vmax.f32 %v612, %v844
        %v1373 = vmax.f32 %v613, %v845
        %v1374 = vmax.f32 %v614, %v846
        %v1375 = vmax.f32 %v615, %v847
        %v1376 = vmax.f32 %v616, %v848
        %v1377 = vmax.f32 %v617, %v849
        %v1378 = vmax.f32 %v618, %v850
        %v1379 = vmax.f32 %v619, %v851
        %v1380 = vmax.f32 %v620, %v852
        %v1381 = vmax.f32 %v621, %v853
        %v1382 = vmax.f32 %v622, %v854
        %v1383 = vmax.f32 %v623, %v855
        %v1384 = vmax.f32 %v624, %v856
        %v1385 = vmax.f32 %v625, %v857
        %v1386 = vmax.f32 %v626, %v858
        %v1387 = vmax.f32 %v627, %v859
        %v1388 = vmax.f32 %v628, %v860
        %v1389 = vmax.f32 %v629, %v861
        %v1390 = vmax.f32 %v630, %v862
        %v1391 = vmax.f32 %v631, %v863
        %v1392 = vmax.f32 %v632, %v864
        %v1393 = vmax.f32 %v1329, %v1033
        %v1394 = vmax.f32 %v1330, %v1034
        %v1395 = vmax.f32 %v1331, %v1035
        %v1396 = vmax.f32 %v1332, %v1036
        %v1397 = vmax.f32 %v1333, %v1037
        %v1398 = vmax.f32 %v1334, %v1038
        %v1399 = vmax.f32 %v1335, %v1039
        %v1400 = vmax.f32 %v1336, %v1040
        %v1401 = vmax.f32 %v1337, %v1041
        %v1402 = vmax.f32 %v1338, %v1042
        %v1403 = vmax.f32 %v1339, %v1043
        %v1404 = vmax.f32 %v1340, %v1044
        %v1405 = vmax.f32 %v1341, %v1045
        %v1406 = vmax.f32 %v1342, %v1046
        %v1407 = vmax.f32 %v1343, %v1047
        %v1408 = vmax.f32 %v1344, %v1048
        %v1409 = vmax.f32 %v1345, %v1049
        %v1410 = vmax.f32 %v1346, %v1050
        %v1411 = vmax.f32 %v1347, %v1051
        %v1412 = vmax.f32 %v1348, %v1052
        %v1413 = vmax.f32 %v1349, %v1053
        %v1414 = vmax.f32 %v1350, %v1054
        %v1415 = vmax.f32 %v1351, %v1055
        %v1416 = vmax.f32 %v1352, %v1056
        %v1417 = vmax.f32 %v1353, %v1057
        %v1418 = vmax.f32 %v1354, %v1058
        %v1419 = vmax.f32 %v1355, %v1059
        %v1420 = vmax.f32 %v1356, %v1060
        %v1421 = vmax.f32 %v1357, %v1061
        %v1422 = vmax.f32 %v1358, %v1062
        %v1423 = vmax.f32 %v1359, %v1063
        %v1424 = vmax.f32 %v1360, %v1064
        %v1425 = vmax.f32 %v1361, %v1065
        %v1426 = vmax.f32 %v1362, %v1066
        %v1427 = vmax.f32 %v1363, %v1067
        %v1428 = vmax.f32 %v1364, %v1068
        %v1429 = vmax.f32 %v1365, %v1069
        %v1430 = vmax.f32 %v1366, %v1070
        %v1431 = vmax.f32 %v1367, %v1071
        %v1432 = vmax.f32 %v1368, %v1072
        %v1433 = vmax.f32 %v1369, %v1073
        %v1434 = vmax.f32 %v1370, %v1074
        %v1435 = vmax.f32 %v1371, %v1075
        %v1436 = vmax.f32 %v1372, %v1076
        %v1437 = vmax.f32 %v1373, %v1077
        %v1438 = vmax.f32 %v1374, %v1078
        %v1439 = vmax.f32 %v1375, %v1079
        %v1440 = vmax.f32 %v1376, %v1080
        %v1441 = vmax.f32 %v1377, %v1081
        %v1442 = vmax.f32 %v1378, %v1082
        %v1443 = vmax.f32 %v1379, %v1083
        %v1444 = vmax.f32 %v1380, %v1084
        %v1445 = vmax.f32 %v1381, %v1085
        %v1446 = vmax.f32 %v1382, %v1086
        %v1447 = vmax.f32 %v1383, %v1087
        %v1448 = vmax.f32 %v1384, %v1088
        %v1449 = vmax.f32 %v1385, %v1089
        %v1450 = vmax.f32 %v1386, %v1090
        %v1451 = vmax.f32 %v1387, %v1091
        %v1452 = vmax.f32 %v1388, %v1092
        %v1453 = vmax.f32 %v1389, %v1093
        %v1454 = vmax.f32 %v1390, %v1094
        %v1455 = vmax.f32 %v1391, %v1095
        %v1456 = vmax.f32 %v1392, %v1096
        %v1457 = vmax.f32 %v1393, %v1265
        %v1458 = vmax.f32 %v1394, %v1266
        %v1459 = vmax.f32 %v1395, %v1267
        %v1460 = vmax.f32 %v1396, %v1268
        %v1461 = vmax.f32 %v1397, %v1269
        %v1462 = vmax.f32 %v1398, %v1270
        %v1463 = vmax.f32 %v1399, %v1271
        %v1464 = vmax.f32 %v1400, %v1272
        %v1465 = vmax.f32 %v1401, %v1273
        %v1466 = vmax.f32 %v1402, %v1274
        %v1467 = vmax.f32 %v1403, %v1275
        %v1468 = vmax.f32 %v1404, %v1276
        %v1469 = vmax.f32 %v1405, %v1277
        %v1470 = vmax.f32 %v1406, %v1278
        %v1471 = vmax.f32 %v1407, %v1279
        %v1472 = vmax.f32 %v1408, %v1280
        %v1473 = vmax.f32 %v1409, %v1281
        %v1474 = vmax.f32 %v1410, %v1282
        %v1475 = vmax.f32 %v1411, %v1283
        %v1476 = vmax.f32 %v1412, %v1284
        %v1477 = vmax.f32 %v1413, %v1285
        %v1478 = vmax.f32 %v1414, %v1286
        %v1479 = vmax.f32 %v1415, %v1287
        %v1480 = vmax.f32 %v1416, %v1288
        %v1481 = vmax.f32 %v1417, %v1289
        %v1482 = vmax.f32 %v1418, %v1290
        %v1483 = vmax.f32 %v1419, %v1291
        %v1484 = vmax.f32 %v1420, %v1292
        %v1485 = vmax.f32 %v1421, %v1293
        %v1486 = vmax.f32 %v1422, %v1294
        %v1487 = vmax.f32 %v1423, %v1295
        %v1488 = vmax.f32 %v1424, %v1296
        %v1489 = vmax.f32 %v1425, %v1297
        %v1490 = vmax.f32 %v1426, %v1298
        %v1491 = vmax.f32 %v1427, %v1299
        %v1492 = vmax.f32 %v1428, %v1300
        %v1493 = vmax.f32 %v1429, %v1301
        %v1494 = vmax.f32 %v1430, %v1302
        %v1495 = vmax.f32 %v1431, %v1303
        %v1496 = vmax.f32 %v1432, %v1304
        %v1497 = vmax.f32 %v1433, %v1305
        %v1498 = vmax.f32 %v1434, %v1306
        %v1499 = vmax.f32 %v1435, %v1307
        %v1500 = vmax.f32 %v1436, %v1308
        %v1501 = vmax.f32 %v1437, %v1309
        %v1502 = vmax.f32 %v1438, %v1310
        %v1503 = vmax.f32 %v1439, %v1311
        %v1504 = vmax.f32 %v1440, %v1312
        %v1505 = vmax.f32 %v1441, %v1313
        %v1506 = vmax.f32 %v1442, %v1314
        %v1507 = vmax.f32 %v1443, %v1315
        %v1508 = vmax.f32 %v1444, %v1316
        %v1509 = vmax.f32 %v1445, %v1317
        %v1510 = vmax.f32 %v1446, %v1318
        %v1511 = vmax.f32 %v1447, %v1319
        %v1512 = vmax.f32 %v1448, %v1320
        %v1513 = vmax.f32 %v1449, %v1321
        %v1514 = vmax.f32 %v1450, %v1322
        %v1515 = vmax.f32 %v1451, %v1323
        %v1516 = vmax.f32 %v1452, %v1324
        %v1517 = vmax.f32 %v1453, %v1325
        %v1518 = vmax.f32 %v1454, %v1326
        %v1519 = vmax.f32 %v1455, %v1327
        %v1520 = vmax.f32 %v1456, %v1328
        %v1521 = vsub.f32 %v569, %v1457
        %v1522 = vsub.f32 %v570, %v1458
        %v1523 = vsub.f32 %v571, %v1459
        %v1524 = vsub.f32 %v572, %v1460
        %v1525 = vsub.f32 %v573, %v1461
        %v1526 = vsub.f32 %v574, %v1462
        %v1527 = vsub.f32 %v575, %v1463
        %v1528 = vsub.f32 %v576, %v1464
        %v1529 = vsub.f32 %v577, %v1465
        %v1530 = vsub.f32 %v578, %v1466
        %v1531 = vsub.f32 %v579, %v1467
        %v1532 = vsub.f32 %v580, %v1468
        %v1533 = vsub.f32 %v581, %v1469
        %v1534 = vsub.f32 %v582, %v1470
        %v1535 = vsub.f32 %v583, %v1471
        %v1536 = vsub.f32 %v584, %v1472
        %v1537 = vsub.f32 %v585, %v1473
        %v1538 = vsub.f32 %v586, %v1474
        %v1539 = vsub.f32 %v587, %v1475
        %v1540 = vsub.f32 %v588, %v1476
        %v1541 = vsub.f32 %v589, %v1477
        %v1542 = vsub.f32 %v590, %v1478
        %v1543 = vsub.f32 %v591, %v1479
        %v1544 = vsub.f32 %v592, %v1480
        %v1545 = vsub.f32 %v593, %v1481
        %v1546 = vsub.f32 %v594, %v1482
        %v1547 = vsub.f32 %v595, %v1483
        %v1548 = vsub.f32 %v596, %v1484
        %v1549 = vsub.f32 %v597, %v1485
        %v1550 = vsub.f32 %v598, %v1486
        %v1551 = vsub.f32 %v599, %v1487
        %v1552 = vsub.f32 %v600, %v1488
        %v1553 = vsub.f32 %v601, %v1489
        %v1554 = vsub.f32 %v602, %v1490
        %v1555 = vsub.f32 %v603, %v1491
        %v1556 = vsub.f32 %v604, %v1492
        %v1557 = vsub.f32 %v605, %v1493
        %v1558 = vsub.f32 %v606, %v1494
        %v1559 = vsub.f32 %v607, %v1495
        %v1560 = vsub.f32 %v608, %v1496
        %v1561 = vsub.f32 %v609, %v1497
        %v1562 = vsub.f32 %v610, %v1498
        %v1563 = vsub.f32 %v611, %v1499
        %v1564 = vsub.f32 %v612, %v1500
        %v1565 = vsub.f32 %v613, %v1501
        %v1566 = vsub.f32 %v614, %v1502
        %v1567 = vsub.f32 %v615, %v1503
        %v1568 = vsub.f32 %v616, %v1504
        %v1569 = vsub.f32 %v617, %v1505
        %v1570 = vsub.f32 %v618, %v1506
        %v1571 = vsub.f32 %v619, %v1507
        %v1572 = vsub.f32 %v620, %v1508
        %v1573 = vsub.f32 %v621, %v1509
        %v1574 = vsub.f32 %v622, %v1510
        %v1575 = vsub.f32 %v623, %v1511
        %v1576 = vsub.f32 %v624, %v1512
        %v1577 = vsub.f32 %v625, %v1513
        %v1578 = vsub.f32 %v626, %v1514
        %v1579 = vsub.f32 %v627, %v1515
        %v1580 = vsub.f32 %v628, %v1516
        %v1581 = vsub.f32 %v629, %v1517
        %v1582 = vsub.f32 %v630, %v1518
        %v1583 = vsub.f32 %v631, %v1519
        %v1584 = vsub.f32 %v632, %v1520
        %v1585 = vmul.f32 %v1521, 1.442695
        %v1586 = vpow.pop %v1585
        %v1587 = vmul.f32 %v1522, 1.442695
        %v1588 = vpow.pop %v1587
        %v1589 = vmul.f32 %v1523, 1.442695
        %v1590 = vpow.pop %v1589
        %v1591 = vmul.f32 %v1524, 1.442695
        %v1592 = vpow.pop %v1591
        %v1593 = vmul.f32 %v1525, 1.442695
        %v1594 = vpow.pop %v1593
        %v1595 = vmul.f32 %v1526, 1.442695
        %v1596 = vpow.pop %v1595
        %v1597 = vmul.f32 %v1527, 1.442695
        %v1598 = vpow.pop %v1597
        %v1599 = vmul.f32 %v1528, 1.442695
        %v1600 = vpow.pop %v1599
        %v1601 = vmul.f32 %v1529, 1.442695
        %v1602 = vpow.pop %v1601
        %v1603 = vmul.f32 %v1530, 1.442695
        %v1604 = vpow.pop %v1603
        %v1605 = vmul.f32 %v1531, 1.442695
        %v1606 = vpow.pop %v1605
        %v1607 = vmul.f32 %v1532, 1.442695
        %v1608 = vpow.pop %v1607
        %v1609 = vmul.f32 %v1533, 1.442695
        %v1610 = vpow.pop %v1609
        %v1611 = vmul.f32 %v1534, 1.442695
        %v1612 = vpow.pop %v1611
        %v1613 = vmul.f32 %v1535, 1.442695
        %v1614 = vpow.pop %v1613
        %v1615 = vmul.f32 %v1536, 1.442695
        %v1616 = vpow.pop %v1615
        %v1617 = vmul.f32 %v1537, 1.442695
        %v1618 = vpow.pop %v1617
        %v1619 = vmul.f32 %v1538, 1.442695
        %v1620 = vpow.pop %v1619
        %v1621 = vmul.f32 %v1539, 1.442695
        %v1622 = vpow.pop %v1621
        %v1623 = vmul.f32 %v1540, 1.442695
        %v1624 = vpow.pop %v1623
        %v1625 = vmul.f32 %v1541, 1.442695
        %v1626 = vpow.pop %v1625
        %v1627 = vmul.f32 %v1542, 1.442695
        %v1628 = vpow.pop %v1627
        %v1629 = vmul.f32 %v1543, 1.442695
        %v1630 = vpow.pop %v1629
        %v1631 = vmul.f32 %v1544, 1.442695
        %v1632 = vpow.pop %v1631
        %v1633 = vmul.f32 %v1545, 1.442695
        %v1634 = vpow.pop %v1633
        %v1635 = vmul.f32 %v1546, 1.442695
        %v1636 = vpow.pop %v1635
        %v1637 = vmul.f32 %v1547, 1.442695
        %v1638 = vpow.pop %v1637
        %v1639 = vmul.f32 %v1548, 1.442695
        %v1640 = vpow.pop %v1639
        %v1641 = vmul.f32 %v1549, 1.442695
        %v1642 = vpow.pop %v1641
        %v1643 = vmul.f32 %v1550, 1.442695
        %v1644 = vpow.pop %v1643
        %v1645 = vmul.f32 %v1551, 1.442695
        %v1646 = vpow.pop %v1645
        %v1647 = vmul.f32 %v1552, 1.442695
        %v1648 = vpow.pop %v1647
        %v1649 = vmul.f32 %v1553, 1.442695
        %v1650 = vpow.pop %v1649
        %v1651 = vmul.f32 %v1554, 1.442695
        %v1652 = vpow.pop %v1651
        %v1653 = vmul.f32 %v1555, 1.442695
        %v1654 = vpow.pop %v1653
        %v1655 = vmul.f32 %v1556, 1.442695
        %v1656 = vpow.pop %v1655
        %v1657 = vmul.f32 %v1557, 1.442695
        %v1658 = vpow.pop %v1657
        %v1659 = vmul.f32 %v1558, 1.442695
        %v1660 = vpow.pop %v1659
        %v1661 = vmul.f32 %v1559, 1.442695
        %v1662 = vpow.pop %v1661
        %v1663 = vmul.f32 %v1560, 1.442695
        %v1664 = vpow.pop %v1663
        %v1665 = vmul.f32 %v1561, 1.442695
        %v1666 = vpow.pop %v1665
        %v1667 = vmul.f32 %v1562, 1.442695
        %v1668 = vpow.pop %v1667
        %v1669 = vmul.f32 %v1563, 1.442695
        %v1670 = vpow.pop %v1669
        %v1671 = vmul.f32 %v1564, 1.442695
        %v1672 = vpow.pop %v1671
        %v1673 = vmul.f32 %v1565, 1.442695
        %v1674 = vpow.pop %v1673
        %v1675 = vmul.f32 %v1566, 1.442695
        %v1676 = vpow.pop %v1675
        %v1677 = vmul.f32 %v1567, 1.442695
        %v1678 = vpow.pop %v1677
        %v1679 = vmul.f32 %v1568, 1.442695
        %v1680 = vpow.pop %v1679
        %v1681 = vmul.f32 %v1569, 1.442695
        %v1682 = vpow.pop %v1681
        %v1683 = vmul.f32 %v1570, 1.442695
        %v1684 = vpow.pop %v1683
        %v1685 = vmul.f32 %v1571, 1.442695
        %v1686 = vpow.pop %v1685
        %v1687 = vmul.f32 %v1572, 1.442695
        %v1688 = vpow.pop %v1687
        %v1689 = vmul.f32 %v1573, 1.442695
        %v1690 = vpow.pop %v1689
        %v1691 = vmul.f32 %v1574, 1.442695
        %v1692 = vpow.pop %v1691
        %v1693 = vmul.f32 %v1575, 1.442695
        %v1694 = vpow.pop %v1693
        %v1695 = vmul.f32 %v1576, 1.442695
        %v1696 = vpow.pop %v1695
        %v1697 = vmul.f32 %v1577, 1.442695
        %v1698 = vpow.pop %v1697
        %v1699 = vmul.f32 %v1578, 1.442695
        %v1700 = vpow.pop %v1699
        %v1701 = vmul.f32 %v1579, 1.442695
        %v1702 = vpow.pop %v1701
        %v1703 = vmul.f32 %v1580, 1.442695
        %v1704 = vpow.pop %v1703
        %v1705 = vmul.f32 %v1581, 1.442695
        %v1706 = vpow.pop %v1705
        %v1707 = vmul.f32 %v1582, 1.442695
        %v1708 = vpow.pop %v1707
        %v1709 = vmul.f32 %v1583, 1.442695
        %v1710 = vpow.pop %v1709
        %v1711 = vmul.f32 %v1584, 1.442695
        %v1712 = vpow.pop %v1711
        %v1713 = vsub.f32 %v801, %v1457
        %v1714 = vsub.f32 %v802, %v1458
        %v1715 = vsub.f32 %v803, %v1459
        %v1716 = vsub.f32 %v804, %v1460
        %v1717 = vsub.f32 %v805, %v1461
        %v1718 = vsub.f32 %v806, %v1462
        %v1719 = vsub.f32 %v807, %v1463
        %v1720 = vsub.f32 %v808, %v1464
        %v1721 = vsub.f32 %v809, %v1465
        %v1722 = vsub.f32 %v810, %v1466
        %v1723 = vsub.f32 %v811, %v1467
        %v1724 = vsub.f32 %v812, %v1468
        %v1725 = vsub.f32 %v813, %v1469
        %v1726 = vsub.f32 %v814, %v1470
        %v1727 = vsub.f32 %v815, %v1471
        %v1728 = vsub.f32 %v816, %v1472
        %v1729 = vsub.f32 %v817, %v1473
        %v1730 = vsub.f32 %v818, %v1474
        %v1731 = vsub.f32 %v819, %v1475
        %v1732 = vsub.f32 %v820, %v1476
        %v1733 = vsub.f32 %v821, %v1477
        %v1734 = vsub.f32 %v822, %v1478
        %v1735 = vsub.f32 %v823, %v1479
        %v1736 = vsub.f32 %v824, %v1480
        %v1737 = vsub.f32 %v825, %v1481
        %v1738 = vsub.f32 %v826, %v1482
        %v1739 = vsub.f32 %v827, %v1483
        %v1740 = vsub.f32 %v828, %v1484
        %v1741 = vsub.f32 %v829, %v1485
        %v1742 = vsub.f32 %v830, %v1486
        %v1743 = vsub.f32 %v831, %v1487
        %v1744 = vsub.f32 %v832, %v1488
        %v1745 = vsub.f32 %v833, %v1489
        %v1746 = vsub.f32 %v834, %v1490
        %v1747 = vsub.f32 %v835, %v1491
        %v1748 = vsub.f32 %v836, %v1492
        %v1749 = vsub.f32 %v837, %v1493
        %v1750 = vsub.f32 %v838, %v1494
        %v1751 = vsub.f32 %v839, %v1495
        %v1752 = vsub.f32 %v840, %v1496
        %v1753 = vsub.f32 %v841, %v1497
        %v1754 = vsub.f32 %v842, %v1498
        %v1755 = vsub.f32 %v843, %v1499
        %v1756 = vsub.f32 %v844, %v1500
        %v1757 = vsub.f32 %v845, %v1501
        %v1758 = vsub.f32 %v846, %v1502
        %v1759 = vsub.f32 %v847, %v1503
        %v1760 = vsub.f32 %v848, %v1504
        %v1761 = vsub.f32 %v849, %v1505
        %v1762 = vsub.f32 %v850, %v1506
        %v1763 = vsub.f32 %v851, %v1507
        %v1764 = vsub.f32 %v852, %v1508
        %v1765 = vsub.f32 %v853, %v1509
        %v1766 = vsub.f32 %v854, %v1510
        %v1767 = vsub.f32 %v855, %v1511
        %v1768 = vsub.f32 %v856, %v1512
        %v1769 = vsub.f32 %v857, %v1513
        %v1770 = vsub.f32 %v858, %v1514
        %v1771 = vsub.f32 %v859, %v1515
        %v1772 = vsub.f32 %v860, %v1516
        %v1773 = vsub.f32 %v861, %v1517
        %v1774 = vsub.f32 %v862, %v1518
        %v1775 = vsub.f32 %v863, %v1519
        %v1776 = vsub.f32 %v864, %v1520
        %v1777 = vmul.f32 %v1713, 1.442695
        %v1778 = vpow.pop %v1777
        %v1779 = vmul.f32 %v1714, 1.442695
        %v1780 = vpow.pop %v1779
        %v1781 = vmul.f32 %v1715, 1.442695
        %v1782 = vpow.pop %v1781
        %v1783 = vmul.f32 %v1716, 1.442695
        %v1784 = vpow.pop %v1783
        %v1785 = vmul.f32 %v1717, 1.442695
        %v1786 = vpow.pop %v1785
        %v1787 = vmul.f32 %v1718, 1.442695
        %v1788 = vpow.pop %v1787
        %v1789 = vmul.f32 %v1719, 1.442695
        %v1790 = vpow.pop %v1789
        %v1791 = vmul.f32 %v1720, 1.442695
        %v1792 = vpow.pop %v1791
        %v1793 = vmul.f32 %v1721, 1.442695
        %v1794 = vpow.pop %v1793
        %v1795 = vmul.f32 %v1722, 1.442695
        %v1796 = vpow.pop %v1795
        %v1797 = vmul.f32 %v1723, 1.442695
        %v1798 = vpow.pop %v1797
        %v1799 = vmul.f32 %v1724, 1.442695
        %v1800 = vpow.pop %v1799
        %v1801 = vmul.f32 %v1725, 1.442695
        %v1802 = vpow.pop %v1801
        %v1803 = vmul.f32 %v1726, 1.442695
        %v1804 = vpow.pop %v1803
        %v1805 = vmul.f32 %v1727, 1.442695
        %v1806 = vpow.pop %v1805
        %v1807 = vmul.f32 %v1728, 1.442695
        %v1808 = vpow.pop %v1807
        %v1809 = vmul.f32 %v1729, 1.442695
        %v1810 = vpow.pop %v1809
        %v1811 = vmul.f32 %v1730, 1.442695
        %v1812 = vpow.pop %v1811
        %v1813 = vmul.f32 %v1731, 1.442695
        %v1814 = vpow.pop %v1813
        %v1815 = vmul.f32 %v1732, 1.442695
        %v1816 = vpow.pop %v1815
        %v1817 = vmul.f32 %v1733, 1.442695
        %v1818 = vpow.pop %v1817
        %v1819 = vmul.f32 %v1734, 1.442695
        %v1820 = vpow.pop %v1819
        %v1821 = vmul.f32 %v1735, 1.442695
        %v1822 = vpow.pop %v1821
        %v1823 = vmul.f32 %v1736, 1.442695
        %v1824 = vpow.pop %v1823
        %v1825 = vmul.f32 %v1737, 1.442695
        %v1826 = vpow.pop %v1825
        %v1827 = vmul.f32 %v1738, 1.442695
        %v1828 = vpow.pop %v1827
        %v1829 = vmul.f32 %v1739, 1.442695
        %v1830 = vpow.pop %v1829
        %v1831 = vmul.f32 %v1740, 1.442695
        %v1832 = vpow.pop %v1831
        %v1833 = vmul.f32 %v1741, 1.442695
        %v1834 = vpow.pop %v1833
        %v1835 = vmul.f32 %v1742, 1.442695
        %v1836 = vpow.pop %v1835
        %v1837 = vmul.f32 %v1743, 1.442695
        %v1838 = vpow.pop %v1837
        %v1839 = vmul.f32 %v1744, 1.442695
        %v1840 = vpow.pop %v1839
        %v1841 = vmul.f32 %v1745, 1.442695
        %v1842 = vpow.pop %v1841
        %v1843 = vmul.f32 %v1746, 1.442695
        %v1844 = vpow.pop %v1843
        %v1845 = vmul.f32 %v1747, 1.442695
        %v1846 = vpow.pop %v1845
        %v1847 = vmul.f32 %v1748, 1.442695
        %v1848 = vpow.pop %v1847
        %v1849 = vmul.f32 %v1749, 1.442695
        %v1850 = vpow.pop %v1849
        %v1851 = vmul.f32 %v1750, 1.442695
        %v1852 = vpow.pop %v1851
        %v1853 = vmul.f32 %v1751, 1.442695
        %v1854 = vpow.pop %v1853
        %v1855 = vmul.f32 %v1752, 1.442695
        %v1856 = vpow.pop %v1855
        %v1857 = vmul.f32 %v1753, 1.442695
        %v1858 = vpow.pop %v1857
        %v1859 = vmul.f32 %v1754, 1.442695
        %v1860 = vpow.pop %v1859
        %v1861 = vmul.f32 %v1755, 1.442695
        %v1862 = vpow.pop %v1861
        %v1863 = vmul.f32 %v1756, 1.442695
        %v1864 = vpow.pop %v1863
        %v1865 = vmul.f32 %v1757, 1.442695
        %v1866 = vpow.pop %v1865
        %v1867 = vmul.f32 %v1758, 1.442695
        %v1868 = vpow.pop %v1867
        %v1869 = vmul.f32 %v1759, 1.442695
        %v1870 = vpow.pop %v1869
        %v1871 = vmul.f32 %v1760, 1.442695
        %v1872 = vpow.pop %v1871
        %v1873 = vmul.f32 %v1761, 1.442695
        %v1874 = vpow.pop %v1873
        %v1875 = vmul.f32 %v1762, 1.442695
        %v1876 = vpow.pop %v1875
        %v1877 = vmul.f32 %v1763, 1.442695
        %v1878 = vpow.pop %v1877
        %v1879 = vmul.f32 %v1764, 1.442695
        %v1880 = vpow.pop %v1879
        %v1881 = vmul.f32 %v1765, 1.442695
        %v1882 = vpow.pop %v1881
        %v1883 = vmul.f32 %v1766, 1.442695
        %v1884 = vpow.pop %v1883
        %v1885 = vmul.f32 %v1767, 1.442695
        %v1886 = vpow.pop %v1885
        %v1887 = vmul.f32 %v1768, 1.442695
        %v1888 = vpow.pop %v1887
        %v1889 = vmul.f32 %v1769, 1.442695
        %v1890 = vpow.pop %v1889
        %v1891 = vmul.f32 %v1770, 1.442695
        %v1892 = vpow.pop %v1891
        %v1893 = vmul.f32 %v1771, 1.442695
        %v1894 = vpow.pop %v1893
        %v1895 = vmul.f32 %v1772, 1.442695
        %v1896 = vpow.pop %v1895
        %v1897 = vmul.f32 %v1773, 1.442695
        %v1898 = vpow.pop %v1897
        %v1899 = vmul.f32 %v1774, 1.442695
        %v1900 = vpow.pop %v1899
        %v1901 = vmul.f32 %v1775, 1.442695
        %v1902 = vpow.pop %v1901
        %v1903 = vmul.f32 %v1776, 1.442695
        %v1904 = vpow.pop %v1903
        %v1905 = vsub.f32 %v1033, %v1457
        %v1906 = vsub.f32 %v1034, %v1458
        %v1907 = vsub.f32 %v1035, %v1459
        %v1908 = vsub.f32 %v1036, %v1460
        %v1909 = vsub.f32 %v1037, %v1461
        %v1910 = vsub.f32 %v1038, %v1462
        %v1911 = vsub.f32 %v1039, %v1463
        %v1912 = vsub.f32 %v1040, %v1464
        %v1913 = vsub.f32 %v1041, %v1465
        %v1914 = vsub.f32 %v1042, %v1466
        %v1915 = vsub.f32 %v1043, %v1467
        %v1916 = vsub.f32 %v1044, %v1468
        %v1917 = vsub.f32 %v1045, %v1469
        %v1918 = vsub.f32 %v1046, %v1470
        %v1919 = vsub.f32 %v1047, %v1471
        %v1920 = vsub.f32 %v1048, %v1472
        %v1921 = vsub.f32 %v1049, %v1473
        %v1922 = vsub.f32 %v1050, %v1474
        %v1923 = vsub.f32 %v1051, %v1475
        %v1924 = vsub.f32 %v1052, %v1476
        %v1925 = vsub.f32 %v1053, %v1477
        %v1926 = vsub.f32 %v1054, %v1478
        %v1927 = vsub.f32 %v1055, %v1479
        %v1928 = vsub.f32 %v1056, %v1480
        %v1929 = vsub.f32 %v1057, %v1481
        %v1930 = vsub.f32 %v1058, %v1482
        %v1931 = vsub.f32 %v1059, %v1483
        %v1932 = vsub.f32 %v1060, %v1484
        %v1933 = vsub.f32 %v1061, %v1485
        %v1934 = vsub.f32 %v1062, %v1486
        %v1935 = vsub.f32 %v1063, %v1487
        %v1936 = vsub.f32 %v1064, %v1488
        %v1937 = vsub.f32 %v1065, %v1489
        %v1938 = vsub.f32 %v1066, %v1490
        %v1939 = vsub.f32 %v1067, %v1491
        %v1940 = vsub.f32 %v1068, %v1492
        %v1941 = vsub.f32 %v1069, %v1493
        %v1942 = vsub.f32 %v1070, %v1494
        %v1943 = vsub.f32 %v1071, %v1495
        %v1944 = vsub.f32 %v1072, %v1496
        %v1945 = vsub.f32 %v1073, %v1497
        %v1946 = vsub.f32 %v1074, %v1498
        %v1947 = vsub.f32 %v1075, %v1499
        %v1948 = vsub.f32 %v1076, %v1500
        %v1949 = vsub.f32 %v1077, %v1501
        %v1950 = vsub.f32 %v1078, %v1502
        %v1951 = vsub.f32 %v1079, %v1503
        %v1952 = vsub.f32 %v1080, %v1504
        %v1953 = vsub.f32 %v1081, %v1505
        %v1954 = vsub.f32 %v1082, %v1506
        %v1955 = vsub.f32 %v1083, %v1507
        %v1956 = vsub.f32 %v1084, %v1508
        %v1957 = vsub.f32 %v1085, %v1509
        %v1958 = vsub.f32 %v1086, %v1510
        %v1959 = vsub.f32 %v1087, %v1511
        %v1960 = vsub.f32 %v1088, %v1512
        %v1961 = vsub.f32 %v1089, %v1513
        %v1962 = vsub.f32 %v1090, %v1514
        %v1963 = vsub.f32 %v1091, %v1515
        %v1964 = vsub.f32 %v1092, %v1516
        %v1965 = vsub.f32 %v1093, %v1517
        %v1966 = vsub.f32 %v1094, %v1518
        %v1967 = vsub.f32 %v1095, %v1519
        %v1968 = vsub.f32 %v1096, %v1520
        %v1969 = vmul.f32 %v1905, 1.442695
        %v1970 = vpow.pop %v1969
        %v1971 = vmul.f32 %v1906, 1.442695
        %v1972 = vpow.pop %v1971
        %v1973 = vmul.f32 %v1907, 1.442695
        %v1974 = vpow.pop %v1973
        %v1975 = vmul.f32 %v1908, 1.442695
        %v1976 = vpow.pop %v1975
        %v1977 = vmul.f32 %v1909, 1.442695
        %v1978 = vpow.pop %v1977
        %v1979 = vmul.f32 %v1910, 1.442695
        %v1980 = vpow.pop %v1979
        %v1981 = vmul.f32 %v1911, 1.442695
        %v1982 = vpow.pop %v1981
        %v1983 = vmul.f32 %v1912, 1.442695
        %v1984 = vpow.pop %v1983
        %v1985 = vmul.f32 %v1913, 1.442695
        %v1986 = vpow.pop %v1985
        %v1987 = vmul.f32 %v1914, 1.442695
        %v1988 = vpow.pop %v1987
        %v1989 = vmul.f32 %v1915, 1.442695
        %v1990 = vpow.pop %v1989
        %v1991 = vmul.f32 %v1916, 1.442695
        %v1992 = vpow.pop %v1991
        %v1993 = vmul.f32 %v1917, 1.442695
        %v1994 = vpow.pop %v1993
        %v1995 = vmul.f32 %v1918, 1.442695
        %v1996 = vpow.pop %v1995
        %v1997 = vmul.f32 %v1919, 1.442695
        %v1998 = vpow.pop %v1997
        %v1999 = vmul.f32 %v1920, 1.442695
        %v2000 = vpow.pop %v1999
        %v2001 = vmul.f32 %v1921, 1.442695
        %v2002 = vpow.pop %v2001
        %v2003 = vmul.f32 %v1922, 1.442695
        %v2004 = vpow.pop %v2003
        %v2005 = vmul.f32 %v1923, 1.442695
        %v2006 = vpow.pop %v2005
        %v2007 = vmul.f32 %v1924, 1.442695
        %v2008 = vpow.pop %v2007
        %v2009 = vmul.f32 %v1925, 1.442695
        %v2010 = vpow.pop %v2009
        %v2011 = vmul.f32 %v1926, 1.442695
        %v2012 = vpow.pop %v2011
        %v2013 = vmul.f32 %v1927, 1.442695
        %v2014 = vpow.pop %v2013
        %v2015 = vmul.f32 %v1928, 1.442695
        %v2016 = vpow.pop %v2015
        %v2017 = vmul.f32 %v1929, 1.442695
        %v2018 = vpow.pop %v2017
        %v2019 = vmul.f32 %v1930, 1.442695
        %v2020 = vpow.pop %v2019
        %v2021 = vmul.f32 %v1931, 1.442695
        %v2022 = vpow.pop %v2021
        %v2023 = vmul.f32 %v1932, 1.442695
        %v2024 = vpow.pop %v2023
        %v2025 = vmul.f32 %v1933, 1.442695
        %v2026 = vpow.pop %v2025
        %v2027 = vmul.f32 %v1934, 1.442695
        %v2028 = vpow.pop %v2027
        %v2029 = vmul.f32 %v1935, 1.442695
        %v2030 = vpow.pop %v2029
        %v2031 = vmul.f32 %v1936, 1.442695
        %v2032 = vpow.pop %v2031
        %v2033 = vmul.f32 %v1937, 1.442695
        %v2034 = vpow.pop %v2033
        %v2035 = vmul.f32 %v1938, 1.442695
        %v2036 = vpow.pop %v2035
        %v2037 = vmul.f32 %v1939, 1.442695
        %v2038 = vpow.pop %v2037
        %v2039 = vmul.f32 %v1940, 1.442695
        %v2040 = vpow.pop %v2039
        %v2041 = vmul.f32 %v1941, 1.442695
        %v2042 = vpow.pop %v2041
        %v2043 = vmul.f32 %v1942, 1.442695
        %v2044 = vpow.pop %v2043
        %v2045 = vmul.f32 %v1943, 1.442695
        %v2046 = vpow.pop %v2045
        %v2047 = vmul.f32 %v1944, 1.442695
        %v2048 = vpow.pop %v2047
        %v2049 = vmul.f32 %v1945, 1.442695
        %v2050 = vpow.pop %v2049
        %v2051 = vmul.f32 %v1946, 1.442695
        %v2052 = vpow.pop %v2051
        %v2053 = vmul.f32 %v1947, 1.442695
        %v2054 = vpow.pop %v2053
        %v2055 = vmul.f32 %v1948, 1.442695
        %v2056 = vpow.pop %v2055
        %v2057 = vmul.f32 %v1949, 1.442695
        %v2058 = vpow.pop %v2057
        %v2059 = vmul.f32 %v1950, 1.442695
        %v2060 = vpow.pop %v2059
        %v2061 = vmul.f32 %v1951, 1.442695
        %v2062 = vpow.pop %v2061
        %v2063 = vmul.f32 %v1952, 1.442695
        %v2064 = vpow.pop %v2063
        %v2065 = vmul.f32 %v1953, 1.442695
        %v2066 = vpow.pop %v2065
        %v2067 = vmul.f32 %v1954, 1.442695
        %v2068 = vpow.pop %v2067
        %v2069 = vmul.f32 %v1955, 1.442695
        %v2070 = vpow.pop %v2069
        %v2071 = vmul.f32 %v1956, 1.442695
        %v2072 = vpow.pop %v2071
        %v2073 = vmul.f32 %v1957, 1.442695
        %v2074 = vpow.pop %v2073
        %v2075 = vmul.f32 %v1958, 1.442695
        %v2076 = vpow.pop %v2075
        %v2077 = vmul.f32 %v1959, 1.442695
        %v2078 = vpow.pop %v2077
        %v2079 = vmul.f32 %v1960, 1.442695
        %v2080 = vpow.pop %v2079
        %v2081 = vmul.f32 %v1961, 1.442695
        %v2082 = vpow.pop %v2081
        %v2083 = vmul.f32 %v1962, 1.442695
        %v2084 = vpow.pop %v2083
        %v2085 = vmul.f32 %v1963, 1.442695
        %v2086 = vpow.pop %v2085
        %v2087 = vmul.f32 %v1964, 1.442695
        %v2088 = vpow.pop %v2087
        %v2089 = vmul.f32 %v1965, 1.442695
        %v2090 = vpow.pop %v2089
        %v2091 = vmul.f32 %v1966, 1.442695
        %v2092 = vpow.pop %v2091
        %v2093 = vmul.f32 %v1967, 1.442695
        %v2094 = vpow.pop %v2093
        %v2095 = vmul.f32 %v1968, 1.442695
        %v2096 = vpow.pop %v2095
        %v2097 = vsub.f32 %v1265, %v1457
        %v2098 = vsub.f32 %v1266, %v1458
        %v2099 = vsub.f32 %v1267, %v1459
        %v2100 = vsub.f32 %v1268, %v1460
        %v2101 = vsub.f32 %v1269, %v1461
        %v2102 = vsub.f32 %v1270, %v1462
        %v2103 = vsub.f32 %v1271, %v1463
        %v2104 = vsub.f32 %v1272, %v1464
        %v2105 = vsub.f32 %v1273, %v1465
        %v2106 = vsub.f32 %v1274, %v1466
        %v2107 = vsub.f32 %v1275, %v1467
        %v2108 = vsub.f32 %v1276, %v1468
        %v2109 = vsub.f32 %v1277, %v1469
        %v2110 = vsub.f32 %v1278, %v1470
        %v2111 = vsub.f32 %v1279, %v1471
        %v2112 = vsub.f32 %v1280, %v1472
        %v2113 = vsub.f32 %v1281, %v1473
        %v2114 = vsub.f32 %v1282, %v1474
        %v2115 = vsub.f32 %v1283, %v1475
        %v2116 = vsub.f32 %v1284, %v1476
        %v2117 = vsub.f32 %v1285, %v1477
        %v2118 = vsub.f32 %v1286, %v1478
        %v2119 = vsub.f32 %v1287, %v1479
        %v2120 = vsub.f32 %v1288, %v1480
        %v2121 = vsub.f32 %v1289, %v1481
        %v2122 = vsub.f32 %v1290, %v1482
        %v2123 = vsub.f32 %v1291, %v1483
        %v2124 = vsub.f32 %v1292, %v1484
        %v2125 = vsub.f32 %v1293, %v1485
        %v2126 = vsub.f32 %v1294, %v1486
        %v2127 = vsub.f32 %v1295, %v1487
        %v2128 = vsub.f32 %v1296, %v1488
        %v2129 = vsub.f32 %v1297, %v1489
        %v2130 = vsub.f32 %v1298, %v1490
        %v2131 = vsub.f32 %v1299, %v1491
        %v2132 = vsub.f32 %v1300, %v1492
        %v2133 = vsub.f32 %v1301, %v1493
        %v2134 = vsub.f32 %v1302, %v1494
        %v2135 = vsub.f32 %v1303, %v1495
        %v2136 = vsub.f32 %v1304, %v1496
        %v2137 = vsub.f32 %v1305, %v1497
        %v2138 = vsub.f32 %v1306, %v1498
        %v2139 = vsub.f32 %v1307, %v1499
        %v2140 = vsub.f32 %v1308, %v1500
        %v2141 = vsub.f32 %v1309, %v1501
        %v2142 = vsub.f32 %v1310, %v1502
        %v2143 = vsub.f32 %v1311, %v1503
        %v2144 = vsub.f32 %v1312, %v1504
        %v2145 = vsub.f32 %v1313, %v1505
        %v2146 = vsub.f32 %v1314, %v1506
        %v2147 = vsub.f32 %v1315, %v1507
        %v2148 = vsub.f32 %v1316, %v1508
        %v2149 = vsub.f32 %v1317, %v1509
        %v2150 = vsub.f32 %v1318, %v1510
        %v2151 = vsub.f32 %v1319, %v1511
        %v2152 = vsub.f32 %v1320, %v1512
        %v2153 = vsub.f32 %v1321, %v1513
        %v2154 = vsub.f32 %v1322, %v1514
        %v2155 = vsub.f32 %v1323, %v1515
        %v2156 = vsub.f32 %v1324, %v1516
        %v2157 = vsub.f32 %v1325, %v1517
        %v2158 = vsub.f32 %v1326, %v1518
        %v2159 = vsub.f32 %v1327, %v1519
        %v2160 = vsub.f32 %v1328, %v1520
        %v2161 = vmul.f32 %v2097, 1.442695
        %v2162 = vpow.pop %v2161
        %v2163 = vmul.f32 %v2098, 1.442695
        %v2164 = vpow.pop %v2163
        %v2165 = vmul.f32 %v2099, 1.442695
        %v2166 = vpow.pop %v2165
        %v2167 = vmul.f32 %v2100, 1.442695
        %v2168 = vpow.pop %v2167
        %v2169 = vmul.f32 %v2101, 1.442695
        %v2170 = vpow.pop %v2169
        %v2171 = vmul.f32 %v2102, 1.442695
        %v2172 = vpow.pop %v2171
        %v2173 = vmul.f32 %v2103, 1.442695
        %v2174 = vpow.pop %v2173
        %v2175 = vmul.f32 %v2104, 1.442695
        %v2176 = vpow.pop %v2175
        %v2177 = vmul.f32 %v2105, 1.442695
        %v2178 = vpow.pop %v2177
        %v2179 = vmul.f32 %v2106, 1.442695
        %v2180 = vpow.pop %v2179
        %v2181 = vmul.f32 %v2107, 1.442695
        %v2182 = vpow.pop %v2181
        %v2183 = vmul.f32 %v2108, 1.442695
        %v2184 = vpow.pop %v2183
        %v2185 = vmul.f32 %v2109, 1.442695
        %v2186 = vpow.pop %v2185
        %v2187 = vmul.f32 %v2110, 1.442695
        %v2188 = vpow.pop %v2187
        %v2189 = vmul.f32 %v2111, 1.442695
        %v2190 = vpow.pop %v2189
        %v2191 = vmul.f32 %v2112, 1.442695
        %v2192 = vpow.pop %v2191
        %v2193 = vmul.f32 %v2113, 1.442695
        %v2194 = vpow.pop %v2193
        %v2195 = vmul.f32 %v2114, 1.442695
        %v2196 = vpow.pop %v2195
        %v2197 = vmul.f32 %v2115, 1.442695
        %v2198 = vpow.pop %v2197
        %v2199 = vmul.f32 %v2116, 1.442695
        %v2200 = vpow.pop %v2199
        %v2201 = vmul.f32 %v2117, 1.442695
        %v2202 = vpow.pop %v2201
        %v2203 = vmul.f32 %v2118, 1.442695
        %v2204 = vpow.pop %v2203
        %v2205 = vmul.f32 %v2119, 1.442695
        %v2206 = vpow.pop %v2205
        %v2207 = vmul.f32 %v2120, 1.442695
        %v2208 = vpow.pop %v2207
        %v2209 = vmul.f32 %v2121, 1.442695
        %v2210 = vpow.pop %v2209
        %v2211 = vmul.f32 %v2122, 1.442695
        %v2212 = vpow.pop %v2211
        %v2213 = vmul.f32 %v2123, 1.442695
        %v2214 = vpow.pop %v2213
        %v2215 = vmul.f32 %v2124, 1.442695
        %v2216 = vpow.pop %v2215
        %v2217 = vmul.f32 %v2125, 1.442695
        %v2218 = vpow.pop %v2217
        %v2219 = vmul.f32 %v2126, 1.442695
        %v2220 = vpow.pop %v2219
        %v2221 = vmul.f32 %v2127, 1.442695
        %v2222 = vpow.pop %v2221
        %v2223 = vmul.f32 %v2128, 1.442695
        %v2224 = vpow.pop %v2223
        %v2225 = vmul.f32 %v2129, 1.442695
        %v2226 = vpow.pop %v2225
        %v2227 = vmul.f32 %v2130, 1.442695
        %v2228 = vpow.pop %v2227
        %v2229 = vmul.f32 %v2131, 1.442695
        %v2230 = vpow.pop %v2229
        %v2231 = vmul.f32 %v2132, 1.442695
        %v2232 = vpow.pop %v2231
        %v2233 = vmul.f32 %v2133, 1.442695
        %v2234 = vpow.pop %v2233
        %v2235 = vmul.f32 %v2134, 1.442695
        %v2236 = vpow.pop %v2235
        %v2237 = vmul.f32 %v2135, 1.442695
        %v2238 = vpow.pop %v2237
        %v2239 = vmul.f32 %v2136, 1.442695
        %v2240 = vpow.pop %v2239
        %v2241 = vmul.f32 %v2137, 1.442695
        %v2242 = vpow.pop %v2241
        %v2243 = vmul.f32 %v2138, 1.442695
        %v2244 = vpow.pop %v2243
        %v2245 = vmul.f32 %v2139, 1.442695
        %v2246 = vpow.pop %v2245
        %v2247 = vmul.f32 %v2140, 1.442695
        %v2248 = vpow.pop %v2247
        %v2249 = vmul.f32 %v2141, 1.442695
        %v2250 = vpow.pop %v2249
        %v2251 = vmul.f32 %v2142, 1.442695
        %v2252 = vpow.pop %v2251
        %v2253 = vmul.f32 %v2143, 1.442695
        %v2254 = vpow.pop %v2253
        %v2255 = vmul.f32 %v2144, 1.442695
        %v2256 = vpow.pop %v2255
        %v2257 = vmul.f32 %v2145, 1.442695
        %v2258 = vpow.pop %v2257
        %v2259 = vmul.f32 %v2146, 1.442695
        %v2260 = vpow.pop %v2259
        %v2261 = vmul.f32 %v2147, 1.442695
        %v2262 = vpow.pop %v2261
        %v2263 = vmul.f32 %v2148, 1.442695
        %v2264 = vpow.pop %v2263
        %v2265 = vmul.f32 %v2149, 1.442695
        %v2266 = vpow.pop %v2265
        %v2267 = vmul.f32 %v2150, 1.442695
        %v2268 = vpow.pop %v2267
        %v2269 = vmul.f32 %v2151, 1.442695
        %v2270 = vpow.pop %v2269
        %v2271 = vmul.f32 %v2152, 1.442695
        %v2272 = vpow.pop %v2271
        %v2273 = vmul.f32 %v2153, 1.442695
        %v2274 = vpow.pop %v2273
        %v2275 = vmul.f32 %v2154, 1.442695
        %v2276 = vpow.pop %v2275
        %v2277 = vmul.f32 %v2155, 1.442695
        %v2278 = vpow.pop %v2277
        %v2279 = vmul.f32 %v2156, 1.442695
        %v2280 = vpow.pop %v2279
        %v2281 = vmul.f32 %v2157, 1.442695
        %v2282 = vpow.pop %v2281
        %v2283 = vmul.f32 %v2158, 1.442695
        %v2284 = vpow.pop %v2283
        %v2285 = vmul.f32 %v2159, 1.442695
        %v2286 = vpow.pop %v2285
        %v2287 = vmul.f32 %v2160, 1.442695
        %v2288 = vpow.pop %v2287
        %v2289 = vadd.f32 %v1586, %v1778
        %v2290 = vadd.f32 %v1588, %v1780
        %v2291 = vadd.f32 %v1590, %v1782
        %v2292 = vadd.f32 %v1592, %v1784
        %v2293 = vadd.f32 %v1594, %v1786
        %v2294 = vadd.f32 %v1596, %v1788
        %v2295 = vadd.f32 %v1598, %v1790
        %v2296 = vadd.f32 %v1600, %v1792
        %v2297 = vadd.f32 %v1602, %v1794
        %v2298 = vadd.f32 %v1604, %v1796
        %v2299 = vadd.f32 %v1606, %v1798
        %v2300 = vadd.f32 %v1608, %v1800
        %v2301 = vadd.f32 %v1610, %v1802
        %v2302 = vadd.f32 %v1612, %v1804
        %v2303 = vadd.f32 %v1614, %v1806
        %v2304 = vadd.f32 %v1616, %v1808
        %v2305 = vadd.f32 %v1618, %v1810
        %v2306 = vadd.f32 %v1620, %v1812
        %v2307 = vadd.f32 %v1622, %v1814
        %v2308 = vadd.f32 %v1624, %v1816
        %v2309 = vadd.f32 %v1626, %v1818
        %v2310 = vadd.f32 %v1628, %v1820
        %v2311 = vadd.f32 %v1630, %v1822
        %v2312 = vadd.f32 %v1632, %v1824
        %v2313 = vadd.f32 %v1634, %v1826
        %v2314 = vadd.f32 %v1636, %v1828
        %v2315 = vadd.f32 %v1638, %v1830
        %v2316 = vadd.f32 %v1640, %v1832
        %v2317 = vadd.f32 %v1642, %v1834
        %v2318 = vadd.f32 %v1644, %v1836
        %v2319 = vadd.f32 %v1646, %v1838
        %v2320 = vadd.f32 %v1648, %v1840
        %v2321 = vadd.f32 %v1650, %v1842
        %v2322 = vadd.f32 %v1652, %v1844
        %v2323 = vadd.f32 %v1654, %v1846
        %v2324 = vadd.f32 %v1656, %v1848
        %v2325 = vadd.f32 %v1658, %v1850
        %v2326 = vadd.f32 %v1660, %v1852
        %v2327 = vadd.f32 %v1662, %v1854
        %v2328 = vadd.f32 %v1664, %v1856
        %v2329 = vadd.f32 %v1666, %v1858
        %v2330 = vadd.f32 %v1668, %v1860
        %v2331 = vadd.f32 %v1670, %v1862
        %v2332 = vadd.f32 %v1672, %v1864
        %v2333 = vadd.f32 %v1674, %v1866
        %v2334 = vadd.f32 %v1676, %v1868
        %v2335 = vadd.f32 %v1678, %v1870
        %v2336 = vadd.f32 %v1680, %v1872
        %v2337 = vadd.f32 %v1682, %v1874
        %v2338 = vadd.f32 %v1684, %v1876
        %v2339 = vadd.f32 %v1686, %v1878
        %v2340 = vadd.f32 %v1688, %v1880
        %v2341 = vadd.f32 %v1690, %v1882
        %v2342 = vadd.f32 %v1692, %v1884
        %v2343 = vadd.f32 %v1694, %v1886
        %v2344 = vadd.f32 %v1696, %v1888
        %v2345 = vadd.f32 %v1698, %v1890
        %v2346 = vadd.f32 %v1700, %v1892
        %v2347 = vadd.f32 %v1702, %v1894
        %v2348 = vadd.f32 %v1704, %v1896
        %v2349 = vadd.f32 %v1706, %v1898
        %v2350 = vadd.f32 %v1708, %v1900
        %v2351 = vadd.f32 %v1710, %v1902
        %v2352 = vadd.f32 %v1712, %v1904
        %v2353 = vadd.f32 %v2289, %v1970
        %v2354 = vadd.f32 %v2290, %v1972
        %v2355 = vadd.f32 %v2291, %v1974
        %v2356 = vadd.f32 %v2292, %v1976
        %v2357 = vadd.f32 %v2293, %v1978
        %v2358 = vadd.f32 %v2294, %v1980
        %v2359 = vadd.f32 %v2295, %v1982
        %v2360 = vadd.f32 %v2296, %v1984
        %v2361 = vadd.f32 %v2297, %v1986
        %v2362 = vadd.f32 %v2298, %v1988
        %v2363 = vadd.f32 %v2299, %v1990
        %v2364 = vadd.f32 %v2300, %v1992
        %v2365 = vadd.f32 %v2301, %v1994
        %v2366 = vadd.f32 %v2302, %v1996
        %v2367 = vadd.f32 %v2303, %v1998
        %v2368 = vadd.f32 %v2304, %v2000
        %v2369 = vadd.f32 %v2305, %v2002
        %v2370 = vadd.f32 %v2306, %v2004
        %v2371 = vadd.f32 %v2307, %v2006
        %v2372 = vadd.f32 %v2308, %v2008
        %v2373 = vadd.f32 %v2309, %v2010
        %v2374 = vadd.f32 %v2310, %v2012
        %v2375 = vadd.f32 %v2311, %v2014
        %v2376 = vadd.f32 %v2312, %v2016
        %v2377 = vadd.f32 %v2313, %v2018
        %v2378 = vadd.f32 %v2314, %v2020
        %v2379 = vadd.f32 %v2315, %v2022
        %v2380 = vadd.f32 %v2316, %v2024
        %v2381 = vadd.f32 %v2317, %v2026
        %v2382 = vadd.f32 %v2318, %v2028
        %v2383 = vadd.f32 %v2319, %v2030
        %v2384 = vadd.f32 %v2320, %v2032
        %v2385 = vadd.f32 %v2321, %v2034
        %v2386 = vadd.f32 %v2322, %v2036
        %v2387 = vadd.f32 %v2323, %v2038
        %v2388 = vadd.f32 %v2324, %v2040
        %v2389 = vadd.f32 %v2325, %v2042
        %v2390 = vadd.f32 %v2326, %v2044
        %v2391 = vadd.f32 %v2327, %v2046
        %v2392 = vadd.f32 %v2328, %v2048
        %v2393 = vadd.f32 %v2329, %v2050
        %v2394 = vadd.f32 %v2330, %v2052
        %v2395 = vadd.f32 %v2331, %v2054
        %v2396 = vadd.f32 %v2332, %v2056
        %v2397 = vadd.f32 %v2333, %v2058
        %v2398 = vadd.f32 %v2334, %v2060
        %v2399 = vadd.f32 %v2335, %v2062
        %v2400 = vadd.f32 %v2336, %v2064
        %v2401 = vadd.f32 %v2337, %v2066
        %v2402 = vadd.f32 %v2338, %v2068
        %v2403 = vadd.f32 %v2339, %v2070
        %v2404 = vadd.f32 %v2340, %v2072
        %v2405 = vadd.f32 %v2341, %v2074
        %v2406 = vadd.f32 %v2342, %v2076
        %v2407 = vadd.f32 %v2343, %v2078
        %v2408 = vadd.f32 %v2344, %v2080
        %v2409 = vadd.f32 %v2345, %v2082
        %v2410 = vadd.f32 %v2346, %v2084
        %v2411 = vadd.f32 %v2347, %v2086
        %v2412 = vadd.f32 %v2348, %v2088
        %v2413 = vadd.f32 %v2349, %v2090
        %v2414 = vadd.f32 %v2350, %v2092
        %v2415 = vadd.f32 %v2351, %v2094
        %v2416 = vadd.f32 %v2352, %v2096
        %v2417 = vadd.f32 %v2353, %v2162
        %v2418 = vadd.f32 %v2354, %v2164
        %v2419 = vadd.f32 %v2355, %v2166
        %v2420 = vadd.f32 %v2356, %v2168
        %v2421 = vadd.f32 %v2357, %v2170
        %v2422 = vadd.f32 %v2358, %v2172
        %v2423 = vadd.f32 %v2359, %v2174
        %v2424 = vadd.f32 %v2360, %v2176
        %v2425 = vadd.f32 %v2361, %v2178
        %v2426 = vadd.f32 %v2362, %v2180
        %v2427 = vadd.f32 %v2363, %v2182
        %v2428 = vadd.f32 %v2364, %v2184
        %v2429 = vadd.f32 %v2365, %v2186
        %v2430 = vadd.f32 %v2366, %v2188
        %v2431 = vadd.f32 %v2367, %v2190
        %v2432 = vadd.f32 %v2368, %v2192
        %v2433 = vadd.f32 %v2369, %v2194
        %v2434 = vadd.f32 %v2370, %v2196
        %v2435 = vadd.f32 %v2371, %v2198
        %v2436 = vadd.f32 %v2372, %v2200
        %v2437 = vadd.f32 %v2373, %v2202
        %v2438 = vadd.f32 %v2374, %v2204
        %v2439 = vadd.f32 %v2375, %v2206
        %v2440 = vadd.f32 %v2376, %v2208
        %v2441 = vadd.f32 %v2377, %v2210
        %v2442 = vadd.f32 %v2378, %v2212
        %v2443 = vadd.f32 %v2379, %v2214
        %v2444 = vadd.f32 %v2380, %v2216
        %v2445 = vadd.f32 %v2381, %v2218
        %v2446 = vadd.f32 %v2382, %v2220
        %v2447 = vadd.f32 %v2383, %v2222
        %v2448 = vadd.f32 %v2384, %v2224
        %v2449 = vadd.f32 %v2385, %v2226
        %v2450 = vadd.f32 %v2386, %v2228
        %v2451 = vadd.f32 %v2387, %v2230
        %v2452 = vadd.f32 %v2388, %v2232
        %v2453 = vadd.f32 %v2389, %v2234
        %v2454 = vadd.f32 %v2390, %v2236
        %v2455 = vadd.f32 %v2391, %v2238
        %v2456 = vadd.f32 %v2392, %v2240
        %v2457 = vadd.f32 %v2393, %v2242
        %v2458 = vadd.f32 %v2394, %v2244
        %v2459 = vadd.f32 %v2395, %v2246
        %v2460 = vadd.f32 %v2396, %v2248
        %v2461 = vadd.f32 %v2397, %v2250
        %v2462 = vadd.f32 %v2398, %v2252
        %v2463 = vadd.f32 %v2399, %v2254
        %v2464 = vadd.f32 %v2400, %v2256
        %v2465 = vadd.f32 %v2401, %v2258
        %v2466 = vadd.f32 %v2402, %v2260
        %v2467 = vadd.f32 %v2403, %v2262
        %v2468 = vadd.f32 %v2404, %v2264
        %v2469 = vadd.f32 %v2405, %v2266
        %v2470 = vadd.f32 %v2406, %v2268
        %v2471 = vadd.f32 %v2407, %v2270
        %v2472 = vadd.f32 %v2408, %v2272
        %v2473 = vadd.f32 %v2409, %v2274
        %v2474 = vadd.f32 %v2410, %v2276
        %v2475 = vadd.f32 %v2411, %v2278
        %v2476 = vadd.f32 %v2412, %v2280
        %v2477 = vadd.f32 %v2413, %v2282
        %v2478 = vadd.f32 %v2414, %v2284
        %v2479 = vadd.f32 %v2415, %v2286
        %v2480 = vadd.f32 %v2416, %v2288
        %v2481 = vld [vmem:[%s333] sm:$0xff]
        %v2482 = vld [vmem:[%s333 + $0x8] sm:$0xff]
        %v2483 = vld [vmem:[%s333 + $0x10] sm:$0xff]
        %v2484 = vld [vmem:[%s333 + $0x18] sm:$0xff]
        %v2485 = vld [vmem:[%s333 + $0x20] sm:$0xff]
        %v2486 = vld [vmem:[%s333 + $0x28] sm:$0xff]
        %v2487 = vld [vmem:[%s333 + $0x30] sm:$0xff]
        %v2488 = vld [vmem:[%s333 + $0x38] sm:$0xff]
        %v2489 = vld [vmem:[%s333 + $0x40] sm:$0xff]
        %v2490 = vld [vmem:[%s333 + $0x48] sm:$0xff]
        %v2491 = vld [vmem:[%s333 + $0x50] sm:$0xff]
        %v2492 = vld [vmem:[%s333 + $0x58] sm:$0xff]
        %v2493 = vld [vmem:[%s333 + $0x60] sm:$0xff]
        %v2494 = vld [vmem:[%s333 + $0x68] sm:$0xff]
        %v2495 = vld [vmem:[%s333 + $0x70] sm:$0xff]
        %v2496 = vld [vmem:[%s333 + $0x78] sm:$0xff]
        %v2497 = vld [vmem:[%s333 + $0x80] sm:$0xff]
        %v2498 = vld [vmem:[%s333 + $0x88] sm:$0xff]
        %v2499 = vld [vmem:[%s333 + $0x90] sm:$0xff]
        %v2500 = vld [vmem:[%s333 + $0x98] sm:$0xff]
        %v2501 = vld [vmem:[%s333 + $0xa0] sm:$0xff]
        %v2502 = vld [vmem:[%s333 + $0xa8] sm:$0xff]
        %v2503 = vld [vmem:[%s333 + $0xb0] sm:$0xff]
        %v2504 = vld [vmem:[%s333 + $0xb8] sm:$0xff]
        %v2505 = vld [vmem:[%s333 + $0xc0] sm:$0xff]
        %v2506 = vld [vmem:[%s333 + $0xc8] sm:$0xff]
        %v2507 = vld [vmem:[%s333 + $0xd0] sm:$0xff]
        %v2508 = vld [vmem:[%s333 + $0xd8] sm:$0xff]
        %v2509 = vld [vmem:[%s333 + $0xe0] sm:$0xff]
        %v2510 = vld [vmem:[%s333 + $0xe8] sm:$0xff]
        %v2511 = vld [vmem:[%s333 + $0xf0] sm:$0xff]
        %v2512 = vld [vmem:[%s333 + $0xf8] sm:$0xff]
        %v2513 = vunpack.c.l.bf16 %v2481
        %v2514 = vunpack.c.h.bf16 %v2481
        %v2515 = vunpack.c.l.bf16 %v2482
        %v2516 = vunpack.c.h.bf16 %v2482
        %v2517 = vunpack.c.l.bf16 %v2483
        %v2518 = vunpack.c.h.bf16 %v2483
        %v2519 = vunpack.c.l.bf16 %v2484
        %v2520 = vunpack.c.h.bf16 %v2484
        %v2521 = vunpack.c.l.bf16 %v2485
        %v2522 = vunpack.c.h.bf16 %v2485
        %v2523 = vunpack.c.l.bf16 %v2486
        %v2524 = vunpack.c.h.bf16 %v2486
        %v2525 = vunpack.c.l.bf16 %v2487
        %v2526 = vunpack.c.h.bf16 %v2487
        %v2527 = vunpack.c.l.bf16 %v2488
        %v2528 = vunpack.c.h.bf16 %v2488
        %v2529 = vunpack.c.l.bf16 %v2489
        %v2530 = vunpack.c.h.bf16 %v2489
        %v2531 = vunpack.c.l.bf16 %v2490
        %v2532 = vunpack.c.h.bf16 %v2490
        %v2533 = vunpack.c.l.bf16 %v2491
        %v2534 = vunpack.c.h.bf16 %v2491
        %v2535 = vunpack.c.l.bf16 %v2492
        %v2536 = vunpack.c.h.bf16 %v2492
        %v2537 = vunpack.c.l.bf16 %v2493
        %v2538 = vunpack.c.h.bf16 %v2493
        %v2539 = vunpack.c.l.bf16 %v2494
        %v2540 = vunpack.c.h.bf16 %v2494
        %v2541 = vunpack.c.l.bf16 %v2495
        %v2542 = vunpack.c.h.bf16 %v2495
        %v2543 = vunpack.c.l.bf16 %v2496
        %v2544 = vunpack.c.h.bf16 %v2496
        %v2545 = vunpack.c.l.bf16 %v2497
        %v2546 = vunpack.c.h.bf16 %v2497
        %v2547 = vunpack.c.l.bf16 %v2498
        %v2548 = vunpack.c.h.bf16 %v2498
        %v2549 = vunpack.c.l.bf16 %v2499
        %v2550 = vunpack.c.h.bf16 %v2499
        %v2551 = vunpack.c.l.bf16 %v2500
        %v2552 = vunpack.c.h.bf16 %v2500
        %v2553 = vunpack.c.l.bf16 %v2501
        %v2554 = vunpack.c.h.bf16 %v2501
        %v2555 = vunpack.c.l.bf16 %v2502
        %v2556 = vunpack.c.h.bf16 %v2502
        %v2557 = vunpack.c.l.bf16 %v2503
        %v2558 = vunpack.c.h.bf16 %v2503
        %v2559 = vunpack.c.l.bf16 %v2504
        %v2560 = vunpack.c.h.bf16 %v2504
        %v2561 = vunpack.c.l.bf16 %v2505
        %v2562 = vunpack.c.h.bf16 %v2505
        %v2563 = vunpack.c.l.bf16 %v2506
        %v2564 = vunpack.c.h.bf16 %v2506
        %v2565 = vunpack.c.l.bf16 %v2507
        %v2566 = vunpack.c.h.bf16 %v2507
        %v2567 = vunpack.c.l.bf16 %v2508
        %v2568 = vunpack.c.h.bf16 %v2508
        %v2569 = vunpack.c.l.bf16 %v2509
        %v2570 = vunpack.c.h.bf16 %v2509
        %v2571 = vunpack.c.l.bf16 %v2510
        %v2572 = vunpack.c.h.bf16 %v2510
        %v2573 = vunpack.c.l.bf16 %v2511
        %v2574 = vunpack.c.h.bf16 %v2511
        %v2575 = vunpack.c.l.bf16 %v2512
        %v2576 = vunpack.c.h.bf16 %v2512
        %v2577 = vrcp.pop %v2417
        %v2578 = vrcp.pop %v2418
        %v2579 = vrcp.pop %v2419
        %v2580 = vrcp.pop %v2420
        %v2581 = vrcp.pop %v2421
        %v2582 = vrcp.pop %v2422
        %v2583 = vrcp.pop %v2423
        %v2584 = vrcp.pop %v2424
        %v2585 = vrcp.pop %v2425
        %v2586 = vrcp.pop %v2426
        %v2587 = vrcp.pop %v2427
        %v2588 = vrcp.pop %v2428
        %v2589 = vrcp.pop %v2429
        %v2590 = vrcp.pop %v2430
        %v2591 = vrcp.pop %v2431
        %v2592 = vrcp.pop %v2432
        %v2593 = vrcp.pop %v2433
        %v2594 = vrcp.pop %v2434
        %v2595 = vrcp.pop %v2435
        %v2596 = vrcp.pop %v2436
        %v2597 = vrcp.pop %v2437
        %v2598 = vrcp.pop %v2438
        %v2599 = vrcp.pop %v2439
        %v2600 = vrcp.pop %v2440
        %v2601 = vrcp.pop %v2441
        %v2602 = vrcp.pop %v2442
        %v2603 = vrcp.pop %v2443
        %v2604 = vrcp.pop %v2444
        %v2605 = vrcp.pop %v2445
        %v2606 = vrcp.pop %v2446
        %v2607 = vrcp.pop %v2447
        %v2608 = vrcp.pop %v2448
        %v2609 = vrcp.pop %v2449
        %v2610 = vrcp.pop %v2450
        %v2611 = vrcp.pop %v2451
        %v2612 = vrcp.pop %v2452
        %v2613 = vrcp.pop %v2453
        %v2614 = vrcp.pop %v2454
        %v2615 = vrcp.pop %v2455
        %v2616 = vrcp.pop %v2456
        %v2617 = vrcp.pop %v2457
        %v2618 = vrcp.pop %v2458
        %v2619 = vrcp.pop %v2459
        %v2620 = vrcp.pop %v2460
        %v2621 = vrcp.pop %v2461
        %v2622 = vrcp.pop %v2462
        %v2623 = vrcp.pop %v2463
        %v2624 = vrcp.pop %v2464
        %v2625 = vrcp.pop %v2465
        %v2626 = vrcp.pop %v2466
        %v2627 = vrcp.pop %v2467
        %v2628 = vrcp.pop %v2468
        %v2629 = vrcp.pop %v2469
        %v2630 = vrcp.pop %v2470
        %v2631 = vrcp.pop %v2471
        %v2632 = vrcp.pop %v2472
        %v2633 = vrcp.pop %v2473
        %v2634 = vrcp.pop %v2474
        %v2635 = vrcp.pop %v2475
        %v2636 = vrcp.pop %v2476
        %v2637 = vrcp.pop %v2477
        %v2638 = vrcp.pop %v2478
        %v2639 = vrcp.pop %v2479
        %v2640 = vrcp.pop %v2480
        %v2641 = vmul.f32 %v2513, %v2577
        %v2642 = vmul.f32 %v2514, %v2578
        %v2643 = vmul.f32 %v2515, %v2579
        %v2644 = vmul.f32 %v2516, %v2580
        %v2645 = vmul.f32 %v2517, %v2581
        %v2646 = vmul.f32 %v2518, %v2582
        %v2647 = vmul.f32 %v2519, %v2583
        %v2648 = vmul.f32 %v2520, %v2584
        %v2649 = vmul.f32 %v2521, %v2585
        %v2650 = vmul.f32 %v2522, %v2586
        %v2651 = vmul.f32 %v2523, %v2587
        %v2652 = vmul.f32 %v2524, %v2588
        %v2653 = vmul.f32 %v2525, %v2589
        %v2654 = vmul.f32 %v2526, %v2590
        %v2655 = vmul.f32 %v2527, %v2591
        %v2656 = vmul.f32 %v2528, %v2592
        %v2657 = vmul.f32 %v2529, %v2593
        %v2658 = vmul.f32 %v2530, %v2594
        %v2659 = vmul.f32 %v2531, %v2595
        %v2660 = vmul.f32 %v2532, %v2596
        %v2661 = vmul.f32 %v2533, %v2597
        %v2662 = vmul.f32 %v2534, %v2598
        %v2663 = vmul.f32 %v2535, %v2599
        %v2664 = vmul.f32 %v2536, %v2600
        %v2665 = vmul.f32 %v2537, %v2601
        %v2666 = vmul.f32 %v2538, %v2602
        %v2667 = vmul.f32 %v2539, %v2603
        %v2668 = vmul.f32 %v2540, %v2604
        %v2669 = vmul.f32 %v2541, %v2605
        %v2670 = vmul.f32 %v2542, %v2606
        %v2671 = vmul.f32 %v2543, %v2607
        %v2672 = vmul.f32 %v2544, %v2608
        %v2673 = vmul.f32 %v2545, %v2609
        %v2674 = vmul.f32 %v2546, %v2610
        %v2675 = vmul.f32 %v2547, %v2611
        %v2676 = vmul.f32 %v2548, %v2612
        %v2677 = vmul.f32 %v2549, %v2613
        %v2678 = vmul.f32 %v2550, %v2614
        %v2679 = vmul.f32 %v2551, %v2615
        %v2680 = vmul.f32 %v2552, %v2616
        %v2681 = vmul.f32 %v2553, %v2617
        %v2682 = vmul.f32 %v2554, %v2618
        %v2683 = vmul.f32 %v2555, %v2619
        %v2684 = vmul.f32 %v2556, %v2620
        %v2685 = vmul.f32 %v2557, %v2621
        %v2686 = vmul.f32 %v2558, %v2622
        %v2687 = vmul.f32 %v2559, %v2623
        %v2688 = vmul.f32 %v2560, %v2624
        %v2689 = vmul.f32 %v2561, %v2625
        %v2690 = vmul.f32 %v2562, %v2626
        %v2691 = vmul.f32 %v2563, %v2627
        %v2692 = vmul.f32 %v2564, %v2628
        %v2693 = vmul.f32 %v2565, %v2629
        %v2694 = vmul.f32 %v2566, %v2630
        %v2695 = vmul.f32 %v2567, %v2631
        %v2696 = vmul.f32 %v2568, %v2632
        %v2697 = vmul.f32 %v2569, %v2633
        %v2698 = vmul.f32 %v2570, %v2634
        %v2699 = vmul.f32 %v2571, %v2635
        %v2700 = vmul.f32 %v2572, %v2636
        %v2701 = vmul.f32 %v2573, %v2637
        %v2702 = vmul.f32 %v2574, %v2638
        %v2703 = vmul.f32 %v2575, %v2639
        %v2704 = vmul.f32 %v2576, %v2640
        %v2705 = vmul.f32 %v1586, %v2641
        %v2706 = vmul.f32 %v1588, %v2642
        %v2707 = vmul.f32 %v1590, %v2643
        %v2708 = vmul.f32 %v1592, %v2644
        %v2709 = vmul.f32 %v1594, %v2645
        %v2710 = vmul.f32 %v1596, %v2646
        %v2711 = vmul.f32 %v1598, %v2647
        %v2712 = vmul.f32 %v1600, %v2648
        %v2713 = vmul.f32 %v1602, %v2649
        %v2714 = vmul.f32 %v1604, %v2650
        %v2715 = vmul.f32 %v1606, %v2651
        %v2716 = vmul.f32 %v1608, %v2652
        %v2717 = vmul.f32 %v1610, %v2653
        %v2718 = vmul.f32 %v1612, %v2654
        %v2719 = vmul.f32 %v1614, %v2655
        %v2720 = vmul.f32 %v1616, %v2656
        %v2721 = vmul.f32 %v1618, %v2657
        %v2722 = vmul.f32 %v1620, %v2658
        %v2723 = vmul.f32 %v1622, %v2659
        %v2724 = vmul.f32 %v1624, %v2660
        %v2725 = vmul.f32 %v1626, %v2661
        %v2726 = vmul.f32 %v1628, %v2662
        %v2727 = vmul.f32 %v1630, %v2663
        %v2728 = vmul.f32 %v1632, %v2664
        %v2729 = vmul.f32 %v1634, %v2665
        %v2730 = vmul.f32 %v1636, %v2666
        %v2731 = vmul.f32 %v1638, %v2667
        %v2732 = vmul.f32 %v1640, %v2668
        %v2733 = vmul.f32 %v1642, %v2669
        %v2734 = vmul.f32 %v1644, %v2670
        %v2735 = vmul.f32 %v1646, %v2671
        %v2736 = vmul.f32 %v1648, %v2672
        %v2737 = vmul.f32 %v1650, %v2673
        %v2738 = vmul.f32 %v1652, %v2674
        %v2739 = vmul.f32 %v1654, %v2675
        %v2740 = vmul.f32 %v1656, %v2676
        %v2741 = vmul.f32 %v1658, %v2677
        %v2742 = vmul.f32 %v1660, %v2678
        %v2743 = vmul.f32 %v1662, %v2679
        %v2744 = vmul.f32 %v1664, %v2680
        %v2745 = vmul.f32 %v1666, %v2681
        %v2746 = vmul.f32 %v1668, %v2682
        %v2747 = vmul.f32 %v1670, %v2683
        %v2748 = vmul.f32 %v1672, %v2684
        %v2749 = vmul.f32 %v1674, %v2685
        %v2750 = vmul.f32 %v1676, %v2686
        %v2751 = vmul.f32 %v1678, %v2687
        %v2752 = vmul.f32 %v1680, %v2688
        %v2753 = vmul.f32 %v1682, %v2689
        %v2754 = vmul.f32 %v1684, %v2690
        %v2755 = vmul.f32 %v1686, %v2691
        %v2756 = vmul.f32 %v1688, %v2692
        %v2757 = vmul.f32 %v1690, %v2693
        %v2758 = vmul.f32 %v1692, %v2694
        %v2759 = vmul.f32 %v1694, %v2695
        %v2760 = vmul.f32 %v1696, %v2696
        %v2761 = vmul.f32 %v1698, %v2697
        %v2762 = vmul.f32 %v1700, %v2698
        %v2763 = vmul.f32 %v1702, %v2699
        %v2764 = vmul.f32 %v1704, %v2700
        %v2765 = vmul.f32 %v1706, %v2701
        %v2766 = vmul.f32 %v1708, %v2702
        %v2767 = vmul.f32 %v1710, %v2703
        %v2768 = vmul.f32 %v1712, %v2704
        %v2769 = vpack.c.bf16 %v2709, %v2705
        %v2770 = vpack.c.bf16 %v2710, %v2706
        %v2771 = vpack.c.bf16 %v2711, %v2707
        %v2772 = vpack.c.bf16 %v2712, %v2708
        %v2773 = vpack.c.bf16 %v2717, %v2713
        %v2774 = vpack.c.bf16 %v2718, %v2714
        %v2775 = vpack.c.bf16 %v2719, %v2715
        %v2776 = vpack.c.bf16 %v2720, %v2716
        %v2777 = vpack.c.bf16 %v2725, %v2721
        %v2778 = vpack.c.bf16 %v2726, %v2722
        %v2779 = vpack.c.bf16 %v2727, %v2723
        %v2780 = vpack.c.bf16 %v2728, %v2724
        %v2781 = vpack.c.bf16 %v2733, %v2729
        %v2782 = vpack.c.bf16 %v2734, %v2730
        %v2783 = vpack.c.bf16 %v2735, %v2731
        %v2784 = vpack.c.bf16 %v2736, %v2732
        %v2785 = vpack.c.bf16 %v2741, %v2737
        %v2786 = vpack.c.bf16 %v2742, %v2738
        %v2787 = vpack.c.bf16 %v2743, %v2739
        %v2788 = vpack.c.bf16 %v2744, %v2740
        %v2789 = vpack.c.bf16 %v2749, %v2745
        %v2790 = vpack.c.bf16 %v2750, %v2746
        %v2791 = vpack.c.bf16 %v2751, %v2747
        %v2792 = vpack.c.bf16 %v2752, %v2748
        %v2793 = vpack.c.bf16 %v2757, %v2753
        %v2794 = vpack.c.bf16 %v2758, %v2754
        %v2795 = vpack.c.bf16 %v2759, %v2755
        %v2796 = vpack.c.bf16 %v2760, %v2756
        %v2797 = vpack.c.bf16 %v2765, %v2761
        %v2798 = vpack.c.bf16 %v2766, %v2762
        %v2799 = vpack.c.bf16 %v2767, %v2763
        %v2800 = vpack.c.bf16 %v2768, %v2764
        %v2801 = vld [vmem:[#allocation2] sm:$0xf]
        %v2802 = vld [vmem:[#allocation2 + $0x4] sm:$0xf]
        %v2803 = vld [vmem:[#allocation2 + $0x8] sm:$0xf]
        %v2804 = vld [vmem:[#allocation2 + $0xc] sm:$0xf]
        %v2805 = vld [vmem:[#allocation2 + $0x10] sm:$0xf]
        %v2806 = vld [vmem:[#allocation2 + $0x14] sm:$0xf]
        %v2807 = vld [vmem:[#allocation2 + $0x18] sm:$0xf]
        %v2808 = vld [vmem:[#allocation2 + $0x1c] sm:$0xf]
        %v2809 = vld [vmem:[#allocation2 + $0x20] sm:$0xf]
        %v2810 = vld [vmem:[#allocation2 + $0x24] sm:$0xf]
        %v2811 = vld [vmem:[#allocation2 + $0x28] sm:$0xf]
        %v2812 = vld [vmem:[#allocation2 + $0x2c] sm:$0xf]
        %v2813 = vld [vmem:[#allocation2 + $0x30] sm:$0xf]
        %v2814 = vld [vmem:[#allocation2 + $0x34] sm:$0xf]
        %v2815 = vld [vmem:[#allocation2 + $0x38] sm:$0xf]
        %v2816 = vld [vmem:[#allocation2 + $0x3c] sm:$0xf]
        %v2817 = vld [vmem:[#allocation2 + $0x40] sm:$0xf]
        %v2818 = vld [vmem:[#allocation2 + $0x44] sm:$0xf]
        %v2819 = vld [vmem:[#allocation2 + $0x48] sm:$0xf]
        %v2820 = vld [vmem:[#allocation2 + $0x4c] sm:$0xf]
        %v2821 = vld [vmem:[#allocation2 + $0x50] sm:$0xf]
        %v2822 = vld [vmem:[#allocation2 + $0x54] sm:$0xf]
        %v2823 = vld [vmem:[#allocation2 + $0x58] sm:$0xf]
        %v2824 = vld [vmem:[#allocation2 + $0x5c] sm:$0xf]
        %v2825 = vld [vmem:[#allocation2 + $0x60] sm:$0xf]
        %v2826 = vld [vmem:[#allocation2 + $0x64] sm:$0xf]
        %v2827 = vld [vmem:[#allocation2 + $0x68] sm:$0xf]
        %v2828 = vld [vmem:[#allocation2 + $0x6c] sm:$0xf]
        %v2829 = vld [vmem:[#allocation2 + $0x70] sm:$0xf]
        %v2830 = vld [vmem:[#allocation2 + $0x74] sm:$0xf]
        %v2831 = vld [vmem:[#allocation2 + $0x78] sm:$0xf]
        %v2832 = vld [vmem:[#allocation2 + $0x7c] sm:$0xf]
        %v2833 = vld [vmem:[#allocation2 + $0x80] sm:$0xf]
        %v2834 = vld [vmem:[#allocation2 + $0x84] sm:$0xf]
        %v2835 = vld [vmem:[#allocation2 + $0x88] sm:$0xf]
        %v2836 = vld [vmem:[#allocation2 + $0x8c] sm:$0xf]
        %v2837 = vld [vmem:[#allocation2 + $0x90] sm:$0xf]
        %v2838 = vld [vmem:[#allocation2 + $0x94] sm:$0xf]
        %v2839 = vld [vmem:[#allocation2 + $0x98] sm:$0xf]
        %v2840 = vld [vmem:[#allocation2 + $0x9c] sm:$0xf]
        %v2841 = vld [vmem:[#allocation2 + $0xa0] sm:$0xf]
        %v2842 = vld [vmem:[#allocation2 + $0xa4] sm:$0xf]
        %v2843 = vld [vmem:[#allocation2 + $0xa8] sm:$0xf]
        %v2844 = vld [vmem:[#allocation2 + $0xac] sm:$0xf]
        %v2845 = vld [vmem:[#allocation2 + $0xb0] sm:$0xf]
        %v2846 = vld [vmem:[#allocation2 + $0xb4] sm:$0xf]
        %v2847 = vld [vmem:[#allocation2 + $0xb8] sm:$0xf]
        %v2848 = vld [vmem:[#allocation2 + $0xbc] sm:$0xf]
        %v2849 = vld [vmem:[#allocation2 + $0xc0] sm:$0xf]
        %v2850 = vld [vmem:[#allocation2 + $0xc4] sm:$0xf]
        %v2851 = vld [vmem:[#allocation2 + $0xc8] sm:$0xf]
        %v2852 = vld [vmem:[#allocation2 + $0xcc] sm:$0xf]
        %v2853 = vld [vmem:[#allocation2 + $0xd0] sm:$0xf]
        %v2854 = vld [vmem:[#allocation2 + $0xd4] sm:$0xf]
        %v2855 = vld [vmem:[#allocation2 + $0xd8] sm:$0xf]
        %v2856 = vld [vmem:[#allocation2 + $0xdc] sm:$0xf]
        %v2857 = vld [vmem:[#allocation2 + $0xe0] sm:$0xf]
        %v2858 = vld [vmem:[#allocation2 + $0xe4] sm:$0xf]
        %v2859 = vld [vmem:[#allocation2 + $0xe8] sm:$0xf]
        %v2860 = vld [vmem:[#allocation2 + $0xec] sm:$0xf]
        %v2861 = vld [vmem:[#allocation2 + $0xf0] sm:$0xf]
        %v2862 = vld [vmem:[#allocation2 + $0xf4] sm:$0xf]
        %v2863 = vld [vmem:[#allocation2 + $0xf8] sm:$0xf]
        %v2864 = vld [vmem:[#allocation2 + $0xfc] sm:$0xf]
        %v2865 = vmul.f32 %v1778, %v2641
        %v2866 = vmul.f32 %v1780, %v2642
        %v2867 = vmul.f32 %v1782, %v2643
        %v2868 = vmul.f32 %v1784, %v2644
        %v2869 = vmul.f32 %v1786, %v2645
        %v2870 = vmul.f32 %v1788, %v2646
        %v2871 = vmul.f32 %v1790, %v2647
        %v2872 = vmul.f32 %v1792, %v2648
        %v2873 = vmul.f32 %v1794, %v2649
        %v2874 = vmul.f32 %v1796, %v2650
        %v2875 = vmul.f32 %v1798, %v2651
        %v2876 = vmul.f32 %v1800, %v2652
        %v2877 = vmul.f32 %v1802, %v2653
        %v2878 = vmul.f32 %v1804, %v2654
        %v2879 = vmul.f32 %v1806, %v2655
        %v2880 = vmul.f32 %v1808, %v2656
        %v2881 = vmul.f32 %v1810, %v2657
        %v2882 = vmul.f32 %v1812, %v2658
        %v2883 = vmul.f32 %v1814, %v2659
        %v2884 = vmul.f32 %v1816, %v2660
        %v2885 = vmul.f32 %v1818, %v2661
        %v2886 = vmul.f32 %v1820, %v2662
        %v2887 = vmul.f32 %v1822, %v2663
        %v2888 = vmul.f32 %v1824, %v2664
        %v2889 = vmul.f32 %v1826, %v2665
        %v2890 = vmul.f32 %v1828, %v2666
        %v2891 = vmul.f32 %v1830, %v2667
        %v2892 = vmul.f32 %v1832, %v2668
        %v2893 = vmul.f32 %v1834, %v2669
        %v2894 = vmul.f32 %v1836, %v2670
        %v2895 = vmul.f32 %v1838, %v2671
        %v2896 = vmul.f32 %v1840, %v2672
        %v2897 = vmul.f32 %v1842, %v2673
        %v2898 = vmul.f32 %v1844, %v2674
        %v2899 = vmul.f32 %v1846, %v2675
        %v2900 = vmul.f32 %v1848, %v2676
        %v2901 = vmul.f32 %v1850, %v2677
        %v2902 = vmul.f32 %v1852, %v2678
        %v2903 = vmul.f32 %v1854, %v2679
        %v2904 = vmul.f32 %v1856, %v2680
        %v2905 = vmul.f32 %v1858, %v2681
        %v2906 = vmul.f32 %v1860, %v2682
        %v2907 = vmul.f32 %v1862, %v2683
        %v2908 = vmul.f32 %v1864, %v2684
        %v2909 = vmul.f32 %v1866, %v2685
        %v2910 = vmul.f32 %v1868, %v2686
        %v2911 = vmul.f32 %v1870, %v2687
        %v2912 = vmul.f32 %v1872, %v2688
        %v2913 = vmul.f32 %v1874, %v2689
        %v2914 = vmul.f32 %v1876, %v2690
        %v2915 = vmul.f32 %v1878, %v2691
        %v2916 = vmul.f32 %v1880, %v2692
        %v2917 = vmul.f32 %v1882, %v2693
        %v2918 = vmul.f32 %v1884, %v2694
        %v2919 = vmul.f32 %v1886, %v2695
        %v2920 = vmul.f32 %v1888, %v2696
        %v2921 = vmul.f32 %v1890, %v2697
        %v2922 = vmul.f32 %v1892, %v2698
        %v2923 = vmul.f32 %v1894, %v2699
        %v2924 = vmul.f32 %v1896, %v2700
        %v2925 = vmul.f32 %v1898, %v2701
        %v2926 = vmul.f32 %v1900, %v2702
        %v2927 = vmul.f32 %v1902, %v2703
        %v2928 = vmul.f32 %v1904, %v2704
        %v2929 = vpack.c.bf16 %v2869, %v2865
        %v2930 = vpack.c.bf16 %v2870, %v2866
        %v2931 = vpack.c.bf16 %v2871, %v2867
        %v2932 = vpack.c.bf16 %v2872, %v2868
        %v2933 = vpack.c.bf16 %v2877, %v2873
        %v2934 = vpack.c.bf16 %v2878, %v2874
        %v2935 = vpack.c.bf16 %v2879, %v2875
        %v2936 = vpack.c.bf16 %v2880, %v2876
        %v2937 = vpack.c.bf16 %v2885, %v2881
        %v2938 = vpack.c.bf16 %v2886, %v2882
        %v2939 = vpack.c.bf16 %v2887, %v2883
        %v2940 = vpack.c.bf16 %v2888, %v2884
        %v2941 = vpack.c.bf16 %v2893, %v2889
        %v2942 = vpack.c.bf16 %v2894, %v2890
        %v2943 = vpack.c.bf16 %v2895, %v2891
        %v2944 = vpack.c.bf16 %v2896, %v2892
        %v2945 = vpack.c.bf16 %v2901, %v2897
        %v2946 = vpack.c.bf16 %v2902, %v2898
        %v2947 = vpack.c.bf16 %v2903, %v2899
        %v2948 = vpack.c.bf16 %v2904, %v2900
        %v2949 = vpack.c.bf16 %v2909, %v2905
        %v2950 = vpack.c.bf16 %v2910, %v2906
        %v2951 = vpack.c.bf16 %v2911, %v2907
        %v2952 = vpack.c.bf16 %v2912, %v2908
        %v2953 = vpack.c.bf16 %v2917, %v2913
        %v2954 = vpack.c.bf16 %v2918, %v2914
        %v2955 = vpack.c.bf16 %v2919, %v2915
        %v2956 = vpack.c.bf16 %v2920, %v2916
        %v2957 = vpack.c.bf16 %v2925, %v2921
        %v2958 = vpack.c.bf16 %v2926, %v2922
        %v2959 = vpack.c.bf16 %v2927, %v2923
        %v2960 = vpack.c.bf16 %v2928, %v2924
        %s2961 = scalar_lea.vmem [#allocation2], 256
        %v2962 = vld [vmem:[%s2961] sm:$0xf]
        %v2963 = vld [vmem:[%s2961 + $0x4] sm:$0xf]
        %v2964 = vld [vmem:[%s2961 + $0x8] sm:$0xf]
        %v2965 = vld [vmem:[%s2961 + $0xc] sm:$0xf]
        %v2966 = vld [vmem:[%s2961 + $0x10] sm:$0xf]
        %v2967 = vld [vmem:[%s2961 + $0x14] sm:$0xf]
        %v2968 = vld [vmem:[%s2961 + $0x18] sm:$0xf]
        %v2969 = vld [vmem:[%s2961 + $0x1c] sm:$0xf]
        %v2970 = vld [vmem:[%s2961 + $0x20] sm:$0xf]
        %v2971 = vld [vmem:[%s2961 + $0x24] sm:$0xf]
        %v2972 = vld [vmem:[%s2961 + $0x28] sm:$0xf]
        %v2973 = vld [vmem:[%s2961 + $0x2c] sm:$0xf]
        %v2974 = vld [vmem:[%s2961 + $0x30] sm:$0xf]
        %v2975 = vld [vmem:[%s2961 + $0x34] sm:$0xf]
        %v2976 = vld [vmem:[%s2961 + $0x38] sm:$0xf]
        %v2977 = vld [vmem:[%s2961 + $0x3c] sm:$0xf]
        %v2978 = vld [vmem:[%s2961 + $0x40] sm:$0xf]
        %v2979 = vld [vmem:[%s2961 + $0x44] sm:$0xf]
        %v2980 = vld [vmem:[%s2961 + $0x48] sm:$0xf]
        %v2981 = vld [vmem:[%s2961 + $0x4c] sm:$0xf]
        %v2982 = vld [vmem:[%s2961 + $0x50] sm:$0xf]
        %v2983 = vld [vmem:[%s2961 + $0x54] sm:$0xf]
        %v2984 = vld [vmem:[%s2961 + $0x58] sm:$0xf]
        %v2985 = vld [vmem:[%s2961 + $0x5c] sm:$0xf]
        %v2986 = vld [vmem:[%s2961 + $0x60] sm:$0xf]
        %v2987 = vld [vmem:[%s2961 + $0x64] sm:$0xf]
        %v2988 = vld [vmem:[%s2961 + $0x68] sm:$0xf]
        %v2989 = vld [vmem:[%s2961 + $0x6c] sm:$0xf]
        %v2990 = vld [vmem:[%s2961 + $0x70] sm:$0xf]
        %v2991 = vld [vmem:[%s2961 + $0x74] sm:$0xf]
        %v2992 = vld [vmem:[%s2961 + $0x78] sm:$0xf]
        %v2993 = vld [vmem:[%s2961 + $0x7c] sm:$0xf]
        %v2994 = vld [vmem:[%s2961 + $0x80] sm:$0xf]
        %v2995 = vld [vmem:[%s2961 + $0x84] sm:$0xf]
        %v2996 = vld [vmem:[%s2961 + $0x88] sm:$0xf]
        %v2997 = vld [vmem:[%s2961 + $0x8c] sm:$0xf]
        %v2998 = vld [vmem:[%s2961 + $0x90] sm:$0xf]
        %v2999 = vld [vmem:[%s2961 + $0x94] sm:$0xf]
        %v3000 = vld [vmem:[%s2961 + $0x98] sm:$0xf]
        %v3001 = vld [vmem:[%s2961 + $0x9c] sm:$0xf]
        %v3002 = vld [vmem:[%s2961 + $0xa0] sm:$0xf]
        %v3003 = vld [vmem:[%s2961 + $0xa4] sm:$0xf]
        %v3004 = vld [vmem:[%s2961 + $0xa8] sm:$0xf]
        %v3005 = vld [vmem:[%s2961 + $0xac] sm:$0xf]
        %v3006 = vld [vmem:[%s2961 + $0xb0] sm:$0xf]
        %v3007 = vld [vmem:[%s2961 + $0xb4] sm:$0xf]
        %v3008 = vld [vmem:[%s2961 + $0xb8] sm:$0xf]
        %v3009 = vld [vmem:[%s2961 + $0xbc] sm:$0xf]
        %v3010 = vld [vmem:[%s2961 + $0xc0] sm:$0xf]
        %v3011 = vld [vmem:[%s2961 + $0xc4] sm:$0xf]
        %v3012 = vld [vmem:[%s2961 + $0xc8] sm:$0xf]
        %v3013 = vld [vmem:[%s2961 + $0xcc] sm:$0xf]
        %v3014 = vld [vmem:[%s2961 + $0xd0] sm:$0xf]
        %v3015 = vld [vmem:[%s2961 + $0xd4] sm:$0xf]
        %v3016 = vld [vmem:[%s2961 + $0xd8] sm:$0xf]
        %v3017 = vld [vmem:[%s2961 + $0xdc] sm:$0xf]
        %v3018 = vld [vmem:[%s2961 + $0xe0] sm:$0xf]
        %v3019 = vld [vmem:[%s2961 + $0xe4] sm:$0xf]
        %v3020 = vld [vmem:[%s2961 + $0xe8] sm:$0xf]
        %v3021 = vld [vmem:[%s2961 + $0xec] sm:$0xf]
        %v3022 = vld [vmem:[%s2961 + $0xf0] sm:$0xf]
        %v3023 = vld [vmem:[%s2961 + $0xf4] sm:$0xf]
        %v3024 = vld [vmem:[%s2961 + $0xf8] sm:$0xf]
        %v3025 = vld [vmem:[%s2961 + $0xfc] sm:$0xf]
        %v3090 = vunpack.c.l.b16 %v2962
        %v3091 = vunpack.c.l.b16 %v2963
        %v3092 = vunpack.c.l.b16 %v2964
        %v3093 = vunpack.c.l.b16 %v2965
        %v3094 = vunpack.c.l.b16 %v2966
        %v3095 = vunpack.c.l.b16 %v2967
        %v3096 = vunpack.c.l.b16 %v2968
        %v3097 = vunpack.c.l.b16 %v2969
        %v3098 = vunpack.c.l.b16 %v2970
        %v3099 = vunpack.c.l.b16 %v2971
        %v3100 = vunpack.c.l.b16 %v2972
        %v3101 = vunpack.c.l.b16 %v2973
        %v3102 = vunpack.c.l.b16 %v2974
        %v3103 = vunpack.c.l.b16 %v2975
        %v3104 = vunpack.c.l.b16 %v2976
        %v3105 = vunpack.c.l.b16 %v2977
        %v3106 = vunpack.c.l.b16 %v2978
        %v3107 = vunpack.c.l.b16 %v2979
        %v3108 = vunpack.c.l.b16 %v2980
        %v3109 = vunpack.c.l.b16 %v2981
        %v3110 = vunpack.c.l.b16 %v2982
        %v3111 = vunpack.c.l.b16 %v2983
        %v3112 = vunpack.c.l.b16 %v2984
        %v3113 = vunpack.c.l.b16 %v2985
        %v3114 = vunpack.c.l.b16 %v2986
        %v3115 = vunpack.c.l.b16 %v2987
        %v3116 = vunpack.c.l.b16 %v2988
        %v3117 = vunpack.c.l.b16 %v2989
        %v3118 = vunpack.c.l.b16 %v2990
        %v3119 = vunpack.c.l.b16 %v2991
        %v3120 = vunpack.c.l.b16 %v2992
        %v3121 = vunpack.c.l.b16 %v2993
        %v3122 = vunpack.c.l.b16 %v2994
        %v3123 = vunpack.c.l.b16 %v2995
        %v3124 = vunpack.c.l.b16 %v2996
        %v3125 = vunpack.c.l.b16 %v2997
        %v3126 = vunpack.c.l.b16 %v2998
        %v3127 = vunpack.c.l.b16 %v2999
        %v3128 = vunpack.c.l.b16 %v3000
        %v3129 = vunpack.c.l.b16 %v3001
        %v3130 = vunpack.c.l.b16 %v3002
        %v3131 = vunpack.c.l.b16 %v3003
        %v3132 = vunpack.c.l.b16 %v3004
        %v3133 = vunpack.c.l.b16 %v3005
        %v3134 = vunpack.c.l.b16 %v3006
        %v3135 = vunpack.c.l.b16 %v3007
        %v3136 = vunpack.c.l.b16 %v3008
        %v3137 = vunpack.c.l.b16 %v3009
        %v3138 = vunpack.c.l.b16 %v3010
        %v3139 = vunpack.c.l.b16 %v3011
        %v3140 = vunpack.c.l.b16 %v3012
        %v3141 = vunpack.c.l.b16 %v3013
        %v3142 = vunpack.c.l.b16 %v3014
        %v3143 = vunpack.c.l.b16 %v3015
        %v3144 = vunpack.c.l.b16 %v3016
        %v3145 = vunpack.c.l.b16 %v3017
        %v3146 = vunpack.c.l.b16 %v3018
        %v3147 = vunpack.c.l.b16 %v3019
        %v3148 = vunpack.c.l.b16 %v3020
        %v3149 = vunpack.c.l.b16 %v3021
        %v3150 = vunpack.c.l.b16 %v3022
        %v3151 = vunpack.c.l.b16 %v3023
        %v3152 = vunpack.c.l.b16 %v3024
        %v3153 = vunpack.c.l.b16 %v3025
        %v3154 = vpack.c.b16 %v3091, %v3090
        %v3155 = vpack.c.b16 %v3093, %v3092
        %v3156 = vpack.c.b16 %v3095, %v3094
        %v3157 = vpack.c.b16 %v3097, %v3096
        %v3158 = vpack.c.b16 %v3099, %v3098
        %v3159 = vpack.c.b16 %v3101, %v3100
        %v3160 = vpack.c.b16 %v3103, %v3102
        %v3161 = vpack.c.b16 %v3105, %v3104
        %v3162 = vpack.c.b16 %v3107, %v3106
        %v3163 = vpack.c.b16 %v3109, %v3108
        %v3164 = vpack.c.b16 %v3111, %v3110
        %v3165 = vpack.c.b16 %v3113, %v3112
        %v3166 = vpack.c.b16 %v3115, %v3114
        %v3167 = vpack.c.b16 %v3117, %v3116
        %v3168 = vpack.c.b16 %v3119, %v3118
        %v3169 = vpack.c.b16 %v3121, %v3120
        %v3170 = vpack.c.b16 %v3123, %v3122
        %v3171 = vpack.c.b16 %v3125, %v3124
        %v3172 = vpack.c.b16 %v3127, %v3126
        %v3173 = vpack.c.b16 %v3129, %v3128
        %v3174 = vpack.c.b16 %v3131, %v3130
        %v3175 = vpack.c.b16 %v3133, %v3132
        %v3176 = vpack.c.b16 %v3135, %v3134
        %v3177 = vpack.c.b16 %v3137, %v3136
        %v3178 = vpack.c.b16 %v3139, %v3138
        %v3179 = vpack.c.b16 %v3141, %v3140
        %v3180 = vpack.c.b16 %v3143, %v3142
        %v3181 = vpack.c.b16 %v3145, %v3144
        %v3182 = vpack.c.b16 %v3147, %v3146
        %v3183 = vpack.c.b16 %v3149, %v3148
        %v3184 = vpack.c.b16 %v3151, %v3150
        %v3185 = vpack.c.b16 %v3153, %v3152
        %3218 = vmatprep.subr.bf16.mxu0 0
        %3219 = vmatpush1.bf16.msra.mxu0 %v3154
        %3220 = vmatprep.subr.bf16.mxu0 0
        %3221 = vmatpush1.bf16.msra.mxu0 %v3155
        %3222 = vmatprep.subr.bf16.mxu0 0
        %3223 = vmatpush1.bf16.msra.mxu0 %v3156
        %3224 = vmatprep.subr.bf16.mxu0 0
        %3225 = vmatpush1.bf16.msra.mxu0 %v3157
        %3226 = vmatprep.subr.bf16.mxu0 0
        %3227 = vmatpush1.bf16.msra.mxu0 %v3158
        %3228 = vmatprep.subr.bf16.mxu0 0
        %3229 = vmatpush1.bf16.msra.mxu0 %v3159
        %3230 = vmatprep.subr.bf16.mxu0 0
        %3231 = vmatpush1.bf16.msra.mxu0 %v3160
        %3232 = vmatprep.subr.bf16.mxu0 0
        %3233 = vmatpush1.bf16.msra.mxu0 %v3161
        %3234 = vmatprep.subr.bf16.mxu0 0
        %3235 = vmatpush1.bf16.msra.mxu0 %v3162
        %3236 = vmatprep.subr.bf16.mxu0 0
        %3237 = vmatpush1.bf16.msra.mxu0 %v3163
        %3238 = vmatprep.subr.bf16.mxu0 0
        %3239 = vmatpush1.bf16.msra.mxu0 %v3164
        %3240 = vmatprep.subr.bf16.mxu0 0
        %3241 = vmatpush1.bf16.msra.mxu0 %v3165
        %3242 = vmatprep.subr.bf16.mxu0 0
        %3243 = vmatpush1.bf16.msra.mxu0 %v3166
        %3244 = vmatprep.subr.bf16.mxu0 0
        %3245 = vmatpush1.bf16.msra.mxu0 %v3167
        %3246 = vmatprep.subr.bf16.mxu0 0
        %3247 = vmatpush1.bf16.msra.mxu0 %v3168
        %3248 = vmatprep.subr.bf16.mxu0 0
        %3249 = vmatpush1.bf16.msra.mxu0 %v3169
        %3250 = vmatprep.mubr.bf16.mxu0 %v2930
        %3251 = vmatmul.mubr.bf16.gmra.mrb[0].mxu0 %v2929
        %v3252 = vpop.f32.mrb[0].mxu0
        %v3253 = vadd.f32 0.0, %v3252
        %v3254 = vpop.f32.mrb[0].mxu0
        %v3255 = vpop.f32.mrb[0].mxu0
        %v3256 = vadd.f32 0.0, %v3255
        %v3257 = vpop.f32.mrb[0].mxu0
        %3258 = vmatprep.mubr.bf16.mxu0 %v2934
        %3259 = vmatmul.mubr.bf16.gmra.mrb[0].mxu0 %v2933
        %v3260 = vpop.f32.mrb[0].mxu0
        %v3261 = vadd.f32 0.0, %v3260
        %v3262 = vpop.f32.mrb[0].mxu0
        %v3263 = vpop.f32.mrb[0].mxu0
        %v3264 = vadd.f32 0.0, %v3263
        %v3265 = vpop.f32.mrb[0].mxu0
        %3266 = vmatprep.mubr.bf16.mxu0 %v2938
        %3267 = vmatmul.mubr.bf16.gmra.mrb[0].mxu0 %v2937
        %v3268 = vpop.f32.mrb[0].mxu0
        %v3269 = vadd.f32 0.0, %v3268
        %v3270 = vpop.f32.mrb[0].mxu0
        %v3271 = vpop.f32.mrb[0].mxu0
        %v3272 = vadd.f32 0.0, %v3271
        %v3273 = vpop.f32.mrb[0].mxu0
        %3274 = vmatprep.mubr.bf16.mxu0 %v2942
        %3275 = vmatmul.mubr.bf16.gmra.mrb[0].mxu0 %v2941
        %v3276 = vpop.f32.mrb[0].mxu0
        %v3277 = vadd.f32 0.0, %v3276
        %v3278 = vpop.f32.mrb[0].mxu0
        %v3279 = vpop.f32.mrb[0].mxu0
        %v3280 = vadd.f32 0.0, %v3279
        %v3281 = vpop.f32.mrb[0].mxu0
        %3282 = vmatprep.mubr.bf16.mxu0 %v2946
        %3283 = vmatmul.mubr.bf16.gmra.mrb[0].mxu0 %v2945
        %v3284 = vpop.f32.mrb[0].mxu0
        %v3285 = vadd.f32 0.0, %v3284
        %v3286 = vpop.f32.mrb[0].mxu0
        %v3287 = vpop.f32.mrb[0].mxu0
        %v3288 = vadd.f32 0.0, %v3287
        %v3289 = vpop.f32.mrb[0].mxu0
        %3290 = vmatprep.mubr.bf16.mxu0 %v2950
        %3291 = vmatmul.mubr.bf16.gmra.mrb[0].mxu0 %v2949
        %v3292 = vpop.f32.mrb[0].mxu0
        %v3293 = vadd.f32 0.0, %v3292
        %v3294 = vpop.f32.mrb[0].mxu0
        %v3295 = vpop.f32.mrb[0].mxu0
        %v3296 = vadd.f32 0.0, %v3295
        %v3297 = vpop.f32.mrb[0].mxu0
        %3298 = vmatprep.mubr.bf16.mxu0 %v2954
        %3299 = vmatmul.mubr.bf16.gmra.mrb[0].mxu0 %v2953
        %v3300 = vpop.f32.mrb[0].mxu0
        %v3301 = vadd.f32 0.0, %v3300
        %v3302 = vpop.f32.mrb[0].mxu0
        %v3303 = vpop.f32.mrb[0].mxu0
        %v3304 = vadd.f32 0.0, %v3303
        %v3305 = vpop.f32.mrb[0].mxu0
        %3306 = vmatprep.mubr.bf16.mxu0 %v2958
        %3307 = vmatmul.mubr.bf16.gmra.mrb[0].mxu0 %v2957
        %v3308 = vpop.f32.mrb[0].mxu0
        %v3309 = vadd.f32 0.0, %v3308
        %v3310 = vpop.f32.mrb[0].mxu0
        %v3311 = vpop.f32.mrb[0].mxu0
        %v3312 = vadd.f32 0.0, %v3311
        %v3313 = vpop.f32.mrb[0].mxu0
        %3314 = vdwg.mxu0
        %3315 = vmatprep.subr.bf16.mxu0 0
        %3316 = vmatpush1.bf16.msra.mxu0 %v3170
        %3317 = vmatprep.subr.bf16.mxu0 0
        %3318 = vmatpush1.bf16.msra.mxu0 %v3171
        %3319 = vmatprep.subr.bf16.mxu0 0
        %3320 = vmatpush1.bf16.msra.mxu0 %v3172
        %3321 = vmatprep.subr.bf16.mxu0 0
        %3322 = vmatpush1.bf16.msra.mxu0 %v3173
        %3323 = vmatprep.subr.bf16.mxu0 0
        %3324 = vmatpush1.bf16.msra.mxu0 %v3174
        %3325 = vmatprep.subr.bf16.mxu0 0
        %3326 = vmatpush1.bf16.msra.mxu0 %v3175
        %3327 = vmatprep.subr.bf16.mxu0 0
        %3328 = vmatpush1.bf16.msra.mxu0 %v3176
        %3329 = vmatprep.subr.bf16.mxu0 0
        %3330 = vmatpush1.bf16.msra.mxu0 %v3177
        %3331 = vmatprep.subr.bf16.mxu0 0
        %3332 = vmatpush1.bf16.msra.mxu0 %v3178
        %3333 = vmatprep.subr.bf16.mxu0 0
        %3334 = vmatpush1.bf16.msra.mxu0 %v3179
        %3335 = vmatprep.subr.bf16.mxu0 0
        %3336 = vmatpush1.bf16.msra.mxu0 %v3180
        %3337 = vmatprep.subr.bf16.mxu0 0
        %3338 = vmatpush1.bf16.msra.mxu0 %v3181
        %3339 = vmatprep.subr.bf16.mxu0 0
        %3340 = vmatpush1.bf16.msra.mxu0 %v3182
        %3341 = vmatprep.subr.bf16.mxu0 0
        %3342 = vmatpush1.bf16.msra.mxu0 %v3183
        %3343 = vmatprep.subr.bf16.mxu0 0
        %3344 = vmatpush1.bf16.msra.mxu0 %v3184
        %3345 = vmatprep.subr.bf16.mxu0 0
        %3346 = vmatpush1.bf16.msra.mxu0 %v3185
        %3347 = vmatprep.mubr.bf16.mxu0 %v2932
        %3348 = vmatmul.mubr.bf16.gmra.mrb[0].mxu0 %v2931
        %v3349 = vpop.f32.mrb[0].mxu0
        %v3350 = vadd.f32 %v3253, %v3349
        %v3351 = vpop.f32.mrb[0].mxu0
        %v3352 = vpop.f32.mrb[0].mxu0
        %v3353 = vadd.f32 %v3256, %v3352
        %v3354 = vpop.f32.mrb[0].mxu0
        %3355 = vmatprep.mubr.bf16.mxu0 %v2936
        %3356 = vmatmul.mubr.bf16.gmra.mrb[0].mxu0 %v2935
        %v3357 = vpop.f32.mrb[0].mxu0
        %v3358 = vadd.f32 %v3261, %v3357
        %v3359 = vpop.f32.mrb[0].mxu0
        %v3360 = vpop.f32.mrb[0].mxu0
        %v3361 = vadd.f32 %v3264, %v3360
        %v3362 = vpop.f32.mrb[0].mxu0
        %3363 = vmatprep.mubr.bf16.mxu0 %v2940
        %3364 = vmatmul.mubr.bf16.gmra.mrb[0].mxu0 %v2939
        %v3365 = vpop.f32.mrb[0].mxu0
        %v3366 = vadd.f32 %v3269, %v3365
        %v3367 = vpop.f32.mrb[0].mxu0
        %v3368 = vpop.f32.mrb[0].mxu0
        %v3369 = vadd.f32 %v3272, %v3368
        %v3370 = vpop.f32.mrb[0].mxu0
        %3371 = vmatprep.mubr.bf16.mxu0 %v2944
        %3372 = vmatmul.mubr.bf16.gmra.mrb[0].mxu0 %v2943
        %v3373 = vpop.f32.mrb[0].mxu0
        %v3374 = vadd.f32 %v3277, %v3373
        %v3375 = vpop.f32.mrb[0].mxu0
        %v3376 = vpop.f32.mrb[0].mxu0
        %v3377 = vadd.f32 %v3280, %v3376
        %v3378 = vpop.f32.mrb[0].mxu0
        %3379 = vmatprep.mubr.bf16.mxu0 %v2948
        %3380 = vmatmul.mubr.bf16.gmra.mrb[0].mxu0 %v2947
        %v3381 = vpop.f32.mrb[0].mxu0
        %v3382 = vadd.f32 %v3285, %v3381
        %v3383 = vpop.f32.mrb[0].mxu0
        %v3384 = vpop.f32.mrb[0].mxu0
        %v3385 = vadd.f32 %v3288, %v3384
        %v3386 = vpop.f32.mrb[0].mxu0
        %3387 = vmatprep.mubr.bf16.mxu0 %v2952
        %3388 = vmatmul.mubr.bf16.gmra.mrb[0].mxu0 %v2951
        %v3389 = vpop.f32.mrb[0].mxu0
        %v3390 = vadd.f32 %v3293, %v3389
        %v3391 = vpop.f32.mrb[0].mxu0
        %v3392 = vpop.f32.mrb[0].mxu0
        %v3393 = vadd.f32 %v3296, %v3392
        %v3394 = vpop.f32.mrb[0].mxu0
        %3395 = vmatprep.mubr.bf16.mxu0 %v2956
        %3396 = vmatmul.mubr.bf16.gmra.mrb[0].mxu0 %v2955
        %v3397 = vpop.f32.mrb[0].mxu0
        %v3398 = vadd.f32 %v3301, %v3397
        %v3399 = vpop.f32.mrb[0].mxu0
        %v3400 = vpop.f32.mrb[0].mxu0
        %v3401 = vadd.f32 %v3304, %v3400
        %v3402 = vpop.f32.mrb[0].mxu0
        %3403 = vmatprep.mubr.bf16.mxu0 %v2960
        %3404 = vmatmul.mubr.bf16.gmra.mrb[0].mxu0 %v2959
        %v3405 = vpop.f32.mrb[0].mxu0
        %v3406 = vadd.f32 %v3309, %v3405
        %v3407 = vpop.f32.mrb[0].mxu0
        %v3408 = vpop.f32.mrb[0].mxu0
        %v3409 = vadd.f32 %v3312, %v3408
        %v3410 = vpop.f32.mrb[0].mxu0
        %3411 = vdwg.mxu0
        %v3476 = vunpack.c.l.b16 %v2801
        %v3477 = vunpack.c.l.b16 %v2802
        %v3478 = vunpack.c.l.b16 %v2803
        %v3479 = vunpack.c.l.b16 %v2804
        %v3480 = vunpack.c.l.b16 %v2805
        %v3481 = vunpack.c.l.b16 %v2806
        %v3482 = vunpack.c.l.b16 %v2807
        %v3483 = vunpack.c.l.b16 %v2808
        %v3484 = vunpack.c.l.b16 %v2809
        %v3485 = vunpack.c.l.b16 %v2810
        %v3486 = vunpack.c.l.b16 %v2811
        %v3487 = vunpack.c.l.b16 %v2812
        %v3488 = vunpack.c.l.b16 %v2813
        %v3489 = vunpack.c.l.b16 %v2814
        %v3490 = vunpack.c.l.b16 %v2815
        %v3491 = vunpack.c.l.b16 %v2816
        %v3492 = vunpack.c.l.b16 %v2817
        %v3493 = vunpack.c.l.b16 %v2818
        %v3494 = vunpack.c.l.b16 %v2819
        %v3495 = vunpack.c.l.b16 %v2820
        %v3496 = vunpack.c.l.b16 %v2821
        %v3497 = vunpack.c.l.b16 %v2822
        %v3498 = vunpack.c.l.b16 %v2823
        %v3499 = vunpack.c.l.b16 %v2824
        %v3500 = vunpack.c.l.b16 %v2825
        %v3501 = vunpack.c.l.b16 %v2826
        %v3502 = vunpack.c.l.b16 %v2827
        %v3503 = vunpack.c.l.b16 %v2828
        %v3504 = vunpack.c.l.b16 %v2829
        %v3505 = vunpack.c.l.b16 %v2830
        %v3506 = vunpack.c.l.b16 %v2831
        %v3507 = vunpack.c.l.b16 %v2832
        %v3508 = vunpack.c.l.b16 %v2833
        %v3509 = vunpack.c.l.b16 %v2834
        %v3510 = vunpack.c.l.b16 %v2835
        %v3511 = vunpack.c.l.b16 %v2836
        %v3512 = vunpack.c.l.b16 %v2837
        %v3513 = vunpack.c.l.b16 %v2838
        %v3514 = vunpack.c.l.b16 %v2839
        %v3515 = vunpack.c.l.b16 %v2840
        %v3516 = vunpack.c.l.b16 %v2841
        %v3517 = vunpack.c.l.b16 %v2842
        %v3518 = vunpack.c.l.b16 %v2843
        %v3519 = vunpack.c.l.b16 %v2844
        %v3520 = vunpack.c.l.b16 %v2845
        %v3521 = vunpack.c.l.b16 %v2846
        %v3522 = vunpack.c.l.b16 %v2847
        %v3523 = vunpack.c.l.b16 %v2848
        %v3524 = vunpack.c.l.b16 %v2849
        %v3525 = vunpack.c.l.b16 %v2850
        %v3526 = vunpack.c.l.b16 %v2851
        %v3527 = vunpack.c.l.b16 %v2852
        %v3528 = vunpack.c.l.b16 %v2853
        %v3529 = vunpack.c.l.b16 %v2854
        %v3530 = vunpack.c.l.b16 %v2855
        %v3531 = vunpack.c.l.b16 %v2856
        %v3532 = vunpack.c.l.b16 %v2857
        %v3533 = vunpack.c.l.b16 %v2858
        %v3534 = vunpack.c.l.b16 %v2859
        %v3535 = vunpack.c.l.b16 %v2860
        %v3536 = vunpack.c.l.b16 %v2861
        %v3537 = vunpack.c.l.b16 %v2862
        %v3538 = vunpack.c.l.b16 %v2863
        %v3539 = vunpack.c.l.b16 %v2864
        %v3540 = vpack.c.b16 %v3477, %v3476
        %v3541 = vpack.c.b16 %v3479, %v3478
        %v3542 = vpack.c.b16 %v3481, %v3480
        %v3543 = vpack.c.b16 %v3483, %v3482
        %v3544 = vpack.c.b16 %v3485, %v3484
        %v3545 = vpack.c.b16 %v3487, %v3486
        %v3546 = vpack.c.b16 %v3489, %v3488
        %v3547 = vpack.c.b16 %v3491, %v3490
        %v3548 = vpack.c.b16 %v3493, %v3492
        %v3549 = vpack.c.b16 %v3495, %v3494
        %v3550 = vpack.c.b16 %v3497, %v3496
        %v3551 = vpack.c.b16 %v3499, %v3498
        %v3552 = vpack.c.b16 %v3501, %v3500
        %v3553 = vpack.c.b16 %v3503, %v3502
        %v3554 = vpack.c.b16 %v3505, %v3504
        %v3555 = vpack.c.b16 %v3507, %v3506
        %v3556 = vpack.c.b16 %v3509, %v3508
        %v3557 = vpack.c.b16 %v3511, %v3510
        %v3558 = vpack.c.b16 %v3513, %v3512
        %v3559 = vpack.c.b16 %v3515, %v3514
        %v3560 = vpack.c.b16 %v3517, %v3516
        %v3561 = vpack.c.b16 %v3519, %v3518
        %v3562 = vpack.c.b16 %v3521, %v3520
        %v3563 = vpack.c.b16 %v3523, %v3522
        %v3564 = vpack.c.b16 %v3525, %v3524
        %v3565 = vpack.c.b16 %v3527, %v3526
        %v3566 = vpack.c.b16 %v3529, %v3528
        %v3567 = vpack.c.b16 %v3531, %v3530
        %v3568 = vpack.c.b16 %v3533, %v3532
        %v3569 = vpack.c.b16 %v3535, %v3534
        %v3570 = vpack.c.b16 %v3537, %v3536
        %v3571 = vpack.c.b16 %v3539, %v3538
        %3604 = vmatprep.subr.bf16.mxu0 0
        %3605 = vmatpush1.bf16.msra.mxu0 %v3540
        %3606 = vmatprep.subr.bf16.mxu0 0
        %3607 = vmatpush1.bf16.msra.mxu0 %v3541
        %3608 = vmatprep.subr.bf16.mxu0 0
        %3609 = vmatpush1.bf16.msra.mxu0 %v3542
        %3610 = vmatprep.subr.bf16.mxu0 0
        %3611 = vmatpush1.bf16.msra.mxu0 %v3543
        %3612 = vmatprep.subr.bf16.mxu0 0
        %3613 = vmatpush1.bf16.msra.mxu0 %v3544
        %3614 = vmatprep.subr.bf16.mxu0 0
        %3615 = vmatpush1.bf16.msra.mxu0 %v3545
        %3616 = vmatprep.subr.bf16.mxu0 0
        %3617 = vmatpush1.bf16.msra.mxu0 %v3546
        %3618 = vmatprep.subr.bf16.mxu0 0
        %3619 = vmatpush1.bf16.msra.mxu0 %v3547
        %3620 = vmatprep.subr.bf16.mxu0 0
        %3621 = vmatpush1.bf16.msra.mxu0 %v3548
        %3622 = vmatprep.subr.bf16.mxu0 0
        %3623 = vmatpush1.bf16.msra.mxu0 %v3549
        %3624 = vmatprep.subr.bf16.mxu0 0
        %3625 = vmatpush1.bf16.msra.mxu0 %v3550
        %3626 = vmatprep.subr.bf16.mxu0 0
        %3627 = vmatpush1.bf16.msra.mxu0 %v3551
        %3628 = vmatprep.subr.bf16.mxu0 0
        %3629 = vmatpush1.bf16.msra.mxu0 %v3552
        %3630 = vmatprep.subr.bf16.mxu0 0
        %3631 = vmatpush1.bf16.msra.mxu0 %v3553
        %3632 = vmatprep.subr.bf16.mxu0 0
        %3633 = vmatpush1.bf16.msra.mxu0 %v3554
        %3634 = vmatprep.subr.bf16.mxu0 0
        %3635 = vmatpush1.bf16.msra.mxu0 %v3555
        %3636 = vmatprep.mubr.bf16.mxu0 %v2770
        %3637 = vmatmul.mubr.bf16.gmra.mrb[0].mxu0 %v2769
        %v3638 = vpop.f32.mrb[0].mxu0
        %v3639 = vadd.f32 %v3350, %v3638
        %v3640 = vpop.f32.mrb[0].mxu0
        %v3641 = vpop.f32.mrb[0].mxu0
        %v3642 = vadd.f32 %v3353, %v3641
        %v3643 = vpop.f32.mrb[0].mxu0
        %3644 = vmatprep.mubr.bf16.mxu0 %v2774
        %3645 = vmatmul.mubr.bf16.gmra.mrb[0].mxu0 %v2773
        %v3646 = vpop.f32.mrb[0].mxu0
        %v3647 = vadd.f32 %v3358, %v3646
        %v3648 = vpop.f32.mrb[0].mxu0
        %v3649 = vpop.f32.mrb[0].mxu0
        %v3650 = vadd.f32 %v3361, %v3649
        %v3651 = vpop.f32.mrb[0].mxu0
        %3652 = vmatprep.mubr.bf16.mxu0 %v2778
        %3653 = vmatmul.mubr.bf16.gmra.mrb[0].mxu0 %v2777
        %v3654 = vpop.f32.mrb[0].mxu0
        %v3655 = vadd.f32 %v3366, %v3654
        %v3656 = vpop.f32.mrb[0].mxu0
        %v3657 = vpop.f32.mrb[0].mxu0
        %v3658 = vadd.f32 %v3369, %v3657
        %v3659 = vpop.f32.mrb[0].mxu0
        %3660 = vmatprep.mubr.bf16.mxu0 %v2782
        %3661 = vmatmul.mubr.bf16.gmra.mrb[0].mxu0 %v2781
        %v3662 = vpop.f32.mrb[0].mxu0
        %v3663 = vadd.f32 %v3374, %v3662
        %v3664 = vpop.f32.mrb[0].mxu0
        %v3665 = vpop.f32.mrb[0].mxu0
        %v3666 = vadd.f32 %v3377, %v3665
        %v3667 = vpop.f32.mrb[0].mxu0
        %3668 = vmatprep.mubr.bf16.mxu0 %v2786
        %3669 = vmatmul.mubr.bf16.gmra.mrb[0].mxu0 %v2785
        %v3670 = vpop.f32.mrb[0].mxu0
        %v3671 = vadd.f32 %v3382, %v3670
        %v3672 = vpop.f32.mrb[0].mxu0
        %v3673 = vpop.f32.mrb[0].mxu0
        %v3674 = vadd.f32 %v3385, %v3673
        %v3675 = vpop.f32.mrb[0].mxu0
        %3676 = vmatprep.mubr.bf16.mxu0 %v2790
        %3677 = vmatmul.mubr.bf16.gmra.mrb[0].mxu0 %v2789
        %v3678 = vpop.f32.mrb[0].mxu0
        %v3679 = vadd.f32 %v3390, %v3678
        %v3680 = vpop.f32.mrb[0].mxu0
        %v3681 = vpop.f32.mrb[0].mxu0
        %v3682 = vadd.f32 %v3393, %v3681
        %v3683 = vpop.f32.mrb[0].mxu0
        %3684 = vmatprep.mubr.bf16.mxu0 %v2794
        %3685 = vmatmul.mubr.bf16.gmra.mrb[0].mxu0 %v2793
        %v3686 = vpop.f32.mrb[0].mxu0
        %v3687 = vadd.f32 %v3398, %v3686
        %v3688 = vpop.f32.mrb[0].mxu0
        %v3689 = vpop.f32.mrb[0].mxu0
        %v3690 = vadd.f32 %v3401, %v3689
        %v3691 = vpop.f32.mrb[0].mxu0
        %3692 = vmatprep.mubr.bf16.mxu0 %v2798
        %3693 = vmatmul.mubr.bf16.gmra.mrb[0].mxu0 %v2797
        %v3694 = vpop.f32.mrb[0].mxu0
        %v3695 = vadd.f32 %v3406, %v3694
        %v3696 = vpop.f32.mrb[0].mxu0
        %v3697 = vpop.f32.mrb[0].mxu0
        %v3698 = vadd.f32 %v3409, %v3697
        %v3699 = vpop.f32.mrb[0].mxu0
        %3700 = vdwg.mxu0
        %3701 = vmatprep.subr.bf16.mxu0 0
        %3702 = vmatpush1.bf16.msra.mxu0 %v3556
        %3703 = vmatprep.subr.bf16.mxu0 0
        %3704 = vmatpush1.bf16.msra.mxu0 %v3557
        %3705 = vmatprep.subr.bf16.mxu0 0
        %3706 = vmatpush1.bf16.msra.mxu0 %v3558
        %3707 = vmatprep.subr.bf16.mxu0 0
        %3708 = vmatpush1.bf16.msra.mxu0 %v3559
        %3709 = vmatprep.subr.bf16.mxu0 0
        %3710 = vmatpush1.bf16.msra.mxu0 %v3560
        %3711 = vmatprep.subr.bf16.mxu0 0
        %3712 = vmatpush1.bf16.msra.mxu0 %v3561
        %3713 = vmatprep.subr.bf16.mxu0 0
        %3714 = vmatpush1.bf16.msra.mxu0 %v3562
        %3715 = vmatprep.subr.bf16.mxu0 0
        %3716 = vmatpush1.bf16.msra.mxu0 %v3563
        %3717 = vmatprep.subr.bf16.mxu0 0
        %3718 = vmatpush1.bf16.msra.mxu0 %v3564
        %3719 = vmatprep.subr.bf16.mxu0 0
        %3720 = vmatpush1.bf16.msra.mxu0 %v3565
        %3721 = vmatprep.subr.bf16.mxu0 0
        %3722 = vmatpush1.bf16.msra.mxu0 %v3566
        %3723 = vmatprep.subr.bf16.mxu0 0
        %3724 = vmatpush1.bf16.msra.mxu0 %v3567
        %3725 = vmatprep.subr.bf16.mxu0 0
        %3726 = vmatpush1.bf16.msra.mxu0 %v3568
        %3727 = vmatprep.subr.bf16.mxu0 0
        %3728 = vmatpush1.bf16.msra.mxu0 %v3569
        %3729 = vmatprep.subr.bf16.mxu0 0
        %3730 = vmatpush1.bf16.msra.mxu0 %v3570
        %3731 = vmatprep.subr.bf16.mxu0 0
        %3732 = vmatpush1.bf16.msra.mxu0 %v3571
        %3733 = vmatprep.mubr.bf16.mxu0 %v2772
        %3734 = vmatmul.mubr.bf16.gmra.mrb[0].mxu0 %v2771
        %v3735 = vpop.f32.mrb[0].mxu0
        %v3736 = vadd.f32 %v3639, %v3735
        %v3737 = vpop.f32.mrb[0].mxu0
        %v3738 = vpop.f32.mrb[0].mxu0
        %v3739 = vadd.f32 %v3642, %v3738
        %v3740 = vpop.f32.mrb[0].mxu0
        %3741 = vmatprep.mubr.bf16.mxu0 %v2776
        %3742 = vmatmul.mubr.bf16.gmra.mrb[0].mxu0 %v2775
        %v3743 = vpop.f32.mrb[0].mxu0
        %v3744 = vadd.f32 %v3647, %v3743
        %v3745 = vpop.f32.mrb[0].mxu0
        %v3746 = vpop.f32.mrb[0].mxu0
        %v3747 = vadd.f32 %v3650, %v3746
        %v3748 = vpop.f32.mrb[0].mxu0
        %3749 = vmatprep.mubr.bf16.mxu0 %v2780
        %3750 = vmatmul.mubr.bf16.gmra.mrb[0].mxu0 %v2779
        %v3751 = vpop.f32.mrb[0].mxu0
        %v3752 = vadd.f32 %v3655, %v3751
        %v3753 = vpop.f32.mrb[0].mxu0
        %v3754 = vpop.f32.mrb[0].mxu0
        %v3755 = vadd.f32 %v3658, %v3754
        %v3756 = vpop.f32.mrb[0].mxu0
        %3757 = vmatprep.mubr.bf16.mxu0 %v2784
        %3758 = vmatmul.mubr.bf16.gmra.mrb[0].mxu0 %v2783
        %v3759 = vpop.f32.mrb[0].mxu0
        %v3760 = vadd.f32 %v3663, %v3759
        %v3761 = vpop.f32.mrb[0].mxu0
        %v3762 = vpop.f32.mrb[0].mxu0
        %v3763 = vadd.f32 %v3666, %v3762
        %v3764 = vpop.f32.mrb[0].mxu0
        %3765 = vmatprep.mubr.bf16.mxu0 %v2788
        %3766 = vmatmul.mubr.bf16.gmra.mrb[0].mxu0 %v2787
        %v3767 = vpop.f32.mrb[0].mxu0
        %v3768 = vadd.f32 %v3671, %v3767
        %v3769 = vpop.f32.mrb[0].mxu0
        %v3770 = vpop.f32.mrb[0].mxu0
        %v3771 = vadd.f32 %v3674, %v3770
        %v3772 = vpop.f32.mrb[0].mxu0
        %3773 = vmatprep.mubr.bf16.mxu0 %v2792
        %3774 = vmatmul.mubr.bf16.gmra.mrb[0].mxu0 %v2791
        %v3775 = vpop.f32.mrb[0].mxu0
        %v3776 = vadd.f32 %v3679, %v3775
        %v3777 = vpop.f32.mrb[0].mxu0
        %v3778 = vpop.f32.mrb[0].mxu0
        %v3779 = vadd.f32 %v3682, %v3778
        %v3780 = vpop.f32.mrb[0].mxu0
        %3781 = vmatprep.mubr.bf16.mxu0 %v2796
        %3782 = vmatmul.mubr.bf16.gmra.mrb[0].mxu0 %v2795
        %v3783 = vpop.f32.mrb[0].mxu0
        %v3784 = vadd.f32 %v3687, %v3783
        %v3785 = vpop.f32.mrb[0].mxu0
        %v3786 = vpop.f32.mrb[0].mxu0
        %v3787 = vadd.f32 %v3690, %v3786
        %v3788 = vpop.f32.mrb[0].mxu0
        %3789 = vmatprep.mubr.bf16.mxu0 %v2800
        %3790 = vmatmul.mubr.bf16.gmra.mrb[0].mxu0 %v2799
        %v3791 = vpop.f32.mrb[0].mxu0
        %v3792 = vadd.f32 %v3695, %v3791
        %v3793 = vpop.f32.mrb[0].mxu0
        %v3794 = vpop.f32.mrb[0].mxu0
        %v3795 = vadd.f32 %v3698, %v3794
        %v3796 = vpop.f32.mrb[0].mxu0
        %3797 = vdwg.mxu0
        %v3798 = vmul.f32 %v1970, %v2641
        %v3799 = vmul.f32 %v1972, %v2642
        %v3800 = vmul.f32 %v1974, %v2643
        %v3801 = vmul.f32 %v1976, %v2644
        %v3802 = vmul.f32 %v1978, %v2645
        %v3803 = vmul.f32 %v1980, %v2646
        %v3804 = vmul.f32 %v1982, %v2647
        %v3805 = vmul.f32 %v1984, %v2648
        %v3806 = vmul.f32 %v1986, %v2649
        %v3807 = vmul.f32 %v1988, %v2650
        %v3808 = vmul.f32 %v1990, %v2651
        %v3809 = vmul.f32 %v1992, %v2652
        %v3810 = vmul.f32 %v1994, %v2653
        %v3811 = vmul.f32 %v1996, %v2654
        %v3812 = vmul.f32 %v1998, %v2655
        %v3813 = vmul.f32 %v2000, %v2656
        %v3814 = vmul.f32 %v2002, %v2657
        %v3815 = vmul.f32 %v2004, %v2658
        %v3816 = vmul.f32 %v2006, %v2659
        %v3817 = vmul.f32 %v2008, %v2660
        %v3818 = vmul.f32 %v2010, %v2661
        %v3819 = vmul.f32 %v2012, %v2662
        %v3820 = vmul.f32 %v2014, %v2663
        %v3821 = vmul.f32 %v2016, %v2664
        %v3822 = vmul.f32 %v2018, %v2665
        %v3823 = vmul.f32 %v2020, %v2666
        %v3824 = vmul.f32 %v2022, %v2667
        %v3825 = vmul.f32 %v2024, %v2668
        %v3826 = vmul.f32 %v2026, %v2669
        %v3827 = vmul.f32 %v2028, %v2670
        %v3828 = vmul.f32 %v2030, %v2671
        %v3829 = vmul.f32 %v2032, %v2672
        %v3830 = vmul.f32 %v2034, %v2673
        %v3831 = vmul.f32 %v2036, %v2674
        %v3832 = vmul.f32 %v2038, %v2675
        %v3833 = vmul.f32 %v2040, %v2676
        %v3834 = vmul.f32 %v2042, %v2677
        %v3835 = vmul.f32 %v2044, %v2678
        %v3836 = vmul.f32 %v2046, %v2679
        %v3837 = vmul.f32 %v2048, %v2680
        %v3838 = vmul.f32 %v2050, %v2681
        %v3839 = vmul.f32 %v2052, %v2682
        %v3840 = vmul.f32 %v2054, %v2683
        %v3841 = vmul.f32 %v2056, %v2684
        %v3842 = vmul.f32 %v2058, %v2685
        %v3843 = vmul.f32 %v2060, %v2686
        %v3844 = vmul.f32 %v2062, %v2687
        %v3845 = vmul.f32 %v2064, %v2688
        %v3846 = vmul.f32 %v2066, %v2689
        %v3847 = vmul.f32 %v2068, %v2690
        %v3848 = vmul.f32 %v2070, %v2691
        %v3849 = vmul.f32 %v2072, %v2692
        %v3850 = vmul.f32 %v2074, %v2693
        %v3851 = vmul.f32 %v2076, %v2694
        %v3852 = vmul.f32 %v2078, %v2695
        %v3853 = vmul.f32 %v2080, %v2696
        %v3854 = vmul.f32 %v2082, %v2697
        %v3855 = vmul.f32 %v2084, %v2698
        %v3856 = vmul.f32 %v2086, %v2699
        %v3857 = vmul.f32 %v2088, %v2700
        %v3858 = vmul.f32 %v2090, %v2701
        %v3859 = vmul.f32 %v2092, %v2702
        %v3860 = vmul.f32 %v2094, %v2703
        %v3861 = vmul.f32 %v2096, %v2704
        %v3862 = vpack.c.bf16 %v3802, %v3798
        %v3863 = vpack.c.bf16 %v3803, %v3799
        %v3864 = vpack.c.bf16 %v3804, %v3800
        %v3865 = vpack.c.bf16 %v3805, %v3801
        %v3866 = vpack.c.bf16 %v3810, %v3806
        %v3867 = vpack.c.bf16 %v3811, %v3807
        %v3868 = vpack.c.bf16 %v3812, %v3808
        %v3869 = vpack.c.bf16 %v3813, %v3809
        %v3870 = vpack.c.bf16 %v3818, %v3814
        %v3871 = vpack.c.bf16 %v3819, %v3815
        %v3872 = vpack.c.bf16 %v3820, %v3816
        %v3873 = vpack.c.bf16 %v3821, %v3817
        %v3874 = vpack.c.bf16 %v3826, %v3822
        %v3875 = vpack.c.bf16 %v3827, %v3823
        %v3876 = vpack.c.bf16 %v3828, %v3824
        %v3877 = vpack.c.bf16 %v3829, %v3825
        %v3878 = vpack.c.bf16 %v3834, %v3830
        %v3879 = vpack.c.bf16 %v3835, %v3831
        %v3880 = vpack.c.bf16 %v3836, %v3832
        %v3881 = vpack.c.bf16 %v3837, %v3833
        %v3882 = vpack.c.bf16 %v3842, %v3838
        %v3883 = vpack.c.bf16 %v3843, %v3839
        %v3884 = vpack.c.bf16 %v3844, %v3840
        %v3885 = vpack.c.bf16 %v3845, %v3841
        %v3886 = vpack.c.bf16 %v3850, %v3846
        %v3887 = vpack.c.bf16 %v3851, %v3847
        %v3888 = vpack.c.bf16 %v3852, %v3848
        %v3889 = vpack.c.bf16 %v3853, %v3849
        %v3890 = vpack.c.bf16 %v3858, %v3854
        %v3891 = vpack.c.bf16 %v3859, %v3855
        %v3892 = vpack.c.bf16 %v3860, %v3856
        %v3893 = vpack.c.bf16 %v3861, %v3857
        %s3894 = scalar_lea.vmem [#allocation2], 512
        %v3895 = vld [vmem:[%s3894] sm:$0xf]
        %v3896 = vld [vmem:[%s3894 + $0x4] sm:$0xf]
        %v3897 = vld [vmem:[%s3894 + $0x8] sm:$0xf]
        %v3898 = vld [vmem:[%s3894 + $0xc] sm:$0xf]
        %v3899 = vld [vmem:[%s3894 + $0x10] sm:$0xf]
        %v3900 = vld [vmem:[%s3894 + $0x14] sm:$0xf]
        %v3901 = vld [vmem:[%s3894 + $0x18] sm:$0xf]
        %v3902 = vld [vmem:[%s3894 + $0x1c] sm:$0xf]
        %v3903 = vld [vmem:[%s3894 + $0x20] sm:$0xf]
        %v3904 = vld [vmem:[%s3894 + $0x24] sm:$0xf]
        %v3905 = vld [vmem:[%s3894 + $0x28] sm:$0xf]
        %v3906 = vld [vmem:[%s3894 + $0x2c] sm:$0xf]
        %v3907 = vld [vmem:[%s3894 + $0x30] sm:$0xf]
        %v3908 = vld [vmem:[%s3894 + $0x34] sm:$0xf]
        %v3909 = vld [vmem:[%s3894 + $0x38] sm:$0xf]
        %v3910 = vld [vmem:[%s3894 + $0x3c] sm:$0xf]
        %v3911 = vld [vmem:[%s3894 + $0x40] sm:$0xf]
        %v3912 = vld [vmem:[%s3894 + $0x44] sm:$0xf]
        %v3913 = vld [vmem:[%s3894 + $0x48] sm:$0xf]
        %v3914 = vld [vmem:[%s3894 + $0x4c] sm:$0xf]
        %v3915 = vld [vmem:[%s3894 + $0x50] sm:$0xf]
        %v3916 = vld [vmem:[%s3894 + $0x54] sm:$0xf]
        %v3917 = vld [vmem:[%s3894 + $0x58] sm:$0xf]
        %v3918 = vld [vmem:[%s3894 + $0x5c] sm:$0xf]
        %v3919 = vld [vmem:[%s3894 + $0x60] sm:$0xf]
        %v3920 = vld [vmem:[%s3894 + $0x64] sm:$0xf]
        %v3921 = vld [vmem:[%s3894 + $0x68] sm:$0xf]
        %v3922 = vld [vmem:[%s3894 + $0x6c] sm:$0xf]
        %v3923 = vld [vmem:[%s3894 + $0x70] sm:$0xf]
        %v3924 = vld [vmem:[%s3894 + $0x74] sm:$0xf]
        %v3925 = vld [vmem:[%s3894 + $0x78] sm:$0xf]
        %v3926 = vld [vmem:[%s3894 + $0x7c] sm:$0xf]
        %v3927 = vld [vmem:[%s3894 + $0x80] sm:$0xf]
        %v3928 = vld [vmem:[%s3894 + $0x84] sm:$0xf]
        %v3929 = vld [vmem:[%s3894 + $0x88] sm:$0xf]
        %v3930 = vld [vmem:[%s3894 + $0x8c] sm:$0xf]
        %v3931 = vld [vmem:[%s3894 + $0x90] sm:$0xf]
        %v3932 = vld [vmem:[%s3894 + $0x94] sm:$0xf]
        %v3933 = vld [vmem:[%s3894 + $0x98] sm:$0xf]
        %v3934 = vld [vmem:[%s3894 + $0x9c] sm:$0xf]
        %v3935 = vld [vmem:[%s3894 + $0xa0] sm:$0xf]
        %v3936 = vld [vmem:[%s3894 + $0xa4] sm:$0xf]
        %v3937 = vld [vmem:[%s3894 + $0xa8] sm:$0xf]
        %v3938 = vld [vmem:[%s3894 + $0xac] sm:$0xf]
        %v3939 = vld [vmem:[%s3894 + $0xb0] sm:$0xf]
        %v3940 = vld [vmem:[%s3894 + $0xb4] sm:$0xf]
        %v3941 = vld [vmem:[%s3894 + $0xb8] sm:$0xf]
        %v3942 = vld [vmem:[%s3894 + $0xbc] sm:$0xf]
        %v3943 = vld [vmem:[%s3894 + $0xc0] sm:$0xf]
        %v3944 = vld [vmem:[%s3894 + $0xc4] sm:$0xf]
        %v3945 = vld [vmem:[%s3894 + $0xc8] sm:$0xf]
        %v3946 = vld [vmem:[%s3894 + $0xcc] sm:$0xf]
        %v3947 = vld [vmem:[%s3894 + $0xd0] sm:$0xf]
        %v3948 = vld [vmem:[%s3894 + $0xd4] sm:$0xf]
        %v3949 = vld [vmem:[%s3894 + $0xd8] sm:$0xf]
        %v3950 = vld [vmem:[%s3894 + $0xdc] sm:$0xf]
        %v3951 = vld [vmem:[%s3894 + $0xe0] sm:$0xf]
        %v3952 = vld [vmem:[%s3894 + $0xe4] sm:$0xf]
        %v3953 = vld [vmem:[%s3894 + $0xe8] sm:$0xf]
        %v3954 = vld [vmem:[%s3894 + $0xec] sm:$0xf]
        %v3955 = vld [vmem:[%s3894 + $0xf0] sm:$0xf]
        %v3956 = vld [vmem:[%s3894 + $0xf4] sm:$0xf]
        %v3957 = vld [vmem:[%s3894 + $0xf8] sm:$0xf]
        %v3958 = vld [vmem:[%s3894 + $0xfc] sm:$0xf]
        %v4023 = vunpack.c.l.b16 %v3895
        %v4024 = vunpack.c.l.b16 %v3896
        %v4025 = vunpack.c.l.b16 %v3897
        %v4026 = vunpack.c.l.b16 %v3898
        %v4027 = vunpack.c.l.b16 %v3899
        %v4028 = vunpack.c.l.b16 %v3900
        %v4029 = vunpack.c.l.b16 %v3901
        %v4030 = vunpack.c.l.b16 %v3902
        %v4031 = vunpack.c.l.b16 %v3903
        %v4032 = vunpack.c.l.b16 %v3904
        %v4033 = vunpack.c.l.b16 %v3905
        %v4034 = vunpack.c.l.b16 %v3906
        %v4035 = vunpack.c.l.b16 %v3907
        %v4036 = vunpack.c.l.b16 %v3908
        %v4037 = vunpack.c.l.b16 %v3909
        %v4038 = vunpack.c.l.b16 %v3910
        %v4039 = vunpack.c.l.b16 %v3911
        %v4040 = vunpack.c.l.b16 %v3912
        %v4041 = vunpack.c.l.b16 %v3913
        %v4042 = vunpack.c.l.b16 %v3914
        %v4043 = vunpack.c.l.b16 %v3915
        %v4044 = vunpack.c.l.b16 %v3916
        %v4045 = vunpack.c.l.b16 %v3917
        %v4046 = vunpack.c.l.b16 %v3918
        %v4047 = vunpack.c.l.b16 %v3919
        %v4048 = vunpack.c.l.b16 %v3920
        %v4049 = vunpack.c.l.b16 %v3921
        %v4050 = vunpack.c.l.b16 %v3922
        %v4051 = vunpack.c.l.b16 %v3923
        %v4052 = vunpack.c.l.b16 %v3924
        %v4053 = vunpack.c.l.b16 %v3925
        %v4054 = vunpack.c.l.b16 %v3926
        %v4055 = vunpack.c.l.b16 %v3927
        %v4056 = vunpack.c.l.b16 %v3928
        %v4057 = vunpack.c.l.b16 %v3929
        %v4058 = vunpack.c.l.b16 %v3930
        %v4059 = vunpack.c.l.b16 %v3931
        %v4060 = vunpack.c.l.b16 %v3932
        %v4061 = vunpack.c.l.b16 %v3933
        %v4062 = vunpack.c.l.b16 %v3934
        %v4063 = vunpack.c.l.b16 %v3935
        %v4064 = vunpack.c.l.b16 %v3936
        %v4065 = vunpack.c.l.b16 %v3937
        %v4066 = vunpack.c.l.b16 %v3938
        %v4067 = vunpack.c.l.b16 %v3939
        %v4068 = vunpack.c.l.b16 %v3940
        %v4069 = vunpack.c.l.b16 %v3941
        %v4070 = vunpack.c.l.b16 %v3942
        %v4071 = vunpack.c.l.b16 %v3943
        %v4072 = vunpack.c.l.b16 %v3944
        %v4073 = vunpack.c.l.b16 %v3945
        %v4074 = vunpack.c.l.b16 %v3946
        %v4075 = vunpack.c.l.b16 %v3947
        %v4076 = vunpack.c.l.b16 %v3948
        %v4077 = vunpack.c.l.b16 %v3949
        %v4078 = vunpack.c.l.b16 %v3950
        %v4079 = vunpack.c.l.b16 %v3951
        %v4080 = vunpack.c.l.b16 %v3952
        %v4081 = vunpack.c.l.b16 %v3953
        %v4082 = vunpack.c.l.b16 %v3954
        %v4083 = vunpack.c.l.b16 %v3955
        %v4084 = vunpack.c.l.b16 %v3956
        %v4085 = vunpack.c.l.b16 %v3957
        %v4086 = vunpack.c.l.b16 %v3958
        %v4087 = vpack.c.b16 %v4024, %v4023
        %v4088 = vpack.c.b16 %v4026, %v4025
        %v4089 = vpack.c.b16 %v4028, %v4027
        %v4090 = vpack.c.b16 %v4030, %v4029
        %v4091 = vpack.c.b16 %v4032, %v4031
        %v4092 = vpack.c.b16 %v4034, %v4033
        %v4093 = vpack.c.b16 %v4036, %v4035
        %v4094 = vpack.c.b16 %v4038, %v4037
        %v4095 = vpack.c.b16 %v4040, %v4039
        %v4096 = vpack.c.b16 %v4042, %v4041
        %v4097 = vpack.c.b16 %v4044, %v4043
        %v4098 = vpack.c.b16 %v4046, %v4045
        %v4099 = vpack.c.b16 %v4048, %v4047
        %v4100 = vpack.c.b16 %v4050, %v4049
        %v4101 = vpack.c.b16 %v4052, %v4051
        %v4102 = vpack.c.b16 %v4054, %v4053
        %v4103 = vpack.c.b16 %v4056, %v4055
        %v4104 = vpack.c.b16 %v4058, %v4057
        %v4105 = vpack.c.b16 %v4060, %v4059
        %v4106 = vpack.c.b16 %v4062, %v4061
        %v4107 = vpack.c.b16 %v4064, %v4063
        %v4108 = vpack.c.b16 %v4066, %v4065
        %v4109 = vpack.c.b16 %v4068, %v4067
        %v4110 = vpack.c.b16 %v4070, %v4069
        %v4111 = vpack.c.b16 %v4072, %v4071
        %v4112 = vpack.c.b16 %v4074, %v4073
        %v4113 = vpack.c.b16 %v4076, %v4075
        %v4114 = vpack.c.b16 %v4078, %v4077
        %v4115 = vpack.c.b16 %v4080, %v4079
        %v4116 = vpack.c.b16 %v4082, %v4081
        %v4117 = vpack.c.b16 %v4084, %v4083
        %v4118 = vpack.c.b16 %v4086, %v4085
        %4151 = vmatprep.subr.bf16.mxu0 0
        %4152 = vmatpush1.bf16.msra.mxu0 %v4087
        %4153 = vmatprep.subr.bf16.mxu0 0
        %4154 = vmatpush1.bf16.msra.mxu0 %v4088
        %4155 = vmatprep.subr.bf16.mxu0 0
        %4156 = vmatpush1.bf16.msra.mxu0 %v4089
        %4157 = vmatprep.subr.bf16.mxu0 0
        %4158 = vmatpush1.bf16.msra.mxu0 %v4090
        %4159 = vmatprep.subr.bf16.mxu0 0
        %4160 = vmatpush1.bf16.msra.mxu0 %v4091
        %4161 = vmatprep.subr.bf16.mxu0 0
        %4162 = vmatpush1.bf16.msra.mxu0 %v4092
        %4163 = vmatprep.subr.bf16.mxu0 0
        %4164 = vmatpush1.bf16.msra.mxu0 %v4093
        %4165 = vmatprep.subr.bf16.mxu0 0
        %4166 = vmatpush1.bf16.msra.mxu0 %v4094
        %4167 = vmatprep.subr.bf16.mxu0 0
        %4168 = vmatpush1.bf16.msra.mxu0 %v4095
        %4169 = vmatprep.subr.bf16.mxu0 0
        %4170 = vmatpush1.bf16.msra.mxu0 %v4096
        %4171 = vmatprep.subr.bf16.mxu0 0
        %4172 = vmatpush1.bf16.msra.mxu0 %v4097
        %4173 = vmatprep.subr.bf16.mxu0 0
        %4174 = vmatpush1.bf16.msra.mxu0 %v4098
        %4175 = vmatprep.subr.bf16.mxu0 0
        %4176 = vmatpush1.bf16.msra.mxu0 %v4099
        %4177 = vmatprep.subr.bf16.mxu0 0
        %4178 = vmatpush1.bf16.msra.mxu0 %v4100
        %4179 = vmatprep.subr.bf16.mxu0 0
        %4180 = vmatpush1.bf16.msra.mxu0 %v4101
        %4181 = vmatprep.subr.bf16.mxu0 0
        %4182 = vmatpush1.bf16.msra.mxu0 %v4102
        %4183 = vmatprep.mubr.bf16.mxu0 %v3863
        %4184 = vmatmul.mubr.bf16.gmra.mrb[0].mxu0 %v3862
        %v4185 = vpop.f32.mrb[0].mxu0
        %v4186 = vadd.f32 0.0, %v4185
        %v4187 = vpop.f32.mrb[0].mxu0
        %v4188 = vpop.f32.mrb[0].mxu0
        %v4189 = vadd.f32 0.0, %v4188
        %v4190 = vpop.f32.mrb[0].mxu0
        %4191 = vmatprep.mubr.bf16.mxu0 %v3867
        %4192 = vmatmul.mubr.bf16.gmra.mrb[0].mxu0 %v3866
        %v4193 = vpop.f32.mrb[0].mxu0
        %v4194 = vadd.f32 0.0, %v4193
        %v4195 = vpop.f32.mrb[0].mxu0
        %v4196 = vpop.f32.mrb[0].mxu0
        %v4197 = vadd.f32 0.0, %v4196
        %v4198 = vpop.f32.mrb[0].mxu0
        %4199 = vmatprep.mubr.bf16.mxu0 %v3871
        %4200 = vmatmul.mubr.bf16.gmra.mrb[0].mxu0 %v3870
        %v4201 = vpop.f32.mrb[0].mxu0
        %v4202 = vadd.f32 0.0, %v4201
        %v4203 = vpop.f32.mrb[0].mxu0
        %v4204 = vpop.f32.mrb[0].mxu0
        %v4205 = vadd.f32 0.0, %v4204
        %v4206 = vpop.f32.mrb[0].mxu0
        %4207 = vmatprep.mubr.bf16.mxu0 %v3875
        %4208 = vmatmul.mubr.bf16.gmra.mrb[0].mxu0 %v3874
        %v4209 = vpop.f32.mrb[0].mxu0
        %v4210 = vadd.f32 0.0, %v4209
        %v4211 = vpop.f32.mrb[0].mxu0
        %v4212 = vpop.f32.mrb[0].mxu0
        %v4213 = vadd.f32 0.0, %v4212
        %v4214 = vpop.f32.mrb[0].mxu0
        %4215 = vmatprep.mubr.bf16.mxu0 %v3879
        %4216 = vmatmul.mubr.bf16.gmra.mrb[0].mxu0 %v3878
        %v4217 = vpop.f32.mrb[0].mxu0
        %v4218 = vadd.f32 0.0, %v4217
        %v4219 = vpop.f32.mrb[0].mxu0
        %v4220 = vpop.f32.mrb[0].mxu0
        %v4221 = vadd.f32 0.0, %v4220
        %v4222 = vpop.f32.mrb[0].mxu0
        %4223 = vmatprep.mubr.bf16.mxu0 %v3883
        %4224 = vmatmul.mubr.bf16.gmra.mrb[0].mxu0 %v3882
        %v4225 = vpop.f32.mrb[0].mxu0
        %v4226 = vadd.f32 0.0, %v4225
        %v4227 = vpop.f32.mrb[0].mxu0
        %v4228 = vpop.f32.mrb[0].mxu0
        %v4229 = vadd.f32 0.0, %v4228
        %v4230 = vpop.f32.mrb[0].mxu0
        %4231 = vmatprep.mubr.bf16.mxu0 %v3887
        %4232 = vmatmul.mubr.bf16.gmra.mrb[0].mxu0 %v3886
        %v4233 = vpop.f32.mrb[0].mxu0
        %v4234 = vadd.f32 0.0, %v4233
        %v4235 = vpop.f32.mrb[0].mxu0
        %v4236 = vpop.f32.mrb[0].mxu0
        %v4237 = vadd.f32 0.0, %v4236
        %v4238 = vpop.f32.mrb[0].mxu0
        %4239 = vmatprep.mubr.bf16.mxu0 %v3891
        %4240 = vmatmul.mubr.bf16.gmra.mrb[0].mxu0 %v3890
        %v4241 = vpop.f32.mrb[0].mxu0
        %v4242 = vadd.f32 0.0, %v4241
        %v4243 = vpop.f32.mrb[0].mxu0
        %v4244 = vpop.f32.mrb[0].mxu0
        %v4245 = vadd.f32 0.0, %v4244
        %v4246 = vpop.f32.mrb[0].mxu0
        %4247 = vdwg.mxu0
        %4248 = vmatprep.subr.bf16.mxu0 0
        %4249 = vmatpush1.bf16.msra.mxu0 %v4103
        %4250 = vmatprep.subr.bf16.mxu0 0
        %4251 = vmatpush1.bf16.msra.mxu0 %v4104
        %4252 = vmatprep.subr.bf16.mxu0 0
        %4253 = vmatpush1.bf16.msra.mxu0 %v4105
        %4254 = vmatprep.subr.bf16.mxu0 0
        %4255 = vmatpush1.bf16.msra.mxu0 %v4106
        %4256 = vmatprep.subr.bf16.mxu0 0
        %4257 = vmatpush1.bf16.msra.mxu0 %v4107
        %4258 = vmatprep.subr.bf16.mxu0 0
        %4259 = vmatpush1.bf16.msra.mxu0 %v4108
        %4260 = vmatprep.subr.bf16.mxu0 0
        %4261 = vmatpush1.bf16.msra.mxu0 %v4109
        %4262 = vmatprep.subr.bf16.mxu0 0
        %4263 = vmatpush1.bf16.msra.mxu0 %v4110
        %4264 = vmatprep.subr.bf16.mxu0 0
        %4265 = vmatpush1.bf16.msra.mxu0 %v4111
        %4266 = vmatprep.subr.bf16.mxu0 0
        %4267 = vmatpush1.bf16.msra.mxu0 %v4112
        %4268 = vmatprep.subr.bf16.mxu0 0
        %4269 = vmatpush1.bf16.msra.mxu0 %v4113
        %4270 = vmatprep.subr.bf16.mxu0 0
        %4271 = vmatpush1.bf16.msra.mxu0 %v4114
        %4272 = vmatprep.subr.bf16.mxu0 0
        %4273 = vmatpush1.bf16.msra.mxu0 %v4115
        %4274 = vmatprep.subr.bf16.mxu0 0
        %4275 = vmatpush1.bf16.msra.mxu0 %v4116
        %4276 = vmatprep.subr.bf16.mxu0 0
        %4277 = vmatpush1.bf16.msra.mxu0 %v4117
        %4278 = vmatprep.subr.bf16.mxu0 0
        %4279 = vmatpush1.bf16.msra.mxu0 %v4118
        %4280 = vmatprep.mubr.bf16.mxu0 %v3865
        %4281 = vmatmul.mubr.bf16.gmra.mrb[0].mxu0 %v3864
        %v4282 = vpop.f32.mrb[0].mxu0
        %v4283 = vadd.f32 %v4186, %v4282
        %v4284 = vpop.f32.mrb[0].mxu0
        %v4285 = vpop.f32.mrb[0].mxu0
        %v4286 = vadd.f32 %v4189, %v4285
        %v4287 = vpop.f32.mrb[0].mxu0
        %4288 = vmatprep.mubr.bf16.mxu0 %v3869
        %4289 = vmatmul.mubr.bf16.gmra.mrb[0].mxu0 %v3868
        %v4290 = vpop.f32.mrb[0].mxu0
        %v4291 = vadd.f32 %v4194, %v4290
        %v4292 = vpop.f32.mrb[0].mxu0
        %v4293 = vpop.f32.mrb[0].mxu0
        %v4294 = vadd.f32 %v4197, %v4293
        %v4295 = vpop.f32.mrb[0].mxu0
        %4296 = vmatprep.mubr.bf16.mxu0 %v3873
        %4297 = vmatmul.mubr.bf16.gmra.mrb[0].mxu0 %v3872
        %v4298 = vpop.f32.mrb[0].mxu0
        %v4299 = vadd.f32 %v4202, %v4298
        %v4300 = vpop.f32.mrb[0].mxu0
        %v4301 = vpop.f32.mrb[0].mxu0
        %v4302 = vadd.f32 %v4205, %v4301
        %v4303 = vpop.f32.mrb[0].mxu0
        %4304 = vmatprep.mubr.bf16.mxu0 %v3877
        %4305 = vmatmul.mubr.bf16.gmra.mrb[0].mxu0 %v3876
        %v4306 = vpop.f32.mrb[0].mxu0
        %v4307 = vadd.f32 %v4210, %v4306
        %v4308 = vpop.f32.mrb[0].mxu0
        %v4309 = vpop.f32.mrb[0].mxu0
        %v4310 = vadd.f32 %v4213, %v4309
        %v4311 = vpop.f32.mrb[0].mxu0
        %4312 = vmatprep.mubr.bf16.mxu0 %v3881
        %4313 = vmatmul.mubr.bf16.gmra.mrb[0].mxu0 %v3880
        %v4314 = vpop.f32.mrb[0].mxu0
        %v4315 = vadd.f32 %v4218, %v4314
        %v4316 = vpop.f32.mrb[0].mxu0
        %v4317 = vpop.f32.mrb[0].mxu0
        %v4318 = vadd.f32 %v4221, %v4317
        %v4319 = vpop.f32.mrb[0].mxu0
        %4320 = vmatprep.mubr.bf16.mxu0 %v3885
        %4321 = vmatmul.mubr.bf16.gmra.mrb[0].mxu0 %v3884
        %v4322 = vpop.f32.mrb[0].mxu0
        %v4323 = vadd.f32 %v4226, %v4322
        %v4324 = vpop.f32.mrb[0].mxu0
        %v4325 = vpop.f32.mrb[0].mxu0
        %v4326 = vadd.f32 %v4229, %v4325
        %v4327 = vpop.f32.mrb[0].mxu0
        %4328 = vmatprep.mubr.bf16.mxu0 %v3889
        %4329 = vmatmul.mubr.bf16.gmra.mrb[0].mxu0 %v3888
        %v4330 = vpop.f32.mrb[0].mxu0
        %v4331 = vadd.f32 %v4234, %v4330
        %v4332 = vpop.f32.mrb[0].mxu0
        %v4333 = vpop.f32.mrb[0].mxu0
        %v4334 = vadd.f32 %v4237, %v4333
        %v4335 = vpop.f32.mrb[0].mxu0
        %4336 = vmatprep.mubr.bf16.mxu0 %v3893
        %4337 = vmatmul.mubr.bf16.gmra.mrb[0].mxu0 %v3892
        %v4338 = vpop.f32.mrb[0].mxu0
        %v4339 = vadd.f32 %v4242, %v4338
        %v4340 = vpop.f32.mrb[0].mxu0
        %v4341 = vpop.f32.mrb[0].mxu0
        %v4342 = vadd.f32 %v4245, %v4341
        %v4343 = vpop.f32.mrb[0].mxu0
        %4344 = vdwg.mxu0
        %v4345 = vadd.f32 %v3736, %v4283
        %v4346 = vadd.f32 %v3739, %v4286
        %v4347 = vadd.f32 %v3744, %v4291
        %v4348 = vadd.f32 %v3747, %v4294
        %v4349 = vadd.f32 %v3752, %v4299
        %v4350 = vadd.f32 %v3755, %v4302
        %v4351 = vadd.f32 %v3760, %v4307
        %v4352 = vadd.f32 %v3763, %v4310
        %v4353 = vadd.f32 %v3768, %v4315
        %v4354 = vadd.f32 %v3771, %v4318
        %v4355 = vadd.f32 %v3776, %v4323
        %v4356 = vadd.f32 %v3779, %v4326
        %v4357 = vadd.f32 %v3784, %v4331
        %v4358 = vadd.f32 %v3787, %v4334
        %v4359 = vadd.f32 %v3792, %v4339
        %v4360 = vadd.f32 %v3795, %v4342
        %v4361 = vmul.f32 %v2162, %v2641
        %v4362 = vmul.f32 %v2164, %v2642
        %v4363 = vmul.f32 %v2166, %v2643
        %v4364 = vmul.f32 %v2168, %v2644
        %v4365 = vmul.f32 %v2170, %v2645
        %v4366 = vmul.f32 %v2172, %v2646
        %v4367 = vmul.f32 %v2174, %v2647
        %v4368 = vmul.f32 %v2176, %v2648
        %v4369 = vmul.f32 %v2178, %v2649
        %v4370 = vmul.f32 %v2180, %v2650
        %v4371 = vmul.f32 %v2182, %v2651
        %v4372 = vmul.f32 %v2184, %v2652
        %v4373 = vmul.f32 %v2186, %v2653
        %v4374 = vmul.f32 %v2188, %v2654
        %v4375 = vmul.f32 %v2190, %v2655
        %v4376 = vmul.f32 %v2192, %v2656
        %v4377 = vmul.f32 %v2194, %v2657
        %v4378 = vmul.f32 %v2196, %v2658
        %v4379 = vmul.f32 %v2198, %v2659
        %v4380 = vmul.f32 %v2200, %v2660
        %v4381 = vmul.f32 %v2202, %v2661
        %v4382 = vmul.f32 %v2204, %v2662
        %v4383 = vmul.f32 %v2206, %v2663
        %v4384 = vmul.f32 %v2208, %v2664
        %v4385 = vmul.f32 %v2210, %v2665
        %v4386 = vmul.f32 %v2212, %v2666
        %v4387 = vmul.f32 %v2214, %v2667
        %v4388 = vmul.f32 %v2216, %v2668
        %v4389 = vmul.f32 %v2218, %v2669
        %v4390 = vmul.f32 %v2220, %v2670
        %v4391 = vmul.f32 %v2222, %v2671
        %v4392 = vmul.f32 %v2224, %v2672
        %v4393 = vmul.f32 %v2226, %v2673
        %v4394 = vmul.f32 %v2228, %v2674
        %v4395 = vmul.f32 %v2230, %v2675
        %v4396 = vmul.f32 %v2232, %v2676
        %v4397 = vmul.f32 %v2234, %v2677
        %v4398 = vmul.f32 %v2236, %v2678
        %v4399 = vmul.f32 %v2238, %v2679
        %v4400 = vmul.f32 %v2240, %v2680
        %v4401 = vmul.f32 %v2242, %v2681
        %v4402 = vmul.f32 %v2244, %v2682
        %v4403 = vmul.f32 %v2246, %v2683
        %v4404 = vmul.f32 %v2248, %v2684
        %v4405 = vmul.f32 %v2250, %v2685
        %v4406 = vmul.f32 %v2252, %v2686
        %v4407 = vmul.f32 %v2254, %v2687
        %v4408 = vmul.f32 %v2256, %v2688
        %v4409 = vmul.f32 %v2258, %v2689
        %v4410 = vmul.f32 %v2260, %v2690
        %v4411 = vmul.f32 %v2262, %v2691
        %v4412 = vmul.f32 %v2264, %v2692
        %v4413 = vmul.f32 %v2266, %v2693
        %v4414 = vmul.f32 %v2268, %v2694
        %v4415 = vmul.f32 %v2270, %v2695
        %v4416 = vmul.f32 %v2272, %v2696
        %v4417 = vmul.f32 %v2274, %v2697
        %v4418 = vmul.f32 %v2276, %v2698
        %v4419 = vmul.f32 %v2278, %v2699
        %v4420 = vmul.f32 %v2280, %v2700
        %v4421 = vmul.f32 %v2282, %v2701
        %v4422 = vmul.f32 %v2284, %v2702
        %v4423 = vmul.f32 %v2286, %v2703
        %v4424 = vmul.f32 %v2288, %v2704
        %v4425 = vpack.c.bf16 %v4365, %v4361
        %v4426 = vpack.c.bf16 %v4366, %v4362
        %v4427 = vpack.c.bf16 %v4367, %v4363
        %v4428 = vpack.c.bf16 %v4368, %v4364
        %v4429 = vpack.c.bf16 %v4373, %v4369
        %v4430 = vpack.c.bf16 %v4374, %v4370
        %v4431 = vpack.c.bf16 %v4375, %v4371
        %v4432 = vpack.c.bf16 %v4376, %v4372
        %v4433 = vpack.c.bf16 %v4381, %v4377
        %v4434 = vpack.c.bf16 %v4382, %v4378
        %v4435 = vpack.c.bf16 %v4383, %v4379
        %v4436 = vpack.c.bf16 %v4384, %v4380
        %v4437 = vpack.c.bf16 %v4389, %v4385
        %v4438 = vpack.c.bf16 %v4390, %v4386
        %v4439 = vpack.c.bf16 %v4391, %v4387
        %v4440 = vpack.c.bf16 %v4392, %v4388
        %v4441 = vpack.c.bf16 %v4397, %v4393
        %v4442 = vpack.c.bf16 %v4398, %v4394
        %v4443 = vpack.c.bf16 %v4399, %v4395
        %v4444 = vpack.c.bf16 %v4400, %v4396
        %v4445 = vpack.c.bf16 %v4405, %v4401
        %v4446 = vpack.c.bf16 %v4406, %v4402
        %v4447 = vpack.c.bf16 %v4407, %v4403
        %v4448 = vpack.c.bf16 %v4408, %v4404
        %v4449 = vpack.c.bf16 %v4413, %v4409
        %v4450 = vpack.c.bf16 %v4414, %v4410
        %v4451 = vpack.c.bf16 %v4415, %v4411
        %v4452 = vpack.c.bf16 %v4416, %v4412
        %v4453 = vpack.c.bf16 %v4421, %v4417
        %v4454 = vpack.c.bf16 %v4422, %v4418
        %v4455 = vpack.c.bf16 %v4423, %v4419
        %v4456 = vpack.c.bf16 %v4424, %v4420
        %s4457 = scalar_lea.vmem [#allocation2], 768
        %v4458 = vld [vmem:[%s4457] sm:$0xf]
        %v4459 = vld [vmem:[%s4457 + $0x4] sm:$0xf]
        %v4460 = vld [vmem:[%s4457 + $0x8] sm:$0xf]
        %v4461 = vld [vmem:[%s4457 + $0xc] sm:$0xf]
        %v4462 = vld [vmem:[%s4457 + $0x10] sm:$0xf]
        %v4463 = vld [vmem:[%s4457 + $0x14] sm:$0xf]
        %v4464 = vld [vmem:[%s4457 + $0x18] sm:$0xf]
        %v4465 = vld [vmem:[%s4457 + $0x1c] sm:$0xf]
        %v4466 = vld [vmem:[%s4457 + $0x20] sm:$0xf]
        %v4467 = vld [vmem:[%s4457 + $0x24] sm:$0xf]
        %v4468 = vld [vmem:[%s4457 + $0x28] sm:$0xf]
        %v4469 = vld [vmem:[%s4457 + $0x2c] sm:$0xf]
        %v4470 = vld [vmem:[%s4457 + $0x30] sm:$0xf]
        %v4471 = vld [vmem:[%s4457 + $0x34] sm:$0xf]
        %v4472 = vld [vmem:[%s4457 + $0x38] sm:$0xf]
        %v4473 = vld [vmem:[%s4457 + $0x3c] sm:$0xf]
        %v4474 = vld [vmem:[%s4457 + $0x40] sm:$0xf]
        %v4475 = vld [vmem:[%s4457 + $0x44] sm:$0xf]
        %v4476 = vld [vmem:[%s4457 + $0x48] sm:$0xf]
        %v4477 = vld [vmem:[%s4457 + $0x4c] sm:$0xf]
        %v4478 = vld [vmem:[%s4457 + $0x50] sm:$0xf]
        %v4479 = vld [vmem:[%s4457 + $0x54] sm:$0xf]
        %v4480 = vld [vmem:[%s4457 + $0x58] sm:$0xf]
        %v4481 = vld [vmem:[%s4457 + $0x5c] sm:$0xf]
        %v4482 = vld [vmem:[%s4457 + $0x60] sm:$0xf]
        %v4483 = vld [vmem:[%s4457 + $0x64] sm:$0xf]
        %v4484 = vld [vmem:[%s4457 + $0x68] sm:$0xf]
        %v4485 = vld [vmem:[%s4457 + $0x6c] sm:$0xf]
        %v4486 = vld [vmem:[%s4457 + $0x70] sm:$0xf]
        %v4487 = vld [vmem:[%s4457 + $0x74] sm:$0xf]
        %v4488 = vld [vmem:[%s4457 + $0x78] sm:$0xf]
        %v4489 = vld [vmem:[%s4457 + $0x7c] sm:$0xf]
        %v4490 = vld [vmem:[%s4457 + $0x80] sm:$0xf]
        %v4491 = vld [vmem:[%s4457 + $0x84] sm:$0xf]
        %v4492 = vld [vmem:[%s4457 + $0x88] sm:$0xf]
        %v4493 = vld [vmem:[%s4457 + $0x8c] sm:$0xf]
        %v4494 = vld [vmem:[%s4457 + $0x90] sm:$0xf]
        %v4495 = vld [vmem:[%s4457 + $0x94] sm:$0xf]
        %v4496 = vld [vmem:[%s4457 + $0x98] sm:$0xf]
        %v4497 = vld [vmem:[%s4457 + $0x9c] sm:$0xf]
        %v4498 = vld [vmem:[%s4457 + $0xa0] sm:$0xf]
        %v4499 = vld [vmem:[%s4457 + $0xa4] sm:$0xf]
        %v4500 = vld [vmem:[%s4457 + $0xa8] sm:$0xf]
        %v4501 = vld [vmem:[%s4457 + $0xac] sm:$0xf]
        %v4502 = vld [vmem:[%s4457 + $0xb0] sm:$0xf]
        %v4503 = vld [vmem:[%s4457 + $0xb4] sm:$0xf]
        %v4504 = vld [vmem:[%s4457 + $0xb8] sm:$0xf]
        %v4505 = vld [vmem:[%s4457 + $0xbc] sm:$0xf]
        %v4506 = vld [vmem:[%s4457 + $0xc0] sm:$0xf]
        %v4507 = vld [vmem:[%s4457 + $0xc4] sm:$0xf]
        %v4508 = vld [vmem:[%s4457 + $0xc8] sm:$0xf]
        %v4509 = vld [vmem:[%s4457 + $0xcc] sm:$0xf]
        %v4510 = vld [vmem:[%s4457 + $0xd0] sm:$0xf]
        %v4511 = vld [vmem:[%s4457 + $0xd4] sm:$0xf]
        %v4512 = vld [vmem:[%s4457 + $0xd8] sm:$0xf]
        %v4513 = vld [vmem:[%s4457 + $0xdc] sm:$0xf]
        %v4514 = vld [vmem:[%s4457 + $0xe0] sm:$0xf]
        %v4515 = vld [vmem:[%s4457 + $0xe4] sm:$0xf]
        %v4516 = vld [vmem:[%s4457 + $0xe8] sm:$0xf]
        %v4517 = vld [vmem:[%s4457 + $0xec] sm:$0xf]
        %v4518 = vld [vmem:[%s4457 + $0xf0] sm:$0xf]
        %v4519 = vld [vmem:[%s4457 + $0xf4] sm:$0xf]
        %v4520 = vld [vmem:[%s4457 + $0xf8] sm:$0xf]
        %v4521 = vld [vmem:[%s4457 + $0xfc] sm:$0xf]
        %v4586 = vunpack.c.l.b16 %v4458
        %v4587 = vunpack.c.l.b16 %v4459
        %v4588 = vunpack.c.l.b16 %v4460
        %v4589 = vunpack.c.l.b16 %v4461
        %v4590 = vunpack.c.l.b16 %v4462
        %v4591 = vunpack.c.l.b16 %v4463
        %v4592 = vunpack.c.l.b16 %v4464
        %v4593 = vunpack.c.l.b16 %v4465
        %v4594 = vunpack.c.l.b16 %v4466
        %v4595 = vunpack.c.l.b16 %v4467
        %v4596 = vunpack.c.l.b16 %v4468
        %v4597 = vunpack.c.l.b16 %v4469
        %v4598 = vunpack.c.l.b16 %v4470
        %v4599 = vunpack.c.l.b16 %v4471
        %v4600 = vunpack.c.l.b16 %v4472
        %v4601 = vunpack.c.l.b16 %v4473
        %v4602 = vunpack.c.l.b16 %v4474
        %v4603 = vunpack.c.l.b16 %v4475
        %v4604 = vunpack.c.l.b16 %v4476
        %v4605 = vunpack.c.l.b16 %v4477
        %v4606 = vunpack.c.l.b16 %v4478
        %v4607 = vunpack.c.l.b16 %v4479
        %v4608 = vunpack.c.l.b16 %v4480
        %v4609 = vunpack.c.l.b16 %v4481
        %v4610 = vunpack.c.l.b16 %v4482
        %v4611 = vunpack.c.l.b16 %v4483
        %v4612 = vunpack.c.l.b16 %v4484
        %v4613 = vunpack.c.l.b16 %v4485
        %v4614 = vunpack.c.l.b16 %v4486
        %v4615 = vunpack.c.l.b16 %v4487
        %v4616 = vunpack.c.l.b16 %v4488
        %v4617 = vunpack.c.l.b16 %v4489
        %v4618 = vunpack.c.l.b16 %v4490
        %v4619 = vunpack.c.l.b16 %v4491
        %v4620 = vunpack.c.l.b16 %v4492
        %v4621 = vunpack.c.l.b16 %v4493
        %v4622 = vunpack.c.l.b16 %v4494
        %v4623 = vunpack.c.l.b16 %v4495
        %v4624 = vunpack.c.l.b16 %v4496
        %v4625 = vunpack.c.l.b16 %v4497
        %v4626 = vunpack.c.l.b16 %v4498
        %v4627 = vunpack.c.l.b16 %v4499
        %v4628 = vunpack.c.l.b16 %v4500
        %v4629 = vunpack.c.l.b16 %v4501
        %v4630 = vunpack.c.l.b16 %v4502
        %v4631 = vunpack.c.l.b16 %v4503
        %v4632 = vunpack.c.l.b16 %v4504
        %v4633 = vunpack.c.l.b16 %v4505
        %v4634 = vunpack.c.l.b16 %v4506
        %v4635 = vunpack.c.l.b16 %v4507
        %v4636 = vunpack.c.l.b16 %v4508
        %v4637 = vunpack.c.l.b16 %v4509
        %v4638 = vunpack.c.l.b16 %v4510
        %v4639 = vunpack.c.l.b16 %v4511
        %v4640 = vunpack.c.l.b16 %v4512
        %v4641 = vunpack.c.l.b16 %v4513
        %v4642 = vunpack.c.l.b16 %v4514
        %v4643 = vunpack.c.l.b16 %v4515
        %v4644 = vunpack.c.l.b16 %v4516
        %v4645 = vunpack.c.l.b16 %v4517
        %v4646 = vunpack.c.l.b16 %v4518
        %v4647 = vunpack.c.l.b16 %v4519
        %v4648 = vunpack.c.l.b16 %v4520
        %v4649 = vunpack.c.l.b16 %v4521
        %v4650 = vpack.c.b16 %v4587, %v4586
        %v4651 = vpack.c.b16 %v4589, %v4588
        %v4652 = vpack.c.b16 %v4591, %v4590
        %v4653 = vpack.c.b16 %v4593, %v4592
        %v4654 = vpack.c.b16 %v4595, %v4594
        %v4655 = vpack.c.b16 %v4597, %v4596
        %v4656 = vpack.c.b16 %v4599, %v4598
        %v4657 = vpack.c.b16 %v4601, %v4600
        %v4658 = vpack.c.b16 %v4603, %v4602
        %v4659 = vpack.c.b16 %v4605, %v4604
        %v4660 = vpack.c.b16 %v4607, %v4606
        %v4661 = vpack.c.b16 %v4609, %v4608
        %v4662 = vpack.c.b16 %v4611, %v4610
        %v4663 = vpack.c.b16 %v4613, %v4612
        %v4664 = vpack.c.b16 %v4615, %v4614
        %v4665 = vpack.c.b16 %v4617, %v4616
        %v4666 = vpack.c.b16 %v4619, %v4618
        %v4667 = vpack.c.b16 %v4621, %v4620
        %v4668 = vpack.c.b16 %v4623, %v4622
        %v4669 = vpack.c.b16 %v4625, %v4624
        %v4670 = vpack.c.b16 %v4627, %v4626
        %v4671 = vpack.c.b16 %v4629, %v4628
        %v4672 = vpack.c.b16 %v4631, %v4630
        %v4673 = vpack.c.b16 %v4633, %v4632
        %v4674 = vpack.c.b16 %v4635, %v4634
        %v4675 = vpack.c.b16 %v4637, %v4636
        %v4676 = vpack.c.b16 %v4639, %v4638
        %v4677 = vpack.c.b16 %v4641, %v4640
        %v4678 = vpack.c.b16 %v4643, %v4642
        %v4679 = vpack.c.b16 %v4645, %v4644
        %v4680 = vpack.c.b16 %v4647, %v4646
        %v4681 = vpack.c.b16 %v4649, %v4648
        %4714 = vmatprep.subr.bf16.mxu0 0
        %4715 = vmatpush1.bf16.msra.mxu0 %v4650
        %4716 = vmatprep.subr.bf16.mxu0 0
        %4717 = vmatpush1.bf16.msra.mxu0 %v4651
        %4718 = vmatprep.subr.bf16.mxu0 0
        %4719 = vmatpush1.bf16.msra.mxu0 %v4652
        %4720 = vmatprep.subr.bf16.mxu0 0
        %4721 = vmatpush1.bf16.msra.mxu0 %v4653
        %4722 = vmatprep.subr.bf16.mxu0 0
        %4723 = vmatpush1.bf16.msra.mxu0 %v4654
        %4724 = vmatprep.subr.bf16.mxu0 0
        %4725 = vmatpush1.bf16.msra.mxu0 %v4655
        %4726 = vmatprep.subr.bf16.mxu0 0
        %4727 = vmatpush1.bf16.msra.mxu0 %v4656
        %4728 = vmatprep.subr.bf16.mxu0 0
        %4729 = vmatpush1.bf16.msra.mxu0 %v4657
        %4730 = vmatprep.subr.bf16.mxu0 0
        %4731 = vmatpush1.bf16.msra.mxu0 %v4658
        %4732 = vmatprep.subr.bf16.mxu0 0
        %4733 = vmatpush1.bf16.msra.mxu0 %v4659
        %4734 = vmatprep.subr.bf16.mxu0 0
        %4735 = vmatpush1.bf16.msra.mxu0 %v4660
        %4736 = vmatprep.subr.bf16.mxu0 0
        %4737 = vmatpush1.bf16.msra.mxu0 %v4661
        %4738 = vmatprep.subr.bf16.mxu0 0
        %4739 = vmatpush1.bf16.msra.mxu0 %v4662
        %4740 = vmatprep.subr.bf16.mxu0 0
        %4741 = vmatpush1.bf16.msra.mxu0 %v4663
        %4742 = vmatprep.subr.bf16.mxu0 0
        %4743 = vmatpush1.bf16.msra.mxu0 %v4664
        %4744 = vmatprep.subr.bf16.mxu0 0
        %4745 = vmatpush1.bf16.msra.mxu0 %v4665
        %4746 = vmatprep.mubr.bf16.mxu0 %v4426
        %4747 = vmatmul.mubr.bf16.gmra.mrb[0].mxu0 %v4425
        %v4748 = vpop.f32.mrb[0].mxu0
        %v4749 = vadd.f32 0.0, %v4748
        %v4750 = vpop.f32.mrb[0].mxu0
        %v4751 = vpop.f32.mrb[0].mxu0
        %v4752 = vadd.f32 0.0, %v4751
        %v4753 = vpop.f32.mrb[0].mxu0
        %4754 = vmatprep.mubr.bf16.mxu0 %v4430
        %4755 = vmatmul.mubr.bf16.gmra.mrb[0].mxu0 %v4429
        %v4756 = vpop.f32.mrb[0].mxu0
        %v4757 = vadd.f32 0.0, %v4756
        %v4758 = vpop.f32.mrb[0].mxu0
        %v4759 = vpop.f32.mrb[0].mxu0
        %v4760 = vadd.f32 0.0, %v4759
        %v4761 = vpop.f32.mrb[0].mxu0
        %4762 = vmatprep.mubr.bf16.mxu0 %v4434
        %4763 = vmatmul.mubr.bf16.gmra.mrb[0].mxu0 %v4433
        %v4764 = vpop.f32.mrb[0].mxu0
        %v4765 = vadd.f32 0.0, %v4764
        %v4766 = vpop.f32.mrb[0].mxu0
        %v4767 = vpop.f32.mrb[0].mxu0
        %v4768 = vadd.f32 0.0, %v4767
        %v4769 = vpop.f32.mrb[0].mxu0
        %4770 = vmatprep.mubr.bf16.mxu0 %v4438
        %4771 = vmatmul.mubr.bf16.gmra.mrb[0].mxu0 %v4437
        %v4772 = vpop.f32.mrb[0].mxu0
        %v4773 = vadd.f32 0.0, %v4772
        %v4774 = vpop.f32.mrb[0].mxu0
        %v4775 = vpop.f32.mrb[0].mxu0
        %v4776 = vadd.f32 0.0, %v4775
        %v4777 = vpop.f32.mrb[0].mxu0
        %4778 = vmatprep.mubr.bf16.mxu0 %v4442
        %4779 = vmatmul.mubr.bf16.gmra.mrb[0].mxu0 %v4441
        %v4780 = vpop.f32.mrb[0].mxu0
        %v4781 = vadd.f32 0.0, %v4780
        %v4782 = vpop.f32.mrb[0].mxu0
        %v4783 = vpop.f32.mrb[0].mxu0
        %v4784 = vadd.f32 0.0, %v4783
        %v4785 = vpop.f32.mrb[0].mxu0
        %4786 = vmatprep.mubr.bf16.mxu0 %v4446
        %4787 = vmatmul.mubr.bf16.gmra.mrb[0].mxu0 %v4445
        %v4788 = vpop.f32.mrb[0].mxu0
        %v4789 = vadd.f32 0.0, %v4788
        %v4790 = vpop.f32.mrb[0].mxu0
        %v4791 = vpop.f32.mrb[0].mxu0
        %v4792 = vadd.f32 0.0, %v4791
        %v4793 = vpop.f32.mrb[0].mxu0
        %4794 = vmatprep.mubr.bf16.mxu0 %v4450
        %4795 = vmatmul.mubr.bf16.gmra.mrb[0].mxu0 %v4449
        %v4796 = vpop.f32.mrb[0].mxu0
        %v4797 = vadd.f32 0.0, %v4796
        %v4798 = vpop.f32.mrb[0].mxu0
        %v4799 = vpop.f32.mrb[0].mxu0
        %v4800 = vadd.f32 0.0, %v4799
        %v4801 = vpop.f32.mrb[0].mxu0
        %4802 = vmatprep.mubr.bf16.mxu0 %v4454
        %4803 = vmatmul.mubr.bf16.gmra.mrb[0].mxu0 %v4453
        %v4804 = vpop.f32.mrb[0].mxu0
        %v4805 = vadd.f32 0.0, %v4804
        %v4806 = vpop.f32.mrb[0].mxu0
        %v4807 = vpop.f32.mrb[0].mxu0
        %v4808 = vadd.f32 0.0, %v4807
        %v4809 = vpop.f32.mrb[0].mxu0
        %4810 = vdwg.mxu0
        %4811 = vmatprep.subr.bf16.mxu0 0
        %4812 = vmatpush1.bf16.msra.mxu0 %v4666
        %4813 = vmatprep.subr.bf16.mxu0 0
        %4814 = vmatpush1.bf16.msra.mxu0 %v4667
        %4815 = vmatprep.subr.bf16.mxu0 0
        %4816 = vmatpush1.bf16.msra.mxu0 %v4668
        %4817 = vmatprep.subr.bf16.mxu0 0
        %4818 = vmatpush1.bf16.msra.mxu0 %v4669
        %4819 = vmatprep.subr.bf16.mxu0 0
        %4820 = vmatpush1.bf16.msra.mxu0 %v4670
        %4821 = vmatprep.subr.bf16.mxu0 0
        %4822 = vmatpush1.bf16.msra.mxu0 %v4671
        %4823 = vmatprep.subr.bf16.mxu0 0
        %4824 = vmatpush1.bf16.msra.mxu0 %v4672
        %4825 = vmatprep.subr.bf16.mxu0 0
        %4826 = vmatpush1.bf16.msra.mxu0 %v4673
        %4827 = vmatprep.subr.bf16.mxu0 0
        %4828 = vmatpush1.bf16.msra.mxu0 %v4674
        %4829 = vmatprep.subr.bf16.mxu0 0
        %4830 = vmatpush1.bf16.msra.mxu0 %v4675
        %4831 = vmatprep.subr.bf16.mxu0 0
        %4832 = vmatpush1.bf16.msra.mxu0 %v4676
        %4833 = vmatprep.subr.bf16.mxu0 0
        %4834 = vmatpush1.bf16.msra.mxu0 %v4677
        %4835 = vmatprep.subr.bf16.mxu0 0
        %4836 = vmatpush1.bf16.msra.mxu0 %v4678
        %4837 = vmatprep.subr.bf16.mxu0 0
        %4838 = vmatpush1.bf16.msra.mxu0 %v4679
        %4839 = vmatprep.subr.bf16.mxu0 0
        %4840 = vmatpush1.bf16.msra.mxu0 %v4680
        %4841 = vmatprep.subr.bf16.mxu0 0
        %4842 = vmatpush1.bf16.msra.mxu0 %v4681
        %4843 = vmatprep.mubr.bf16.mxu0 %v4428
        %4844 = vmatmul.mubr.bf16.gmra.mrb[0].mxu0 %v4427
        %v4845 = vpop.f32.mrb[0].mxu0
        %v4846 = vadd.f32 %v4749, %v4845
        %v4847 = vpop.f32.mrb[0].mxu0
        %v4848 = vpop.f32.mrb[0].mxu0
        %v4849 = vadd.f32 %v4752, %v4848
        %v4850 = vpop.f32.mrb[0].mxu0
        %4851 = vmatprep.mubr.bf16.mxu0 %v4432
        %4852 = vmatmul.mubr.bf16.gmra.mrb[0].mxu0 %v4431
        %v4853 = vpop.f32.mrb[0].mxu0
        %v4854 = vadd.f32 %v4757, %v4853
        %v4855 = vpop.f32.mrb[0].mxu0
        %v4856 = vpop.f32.mrb[0].mxu0
        %v4857 = vadd.f32 %v4760, %v4856
        %v4858 = vpop.f32.mrb[0].mxu0
        %4859 = vmatprep.mubr.bf16.mxu0 %v4436
        %4860 = vmatmul.mubr.bf16.gmra.mrb[0].mxu0 %v4435
        %v4861 = vpop.f32.mrb[0].mxu0
        %v4862 = vadd.f32 %v4765, %v4861
        %v4863 = vpop.f32.mrb[0].mxu0
        %v4864 = vpop.f32.mrb[0].mxu0
        %v4865 = vadd.f32 %v4768, %v4864
        %v4866 = vpop.f32.mrb[0].mxu0
        %4867 = vmatprep.mubr.bf16.mxu0 %v4440
        %4868 = vmatmul.mubr.bf16.gmra.mrb[0].mxu0 %v4439
        %v4869 = vpop.f32.mrb[0].mxu0
        %v4870 = vadd.f32 %v4773, %v4869
        %v4871 = vpop.f32.mrb[0].mxu0
        %v4872 = vpop.f32.mrb[0].mxu0
        %v4873 = vadd.f32 %v4776, %v4872
        %v4874 = vpop.f32.mrb[0].mxu0
        %4875 = vmatprep.mubr.bf16.mxu0 %v4444
        %4876 = vmatmul.mubr.bf16.gmra.mrb[0].mxu0 %v4443
        %v4877 = vpop.f32.mrb[0].mxu0
        %v4878 = vadd.f32 %v4781, %v4877
        %v4879 = vpop.f32.mrb[0].mxu0
        %v4880 = vpop.f32.mrb[0].mxu0
        %v4881 = vadd.f32 %v4784, %v4880
        %v4882 = vpop.f32.mrb[0].mxu0
        %4883 = vmatprep.mubr.bf16.mxu0 %v4448
        %4884 = vmatmul.mubr.bf16.gmra.mrb[0].mxu0 %v4447
        %v4885 = vpop.f32.mrb[0].mxu0
        %v4886 = vadd.f32 %v4789, %v4885
        %v4887 = vpop.f32.mrb[0].mxu0
        %v4888 = vpop.f32.mrb[0].mxu0
        %v4889 = vadd.f32 %v4792, %v4888
        %v4890 = vpop.f32.mrb[0].mxu0
        %4891 = vmatprep.mubr.bf16.mxu0 %v4452
        %4892 = vmatmul.mubr.bf16.gmra.mrb[0].mxu0 %v4451
        %v4893 = vpop.f32.mrb[0].mxu0
        %v4894 = vadd.f32 %v4797, %v4893
        %v4895 = vpop.f32.mrb[0].mxu0
        %v4896 = vpop.f32.mrb[0].mxu0
        %v4897 = vadd.f32 %v4800, %v4896
        %v4898 = vpop.f32.mrb[0].mxu0
        %4899 = vmatprep.mubr.bf16.mxu0 %v4456
        %4900 = vmatmul.mubr.bf16.gmra.mrb[0].mxu0 %v4455
        %v4901 = vpop.f32.mrb[0].mxu0
        %v4902 = vadd.f32 %v4805, %v4901
        %v4903 = vpop.f32.mrb[0].mxu0
        %v4904 = vpop.f32.mrb[0].mxu0
        %v4905 = vadd.f32 %v4808, %v4904
        %v4906 = vpop.f32.mrb[0].mxu0
        %4907 = vdwg.mxu0
        %v4908 = vadd.f32 %v4345, %v4846
        %v4909 = vadd.f32 %v4346, %v4849
        %v4910 = vadd.f32 %v4347, %v4854
        %v4911 = vadd.f32 %v4348, %v4857
        %v4912 = vadd.f32 %v4349, %v4862
        %v4913 = vadd.f32 %v4350, %v4865
        %v4914 = vadd.f32 %v4351, %v4870
        %v4915 = vadd.f32 %v4352, %v4873
        %v4916 = vadd.f32 %v4353, %v4878
        %v4917 = vadd.f32 %v4354, %v4881
        %v4918 = vadd.f32 %v4355, %v4886
        %v4919 = vadd.f32 %v4356, %v4889
        %v4920 = vadd.f32 %v4357, %v4894
        %v4921 = vadd.f32 %v4358, %v4897
        %v4922 = vadd.f32 %v4359, %v4902
        %v4923 = vadd.f32 %v4360, %v4905
        %4925 = vset.pattern.permute.xlu0 0
        %4926 = vperm.xlu0 %4925, %v362
        %v4927 = vpop.permute.xlu0 %4926
        %4930 = vset.pattern.permute.xlu0 0
        %4931 = vperm.xlu0 %4930, %v363
        %v4932 = vpop.permute.xlu0 %4931
        %4935 = vset.pattern.permute.xlu0 0
        %4936 = vperm.xlu0 %4935, %v364
        %v4937 = vpop.permute.xlu0 %4936
        %4940 = vset.pattern.permute.xlu0 0
        %4941 = vperm.xlu0 %4940, %v365
        %v4942 = vpop.permute.xlu0 %4941
        %4945 = vset.pattern.permute.xlu0 0
        %4946 = vperm.xlu0 %4945, %v366
        %v4947 = vpop.permute.xlu0 %4946
        %4950 = vset.pattern.permute.xlu0 0
        %4951 = vperm.xlu0 %4950, %v367
        %v4952 = vpop.permute.xlu0 %4951
        %4955 = vset.pattern.permute.xlu0 0
        %4956 = vperm.xlu0 %4955, %v368
        %v4957 = vpop.permute.xlu0 %4956
        %4960 = vset.pattern.permute.xlu0 0
        %4961 = vperm.xlu0 %4960, %v369
        %v4962 = vpop.permute.xlu0 %4961
        %4965 = vset.pattern.permute.xlu0 0
        %4966 = vperm.xlu0 %4965, %v370
        %v4967 = vpop.permute.xlu0 %4966
        %4970 = vset.pattern.permute.xlu0 0
        %4971 = vperm.xlu0 %4970, %v371
        %v4972 = vpop.permute.xlu0 %4971
        %4975 = vset.pattern.permute.xlu0 0
        %4976 = vperm.xlu0 %4975, %v372
        %v4977 = vpop.permute.xlu0 %4976
        %4980 = vset.pattern.permute.xlu0 0
        %4981 = vperm.xlu0 %4980, %v373
        %v4982 = vpop.permute.xlu0 %4981
        %4985 = vset.pattern.permute.xlu0 0
        %4986 = vperm.xlu0 %4985, %v374
        %v4987 = vpop.permute.xlu0 %4986
        %4990 = vset.pattern.permute.xlu0 0
        %4991 = vperm.xlu0 %4990, %v375
        %v4992 = vpop.permute.xlu0 %4991
        %4995 = vset.pattern.permute.xlu0 0
        %4996 = vperm.xlu0 %4995, %v376
        %v4997 = vpop.permute.xlu0 %4996
        %5000 = vset.pattern.permute.xlu0 0
        %5001 = vperm.xlu0 %5000, %v377
        %v5002 = vpop.permute.xlu0 %5001
        %v5004 = vmul.f32 %v4927, %v4908
        %v5005 = vmul.f32 %v4932, %v4909
        %v5006 = vmul.f32 %v4937, %v4910
        %v5007 = vmul.f32 %v4942, %v4911
        %v5008 = vmul.f32 %v4947, %v4912
        %v5009 = vmul.f32 %v4952, %v4913
        %v5010 = vmul.f32 %v4957, %v4914
        %v5011 = vmul.f32 %v4962, %v4915
        %v5012 = vmul.f32 %v4967, %v4916
        %v5013 = vmul.f32 %v4972, %v4917
        %v5014 = vmul.f32 %v4977, %v4918
        %v5015 = vmul.f32 %v4982, %v4919
        %v5016 = vmul.f32 %v4987, %v4920
        %v5017 = vmul.f32 %v4992, %v4921
        %v5018 = vmul.f32 %v4997, %v4922
        %v5019 = vmul.f32 %v5002, %v4923
        %v5020 = vld [vmem:[%s6] sm:$0x1]
        %v5022 = vlaneseq
        %v5023 = vshrl.u32 %v5022, 7
        %v5024 = vsub.s32 0, %v5023
        %v5025 = vrot.slane %v5020, %v5024
        %v5027 = vadd.f32 %v5004, %v5025
        %v5028 = vadd.f32 %v5005, %v5025
        %v5029 = vadd.f32 %v5006, %v5025
        %v5030 = vadd.f32 %v5007, %v5025
        %v5031 = vadd.f32 %v5008, %v5025
        %v5032 = vadd.f32 %v5009, %v5025
        %v5033 = vadd.f32 %v5010, %v5025
        %v5034 = vadd.f32 %v5011, %v5025
        %v5035 = vadd.f32 %v5012, %v5025
        %v5036 = vadd.f32 %v5013, %v5025
        %v5037 = vadd.f32 %v5014, %v5025
        %v5038 = vadd.f32 %v5015, %v5025
        %v5039 = vadd.f32 %v5016, %v5025
        %v5040 = vadd.f32 %v5017, %v5025
        %v5041 = vadd.f32 %v5018, %v5025
        %v5042 = vadd.f32 %v5019, %v5025
        %v5043 = vmax.f32 %v5027, 0.0
        %v5044 = vmax.f32 %v5028, 0.0
        %v5045 = vmax.f32 %v5029, 0.0
        %v5046 = vmax.f32 %v5030, 0.0
        %v5047 = vmax.f32 %v5031, 0.0
        %v5048 = vmax.f32 %v5032, 0.0
        %v5049 = vmax.f32 %v5033, 0.0
        %v5050 = vmax.f32 %v5034, 0.0
        %v5051 = vmax.f32 %v5035, 0.0
        %v5052 = vmax.f32 %v5036, 0.0
        %v5053 = vmax.f32 %v5037, 0.0
        %v5054 = vmax.f32 %v5038, 0.0
        %v5055 = vmax.f32 %v5039, 0.0
        %v5056 = vmax.f32 %v5040, 0.0
        %v5057 = vmax.f32 %v5041, 0.0
        %v5058 = vmax.f32 %v5042, 0.0
        %5059 = vst [vmem:[%s321] sm:$0xff] %v5043
        %5060 = vst [vmem:[%s321 + $0x8] sm:$0xff] %v5044
        %5061 = vst [vmem:[%s321 + $0x10] sm:$0xff] %v5045
        %5062 = vst [vmem:[%s321 + $0x18] sm:$0xff] %v5046
        %5063 = vst [vmem:[%s321 + $0x20] sm:$0xff] %v5047
        %5064 = vst [vmem:[%s321 + $0x28] sm:$0xff] %v5048
        %5065 = vst [vmem:[%s321 + $0x30] sm:$0xff] %v5049
        %5066 = vst [vmem:[%s321 + $0x38] sm:$0xff] %v5050
        %5067 = vst [vmem:[%s321 + $0x40] sm:$0xff] %v5051
        %5068 = vst [vmem:[%s321 + $0x48] sm:$0xff] %v5052
        %5069 = vst [vmem:[%s321 + $0x50] sm:$0xff] %v5053
        %5070 = vst [vmem:[%s321 + $0x58] sm:$0xff] %v5054
        %5071 = vst [vmem:[%s321 + $0x60] sm:$0xff] %v5055
        %5072 = vst [vmem:[%s321 + $0x68] sm:$0xff] %v5056
        %5073 = vst [vmem:[%s321 + $0x70] sm:$0xff] %v5057
        %5074 = vst [vmem:[%s321 + $0x78] sm:$0xff] %v5058
        %s5075 = sand.u32 %s192, 1
        %s5076 = scalar_lea.sflag [#allocation4], %s5075
        %s5077 = sand.u32 %s192, 1
        %s5078 = smul.addr %s5077, 128
        %s5079 = scalar_lea.vmem [#allocation5], %s5078
        // Predicated region
        $region53: #{tpu_custom_call.1} parent=47 // pred_check
          %p5080 = pneg %p202
        $region54: #{tpu_custom_call.1} parent=47 // pred_check_branch
          %5082 = sbr.rel (%p5080) target = $region56
        $region55: #{tpu_custom_call.1} parent=47 // pred_region
          %s5083 = smul.u32 16, %s22
          %s5085 = ssub.s32 2048, 2048
          %5086 = vsyncadd %s5076, %s5085
          %s5087 = smul.addr %s5083, 128
          %s5088 = scalar_lea.hbm %s7, %s5087
          %s5089 = sshll.u32 %s5079, 4
          %s5090 = int_to_ptr.vmem [resolvable:$true] %s5089
          %5095 = dma.vmem_to_hbm [thread:$0]  %s5090, 2048, %s5088, %s5076, 128, 128, 8
        $region56: #{tpu_custom_call.1} parent=47 // pred_fallthru
          _
      $region48: #{tpu_custom_call.1} parent=5 // pred_fallthru
        _
      %p5096 = scmp.le.s32.totalorder 2, %s17
      // Predicated region
      $region57: #{tpu_custom_call.1} parent=5 // pred_check
        %p5097 = pneg %p5096
      $region58: #{tpu_custom_call.1} parent=5 // pred_check_branch
        %5099 = sbr.rel (%p5097) target = $region60
      $region59: #{tpu_custom_call.1} parent=5 // pred_region
        %s5100 = ssub.s32 %s17, 2
        // Predicated region
        $region61: #{tpu_custom_call.1} parent=59 // pred_check
          %p5101 = pneg %p208
        $region62: #{tpu_custom_call.1} parent=59 // pred_check_branch
          %5103 = sbr.rel (%p5101) target = $region64
        $region63: #{tpu_custom_call.1} parent=59 // pred_region
          %s5104 = sand.u32 %s193, 1
          %s5105 = scalar_lea.sflag [#allocation4], %s5104
          %s5106 = sand.u32 %s193, 1
          %s5107 = smul.addr %s5106, 128
          %s5108 = scalar_lea.vmem [#allocation5], %s5107
          %5109 = dma.done %s5105, 2048
        $region64: #{tpu_custom_call.1} parent=59 // pred_fallthru
          _
      $region60: #{tpu_custom_call.1} parent=5 // pred_fallthru
        _
    $region6: #{tpu_custom_call.1} parent=1 // loop_footer
      %s21 = sadd.s32 1, %s17
    $region7: #{tpu_custom_call.1} parent=1 // loop_footer_branch
      %16 = sbr.rel target = $region3
    $region8: #{tpu_custom_call.1} parent=1 // loop_exit
      _
    %5110 = vsyncpa [#allocation3], 1
    %s5111 = scalar_lea.sflag [#allocation3], 1
    %5112 = vsyncpa %s5111, 1
    %5113 = vsyncpa [#allocation4], 1
    %s5114 = scalar_lea.sflag [#allocation4], 1
    %5115 = vsyncpa %s5114, 1

</llo_original>
